<compile_context>
chip_gen: v5e
topology: v5e:2x2
jax: 0.10.0
libtpu: 0.0.40
codegen_flags: <defaults>
</compile_context>

<pallas_src>
import functools
import re

import jax
import jax.numpy as jnp
from jax.experimental import pallas as pl
from jax.experimental.pallas import tpu as pltpu


def _round_up(a, b):
    return -(-a // b) * b


def _chip_generation():
    """Best-effort TPU generation (5, 6, 7, ...); None if unknown."""
    try:
        kind = jax.devices()[0].device_kind  # e.g. "TPU v5 lite", "TPU v6e"
        m = re.search(r"(\d+)", kind)
        if m:
            return int(m.group(1))
    except Exception:
        pass
    return None


def _gen_defaults(gen):
    """(tm_target, tn_request, vmem_cap_bytes) per TPU generation."""
    if gen is None:
        return 256, 512, 48 << 20            # unknown: conservative
    if gen >= 7:
        # v7x: 64 MiB VMEM per TC -> tighter cap + smaller imm tile; larger
        # per-core row tile so each core stays compute-bound even though both
        # cores currently re-fetch the weight slabs.
        return 640, 256, 52 << 20
    if gen == 6:
        return 512, 512, 100 << 20           # v6e: highest machine balance
    if gen == 5:
        return 256, 512, 96 << 20            # v5e: 128 MiB physical VMEM
    return 256, 512, 48 << 20                # v2-v4: conservative


def _vmem_estimate(tm, dim, tn, a_bytes, w_bytes):
    """Working-set estimate including the in-kernel f32 temporaries."""
    est = (2 * tm * dim * a_bytes            # x tile (double-buffered)
           + 2 * dim * 2 * tn * w_bytes      # fused [up|gate] slab (double-buffered)
           + 2 * tn * dim * w_bytes          # down-proj slab (double-buffered)
           + 2 * tm * dim * a_bytes          # output tile (double-buffered)
           + tm * dim * 4                    # f32 accumulator scratch
           + tm * 2 * tn * 4                 # ug f32 temporary
           + tm * tn * 4                     # h f32 temporary
           + tm * tn * w_bytes)              # h cast for the second MXU dot
    return int(est * 1.3) + (4 << 20)


def _select_tn(imm, requested, dim, w_bytes, vmem_cap):
    """Largest multiple of 128 dividing imm, <= requested, whose weight slabs
    fit the VMEM budget. Errors out instead of silently blowing VMEM."""
    budget = int(vmem_cap * 0.6)

    def slab_bytes(tn):
        return (2 * dim * 2 * tn + 2 * tn * dim) * w_bytes

    cand = min(requested, imm)
    cand -= cand % 128
    while cand >= 128:
        if imm % cand == 0 and slab_bytes(cand) <= budget:
            return cand
        cand -= 128
    # Fall back to the full intermediate dim (imm has no usable 128-multiple
    # divisor), but only if it actually fits.
    if slab_bytes(imm) <= budget:
        return imm
    raise ValueError(
        f"immediate_dim={imm} has no imm-tile whose weight slabs fit the "
        f"{vmem_cap >> 20} MiB VMEM budget (dim={dim}); pad immediate_dim to a "
        f"multiple of 128 or lower the requested tn.")


def _fit_tm(m, tm_target, dim, tn, a_bytes, w_bytes, vmem_cap):
    """Row tile: minimal padding for small M, generation target for large M,
    shrunk until the estimated working set fits the VMEM cap."""
    if m <= tm_target:
        tm = max(16, _round_up(m, 16))       # e.g. M=144 -> tm=144 (no padding)
    else:
        tm = max(16, _round_up(tm_target, 16))
    while tm > 16 and _vmem_estimate(tm, dim, tn, a_bytes, w_bytes) > vmem_cap:
        tm = max(16, _round_up(tm // 2, 16))
    return tm


def _mlp_kernel(x_ref, wug_ref, wd_ref, o_ref, acc_ref, *, bf16_epilogue):
    # x_ref  : (tm, dim)       input rows, resident across the imm axis
    # wug_ref: (dim, 2*tn)     [up | gate] weight slab for imm-tile j (squeezed)
    # wd_ref : (tn, dim)       down-proj weight slab for imm-tile j
    # o_ref  : (tm, dim)       output rows
    # acc_ref: (tm, dim) f32   accumulator across the imm axis
    j = pl.program_id(1)

    @pl.when(j == 0)
    def _init():
        acc_ref[...] = jnp.zeros_like(acc_ref)

    tn = wd_ref.shape[0]
    x = x_ref[...]                                    # native dtype into the MXU

    # Single fused dot for up+gate; f32 accumulation on the MXU.
    ug = jnp.dot(x, wug_ref[...], preferred_element_type=jnp.float32)  # (tm, 2*tn)
    up = ug[:, :tn]
    gate = ug[:, tn:]
    if bf16_epilogue:                                 # v6e/v7x bf16 VPU/EUP
        up = up.astype(jnp.bfloat16)
        gate = gate.astype(jnp.bfloat16)
    h = (gate * jax.nn.sigmoid(gate)) * up            # SiLU(gate) * up

    acc_ref[...] += jnp.dot(h.astype(wd_ref.dtype), wd_ref[...],
                            preferred_element_type=jnp.float32)

    @pl.when(j == pl.num_programs(1) - 1)
    def _finalize():
        o_ref[...] = acc_ref[...].astype(o_ref.dtype)


def _mlp_forward(x, wug, wd, *, tn, tm_target, vmem_cap, bf16_epilogue):
    orig_shape = x.shape
    dim = orig_shape[-1]
    imm = wd.shape[0]
    nk = imm // tn

    x2d = x.reshape(-1, dim)
    m = x2d.shape[0]
    a_bytes = x2d.dtype.itemsize
    w_bytes = wd.dtype.itemsize

    tm = _fit_tm(m, tm_target, dim, tn, a_bytes, w_bytes, vmem_cap)
    m_pad = _round_up(m, tm)
    if m_pad != m:
        x2d = jnp.pad(x2d, ((0, m_pad - m), (0, 0)))

    est = _vmem_estimate(tm, dim, tn, a_bytes, w_bytes)
    vmem_limit = min(max(est, 16 << 20), vmem_cap)

    kernel = functools.partial(_mlp_kernel, bf16_epilogue=bf16_epilogue)

    out = pl.pallas_call(
        kernel,
        out_shape=jax.ShapeDtypeStruct((m_pad, dim), x.dtype),
        grid_spec=pltpu.PrefetchScalarGridSpec(
            num_scalar_prefetch=0,
            grid=(m_pad // tm, nk),                     # imm reduction axis LAST
            in_specs=[
                pl.BlockSpec((tm, dim), lambda i, j: (i, 0)),             # x rows
                pl.BlockSpec((None, dim, 2 * tn), lambda i, j: (j, 0, 0)),  # [up|gate]
                pl.BlockSpec((tn, dim), lambda i, j: (j, 0)),             # down slab
            ],
            out_specs=pl.BlockSpec((tm, dim), lambda i, j: (i, 0)),
            scratch_shapes=[pltpu.VMEM((tm, dim), jnp.float32)],
        ),
        compiler_params=pltpu.CompilerParams(
            dimension_semantics=("parallel", "arbitrary"),
            vmem_limit_bytes=vmem_limit,
        ),
    )(x2d, wug, wd)

    return out[:m].reshape(orig_shape)


def make_mlp(wu, wg, wd, *, tm=None, tn=None):
    """Build the SwiGLU MLP forward. wu/wg: (dim, imm) (= nn.Linear weight.T),
    wd: (imm, dim). Weight packing happens ONCE here, not in the hot path."""
    dim, imm = wu.shape
    assert wg.shape == (dim, imm) and wd.shape == (imm, dim)

    gen = _chip_generation()
    tm_target, tn_req, vmem_cap = _gen_defaults(gen)
    if tm is not None:
        tm_target = tm
    if tn is not None:
        tn_req = tn

    w_bytes = jnp.dtype(wd.dtype).itemsize
    tn_sel = _select_tn(imm, tn_req, dim, w_bytes, vmem_cap)
    nk = imm // tn_sel

    # Pack up/gate weights per imm-tile: (nk, dim, 2*tn) = [up | gate].
    wu3 = wu.reshape(dim, nk, tn_sel).transpose(1, 0, 2)
    wg3 = wg.reshape(dim, nk, tn_sel).transpose(1, 0, 2)
    wug = jnp.concatenate([wu3, wg3], axis=-1)

    bf16_ep = (gen is not None and gen >= 6
               and jnp.dtype(wd.dtype) == jnp.bfloat16)

    fwd = jax.jit(functools.partial(_mlp_forward, tn=tn_sel, tm_target=tm_target,
                                    vmem_cap=vmem_cap, bf16_epilogue=bf16_ep))

    def apply(x):
        return fwd(x, wug, wd)

    return apply


def mlp_reference(x, wu, wg, wd):
    up = x @ wu
    gate = x @ wg
    return (jax.nn.silu(gate) * up) @ wd


if __name__ == "__main__":
    # Small but lane-dense shapes: batch=2, seq=72 (M=144 -> exercises the
    # minimal-padding row-tile path), dim=256, immediate_dim=1024 (multiple imm
    # tiles exercise the accumulation axis).
    batch, seq, dim, imm = 2, 72, 256, 1024
    key = jax.random.PRNGKey(0)
    kx, ku, kg, kd = jax.random.split(key, 4)

    x = jax.random.normal(kx, (batch, seq, dim), dtype=jnp.float32)
    # nn.Linear weights are (out, in); stored here pre-transposed as (in, out).
    wu = jax.random.normal(ku, (dim, imm), dtype=jnp.float32) * (1.0 / dim ** 0.5)
    wg = jax.random.normal(kg, (dim, imm), dtype=jnp.float32) * (1.0 / dim ** 0.5)
    wd = jax.random.normal(kd, (imm, dim), dtype=jnp.float32) * (1.0 / imm ** 0.5)

    # f32 check against the reference.
    mlp = make_mlp(wu, wg, wd)
    y = jax.block_until_ready(mlp(x))
    y_ref = mlp_reference(x, wu, wg, wd)
    assert y.shape == x.shape
    assert jnp.allclose(y, y_ref, atol=2e-2, rtol=2e-2), "f32 mismatch vs reference"

    # bf16 operands straight into the MXU (production path); looser tolerance.
    xb, wub, wgb, wdb = (a.astype(jnp.bfloat16) for a in (x, wu, wg, wd))
    mlp_b = make_mlp(wub, wgb, wdb)
    yb = jax.block_until_ready(mlp_b(xb))
    yb_ref = mlp_reference(xb.astype(jnp.float32), wub.astype(jnp.float32),
                           wgb.astype(jnp.float32), wdb.astype(jnp.float32))
    assert jnp.allclose(yb.astype(jnp.float32), yb_ref, atol=1e-1, rtol=7.5e-2), \
        "bf16 mismatch vs reference"

    print("KERNEL_OK")
</pallas_src>

<mosaic_0001>
module attributes {stable_mosaic.version = 11 : i64} {
  func.func @_mlp_kernel(%arg0: i32, %arg1: i32, %arg2: memref<144x256xf32, #tpu.memory_space<vmem>>, %arg3: memref<1x256x1024xf32, #tpu.memory_space<vmem>>, %arg4: memref<512x256xf32, #tpu.memory_space<vmem>>, %arg5: memref<144x256xf32, #tpu.memory_space<vmem>>, %arg6: memref<144x256xf32, #tpu.memory_space<vmem>>) attributes {dimension_semantics = [#tpu.dimension_semantics<parallel>, #tpu.dimension_semantics<arbitrary>], iteration_bounds = array<i64: 1, 2>, scalar_prefetch = 0 : i64, scratch_operands = 1 : i64, tpu.core_type = #tpu.core_type<tc>, window_params = [{transform_indices = @transform_0, window_bounds = array<i64: 144, 256>}, {transform_indices = @transform_1, window_bounds = array<i64: 1, 256, 1024>}, {transform_indices = @transform_2, window_bounds = array<i64: 512, 256>}, {transform_indices = @transform_3, window_bounds = array<i64: 144, 256>}]} {
    %c0_i32 = arith.constant 0 : i32
    %0 = arith.cmpi eq, %arg1, %c0_i32 : i32
    %1 = arith.extui %0 : i1 to i32
    %c0_i32_0 = arith.constant 0 : i32
    %2 = arith.cmpi ne, %1, %c0_i32_0 : i32
    scf.if %2 {
      %cst_14 = arith.constant 0.000000e+00 : f32
      %24 = vector.broadcast %cst_14 : f32 to vector<144x256xf32>
      %c0_15 = arith.constant 0 : index
      %c0_16 = arith.constant 0 : index
      %25 = vector.load %arg6[%c0_15, %c0_16] : memref<144x256xf32, #tpu.memory_space<vmem>>, vector<144x256xf32>
      tpu.vector_store %arg6[%c0_15, %c0_16], %24 {strides = array<i32>} : memref<144x256xf32, #tpu.memory_space<vmem>>, vector<144x256xf32>,
    } else {
    }
    %c0 = arith.constant 0 : index
    %c0_1 = arith.constant 0 : index
    %3 = vector.load %arg2[%c0, %c0_1] : memref<144x256xf32, #tpu.memory_space<vmem>>, vector<144x256xf32>
    %c0_2 = arith.constant 0 : index
    %c0_3 = arith.constant 0 : index
    %c0_4 = arith.constant 0 : index
    %4 = vector.load %arg3[%c0_2, %c0_3, %c0_4] : memref<1x256x1024xf32, #tpu.memory_space<vmem>>, vector<1x256x1024xf32>
    %5 = vector.shape_cast %4 : vector<1x256x1024xf32> to vector<256x1024xf32>
    %cst = arith.constant dense<0.000000e+00> : vector<144x1024xf32>
    %6 = tpu.matmul %3, %5, %cst {dimension_numbers = #tpu.dot_dimension_numbers<[1], [0], [0], [1], [0, 0, 1, 1], [], []>} : vector<144x256xf32>, vector<256x1024xf32>, vector<144x1024xf32> -> vector<144x1024xf32>
    %7 = vector.extract_strided_slice %6 {offsets = [0, 0], sizes = [144, 512], strides = [1, 1]} : vector<144x1024xf32> to vector<144x512xf32>
    %8 = vector.extract_strided_slice %6 {offsets = [0, 512], sizes = [144, 512], strides = [1, 1]} : vector<144x1024xf32> to vector<144x512xf32>
    %9 = arith.negf %8 : vector<144x512xf32>
    %10 = math.exp %9 : vector<144x512xf32>
    %cst_5 = arith.constant 1.000000e+00 : f32
    %11 = vector.broadcast %cst_5 : f32 to vector<144x512xf32>
    %12 = arith.addf %11, %10 : vector<144x512xf32>
    %13 = arith.divf %11, %12 : vector<144x512xf32>
    %14 = arith.mulf %8, %13 : vector<144x512xf32>
    %15 = arith.mulf %14, %7 : vector<144x512xf32>
    %c0_6 = arith.constant 0 : index
    %c0_7 = arith.constant 0 : index
    %16 = vector.load %arg6[%c0_6, %c0_7] : memref<144x256xf32, #tpu.memory_space<vmem>>, vector<144x256xf32>
    %c0_8 = arith.constant 0 : index
    %c0_9 = arith.constant 0 : index
    %17 = vector.load %arg4[%c0_8, %c0_9] : memref<512x256xf32, #tpu.memory_space<vmem>>, vector<512x256xf32>
    %cst_10 = arith.constant dense<0.000000e+00> : vector<144x256xf32>
    %18 = tpu.matmul %15, %17, %cst_10 {dimension_numbers = #tpu.dot_dimension_numbers<[1], [0], [0], [1], [0, 0, 1, 1], [], []>} : vector<144x512xf32>, vector<512x256xf32>, vector<144x256xf32> -> vector<144x256xf32>
    %19 = arith.addf %16, %18 : vector<144x256xf32>
    %c0_11 = arith.constant 0 : index
    %c0_12 = arith.constant 0 : index
    %20 = vector.load %arg6[%c0_11, %c0_12] : memref<144x256xf32, #tpu.memory_space<vmem>>, vector<144x256xf32>
    tpu.vector_store %arg6[%c0_11, %c0_12], %19 {strides = array<i32>} : memref<144x256xf32, #tpu.memory_space<vmem>>, vector<144x256xf32>,
    %c1_i32 = arith.constant 1 : i32
    %21 = arith.cmpi eq, %arg1, %c1_i32 : i32
    %22 = arith.extui %21 : i1 to i32
    %c0_i32_13 = arith.constant 0 : i32
    %23 = arith.cmpi ne, %22, %c0_i32_13 : i32
    scf.if %23 {
      %c0_14 = arith.constant 0 : index
      %c0_15 = arith.constant 0 : index
      %24 = vector.load %arg6[%c0_14, %c0_15] : memref<144x256xf32, #tpu.memory_space<vmem>>, vector<144x256xf32>
      %c0_16 = arith.constant 0 : index
      %c0_17 = arith.constant 0 : index
      %25 = vector.load %arg5[%c0_16, %c0_17] : memref<144x256xf32, #tpu.memory_space<vmem>>, vector<144x256xf32>
      tpu.vector_store %arg5[%c0_16, %c0_17], %24 {strides = array<i32>} : memref<144x256xf32, #tpu.memory_space<vmem>>, vector<144x256xf32>,
    } else {
    }
    return
  }
  func.func @transform_0(%arg0: i32, %arg1: i32) -> (i32, i32) {
    %c0_i32 = arith.constant 0 : i32
    %c0_i32_0 = arith.constant 0 : i32
    return %arg0, %c0_i32 : i32, i32
  }
  func.func @transform_1(%arg0: i32, %arg1: i32) -> (i32, i32, i32) {
    %c0_i32 = arith.constant 0 : i32
    %c0_i32_0 = arith.constant 0 : i32
    %c0_i32_1 = arith.constant 0 : i32
    return %arg1, %c0_i32, %c0_i32_0 : i32, i32, i32
  }
  func.func @transform_2(%arg0: i32, %arg1: i32) -> (i32, i32) {
    %c0_i32 = arith.constant 0 : i32
    %c0_i32_0 = arith.constant 0 : i32
    return %arg1, %c0_i32 : i32, i32
  }
  func.func @transform_3(%arg0: i32, %arg1: i32) -> (i32, i32) {
    %c0_i32 = arith.constant 0 : i32
    %c0_i32_0 = arith.constant 0 : i32
    return %arg0, %c0_i32 : i32, i32
  }
}

</mosaic_0001>

<llo_original>
// kernel: _mlp_forward.1
$region0: #{_mlp_forward.1}
  #allocation0 [shape = 'u32[]', space=smem, size = 0x4, offset = 0x4, fixed_abs, tag = 'smem constant byte address 0x4 - core index']
  #allocation1 [shape = 'u32[72,128]{1,0:T(1,128)}', space=vmem, size = 0x9000, scoped, tag = 'internal scratch']
  #allocation2 [shape = 'f32[144,256]{1,0:T(8,128)}', space=vmem, size = 0x24000, scoped, tag = 'scratch operand']
  %s0 = inlined_call_operand.hbm [shape: f32[144,256], index: 0, kind: input, shape index: {}]
  %s1 = inlined_call_operand.hbm [shape: f32[2,256,1024], index: 1, kind: input, shape index: {}]
  %s2 = inlined_call_operand.hbm [shape: f32[1024,256], index: 2, kind: input, shape index: {}]
  %s3 = inlined_call_operand.hbm [shape: f32[144,256], index: 3, kind: output, shape index: {}]
  %s4 = sld [smem:[#allocation0]]
  $region65: #{_mlp_forward.1} parent=0
    _
  %s6 = ssub.s32 1, %s4
  %s7 = scalar_select 0, %s6, %s4
  $region1: #{_mlp_forward.1} parent=0
    #allocation3 [shape = 'u8[147456]{0}', space=vmem, size = 0x24000, scoped, tag = 'input window, operand 0, single buffered']
    #allocation4 [shape = 's32[2]{0}', space=sflag, size = 0x8, scoped, tag = 'scoped memory for _mlp_forward.1']
    #allocation5 [shape = 's32[2]{0}', space=sflag, size = 0x8, scoped, tag = 'scoped memory for _mlp_forward.1']
    #allocation6 [shape = 'u8[2097152]{0}', space=vmem, size = 0x200000, scoped, tag = 'input window, operand 1']
    #allocation7 [shape = 's32[2]{0}', space=sflag, size = 0x8, scoped, tag = 'scoped memory for _mlp_forward.1']
    #allocation8 [shape = 'u8[1048576]{0}', space=vmem, size = 0x100000, scoped, tag = 'input window, operand 2']
    #allocation9 [shape = 'u8[147456]{0}', space=vmem, size = 0x24000, scoped, tag = 'output window, operand 0, single buffered']
    %8 = vsyncpa [#allocation4], 0
    %9 = vsyncpa [#allocation7], 0
    %s10 = scalar_lea.sflag [#allocation7], 1
    %11 = vsyncpa %s10, 0
    %12 = vsyncpa [#allocation5], 0
    loop: start=0, step=1, limit=4
    $region2: #{_mlp_forward.1} parent=1 // loop_pre_header
      _
    $region3: #{_mlp_forward.1} parent=1 // loop_header
      %s14 = sphi 0, %s18
      %p15 = scmp.ge.s32.totalorder %s14, 4
      %s21 = sphi 0, %s33
      %s22 = sphi 0, %s29
      %s23 = sphi 0, %s21
      %s24 = sphi 0, %s22
      %s25 = sphi 0, %s23
      %s26 = sphi 0, %s24
      %s36 = sphi 0, %s38
      %s39 = sphi 0, %s36
      %s40 = sphi 0, %s39
      %s56 = sphi 0, %s40
      %s62 = sphi 0, %s64
      %s65 = sphi 0, %s62
      %s66 = sphi 0, %s65
      %s82 = sphi 0, %s66
      %s88 = sphi 0, %s90
      %s91 = sphi 0, %s88
      %s92 = sphi 0, %s91
      %s108 = sphi 0, %s92
      %s114 = sphi 0, %s116
      %s117 = sphi 0, %s114
      %s118 = sphi 0, %s117
      %s134 = sphi 0, %s118
    $region4: #{_mlp_forward.1} parent=1 // loop_header_branch
      %17 = sbr.rel (%p15) target = $region8
    $region5: #{_mlp_forward.1} parent=1 // loop_body
      %s19 = ssub.s32 %s14, 1
      %s20 = ssub.s32 %s14, 2
      %s27 = sadd.s32 1, %s22
      %p28 = scmp.ge.s32.totalorder %s27, 2
      %s29 = scalar_select %p28, 0, %s27
      %s30 = sadd.s32 1, %s21
      %s31 = scalar_select %p28, %s30, %s21
      %p32 = scmp.ge.s32.totalorder %s31, 1
      %s33 = scalar_select %p32, 0, %s31
      %s34 = ssub.s32 %s21, %s33
      %p35 = scmp.eq.s32.totalorder %s34, 0
      %s37 = sadd.s32 %s36, 1
      %s38 = scalar_select %p35, %s36, %s37
      %p41 = pneg %p35
      %p42 = scmp.eq.s32.totalorder %s14, 1
      %p43 = por %p41, %p42
      %p44 = scmp.ne.s32.totalorder %s36, %s39
      %p45 = scmp.eq.s32.totalorder %s14, 0
      %p46 = por %p44, %p45
      %p47 = scmp.ne.s32.totalorder %s36, %s39
      %p48 = scmp.eq.s32.totalorder %s19, 1
      %p49 = por %p47, %p48
      %p50 = scmp.ne.s32.totalorder %s39, %s40
      %p51 = scmp.eq.s32.totalorder %s19, 0
      %p52 = por %p50, %p51
      %p53 = scmp.ne.s32.totalorder %s39, %s40
      %p54 = scmp.eq.s32.totalorder %s20, 1
      %p55 = por %p53, %p54
      %p57 = scmp.ne.s32.totalorder %s40, %s56
      %p58 = scmp.eq.s32.totalorder %s20, 0
      %p59 = por %p57, %p58
      %s60 = ssub.s32 %s22, %s29
      %p61 = scmp.eq.s32.totalorder %s60, 0
      %s63 = sadd.s32 %s62, 1
      %s64 = scalar_select %p61, %s62, %s63
      %p67 = pneg %p61
      %p68 = scmp.eq.s32.totalorder %s14, 1
      %p69 = por %p67, %p68
      %p70 = scmp.ne.s32.totalorder %s62, %s65
      %p71 = scmp.eq.s32.totalorder %s14, 0
      %p72 = por %p70, %p71
      %p73 = scmp.ne.s32.totalorder %s62, %s65
      %p74 = scmp.eq.s32.totalorder %s19, 1
      %p75 = por %p73, %p74
      %p76 = scmp.ne.s32.totalorder %s65, %s66
      %p77 = scmp.eq.s32.totalorder %s19, 0
      %p78 = por %p76, %p77
      %p79 = scmp.ne.s32.totalorder %s65, %s66
      %p80 = scmp.eq.s32.totalorder %s20, 1
      %p81 = por %p79, %p80
      %p83 = scmp.ne.s32.totalorder %s66, %s82
      %p84 = scmp.eq.s32.totalorder %s20, 0
      %p85 = por %p83, %p84
      %s86 = ssub.s32 %s22, %s29
      %p87 = scmp.eq.s32.totalorder %s86, 0
      %s89 = sadd.s32 %s88, 1
      %s90 = scalar_select %p87, %s88, %s89
      %p93 = pneg %p87
      %p94 = scmp.eq.s32.totalorder %s14, 1
      %p95 = por %p93, %p94
      %p96 = scmp.ne.s32.totalorder %s88, %s91
      %p97 = scmp.eq.s32.totalorder %s14, 0
      %p98 = por %p96, %p97
      %p99 = scmp.ne.s32.totalorder %s88, %s91
      %p100 = scmp.eq.s32.totalorder %s19, 1
      %p101 = por %p99, %p100
      %p102 = scmp.ne.s32.totalorder %s91, %s92
      %p103 = scmp.eq.s32.totalorder %s19, 0
      %p104 = por %p102, %p103
      %p105 = scmp.ne.s32.totalorder %s91, %s92
      %p106 = scmp.eq.s32.totalorder %s20, 1
      %p107 = por %p105, %p106
      %p109 = scmp.ne.s32.totalorder %s92, %s108
      %p110 = scmp.eq.s32.totalorder %s20, 0
      %p111 = por %p109, %p110
      %s112 = ssub.s32 %s21, %s33
      %p113 = scmp.eq.s32.totalorder %s112, 0
      %s115 = sadd.s32 %s114, 1
      %s116 = scalar_select %p113, %s114, %s115
      %p119 = pneg %p113
      %p120 = scmp.eq.s32.totalorder %s14, 1
      %p121 = por %p119, %p120
      %p122 = scmp.ne.s32.totalorder %s114, %s117
      %p123 = scmp.eq.s32.totalorder %s14, 0
      %p124 = por %p122, %p123
      %p125 = scmp.ne.s32.totalorder %s114, %s117
      %p126 = scmp.eq.s32.totalorder %s19, 1
      %p127 = por %p125, %p126
      %p128 = scmp.ne.s32.totalorder %s117, %s118
      %p129 = scmp.eq.s32.totalorder %s19, 0
      %p130 = por %p128, %p129
      %p131 = scmp.ne.s32.totalorder %s117, %s118
      %p132 = scmp.eq.s32.totalorder %s20, 1
      %p133 = por %p131, %p132
      %p135 = scmp.ne.s32.totalorder %s118, %s134
      %p136 = scmp.eq.s32.totalorder %s20, 0
      %p137 = por %p135, %p136
      %p138 = scmp.le.s32.totalorder 1, %s14
      %p139 = scmp.lt.s32.totalorder %s14, 3
      %p140 = pnand %p138, %p139
      %p141 = pneg %p140
      // Predicated region
      $region9: #{_mlp_forward.1} parent=5 // pred_check
        _
      $region10: #{_mlp_forward.1} parent=5 // pred_check_branch
        %143 = sbr.rel (%p140) target = $region12
      $region11: #{_mlp_forward.1} parent=5 // pred_region
        %s144 = ssub.s32 %s14, 1
        // Predicated region
        $region13: #{_mlp_forward.1} parent=11 // pred_check
          %p145 = pneg %p52
        $region14: #{_mlp_forward.1} parent=11 // pred_check_branch
          %147 = sbr.rel (%p145) target = $region16
        $region15: #{_mlp_forward.1} parent=11 // pred_region
          %s148 = smul.u32 18, %s23
          %150 = vsyncadd [#allocation4], 0
          %s151 = smul.addr %s148, 2
          %s152 = smul.addr %s151, 8
          %s153 = scalar_lea.hbm %s0, %s152
          %s154 = sshll.u32 %s153, 4
          %s155 = int_to_ptr.hbm [resolvable:$true] %s154
          %s156 = sshll.u32 [#allocation3], 4
          %s157 = int_to_ptr.vmem [resolvable:$true] %s156
          %162 = dma.hbm_to_vmem [thread:$0]  %s155, 4608, %s157, [#allocation4], 256, 256, 16
        $region16: #{_mlp_forward.1} parent=11 // pred_fallthru
          _
      $region12: #{_mlp_forward.1} parent=5 // pred_fallthru
        _
      %p163 = scmp.lt.s32.totalorder %s14, 2
      // Predicated region
      $region17: #{_mlp_forward.1} parent=5 // pred_check
        %p164 = pneg %p163
      $region18: #{_mlp_forward.1} parent=5 // pred_check_branch
        %166 = sbr.rel (%p164) target = $region20
      $region19: #{_mlp_forward.1} parent=5 // pred_region
        // Predicated region
        $region21: #{_mlp_forward.1} parent=19 // pred_check
          %p167 = pneg %p72
        $region22: #{_mlp_forward.1} parent=19 // pred_check_branch
          %169 = sbr.rel (%p167) target = $region24
        $region23: #{_mlp_forward.1} parent=19 // pred_region
          %s170 = sand.u32 %s14, 1
          %s171 = scalar_lea.sflag [#allocation7], %s170
          %s172 = sand.u32 %s62, 1
          %s173 = smul.addr %s172, 2048
          %s174 = scalar_lea.vmem [#allocation6], %s173
          %176 = vsyncadd %s171, 0
          %s177 = smul.addr %s22, 256
          %s178 = smul.addr %s177, 8
          %s179 = scalar_lea.hbm %s1, %s178
          %s180 = sshll.u32 %s179, 4
          %s181 = int_to_ptr.hbm [resolvable:$true] %s180
          %s182 = sshll.u32 %s174, 4
          %s183 = int_to_ptr.vmem [resolvable:$true] %s182
          %188 = dma.hbm_to_vmem [thread:$0]  %s181, 32768, %s183, %s171, 1024, 1024, 64
        $region24: #{_mlp_forward.1} parent=19 // pred_fallthru
          _
        // Predicated region
        $region25: #{_mlp_forward.1} parent=19 // pred_check
          %p189 = pneg %p98
        $region26: #{_mlp_forward.1} parent=19 // pred_check_branch
          %191 = sbr.rel (%p189) target = $region28
        $region27: #{_mlp_forward.1} parent=19 // pred_region
          %s192 = sand.u32 %s14, 1
          %s193 = scalar_lea.sflag [#allocation7], %s192
          %s194 = sand.u32 %s88, 1
          %s195 = smul.addr %s194, 1024
          %s196 = scalar_lea.vmem [#allocation8], %s195
          %s197 = smul.u32 64, %s22
          %199 = vsyncadd %s193, 0
          %s200 = smul.addr %s197, 2
          %s201 = smul.addr %s200, 8
          %s202 = scalar_lea.hbm %s2, %s201
          %s203 = sshll.u32 %s202, 4
          %s204 = int_to_ptr.hbm [resolvable:$true] %s203
          %s205 = sshll.u32 %s196, 4
          %s206 = int_to_ptr.vmem [resolvable:$true] %s205
          %211 = dma.hbm_to_vmem [thread:$0]  %s204, 16384, %s206, %s193, 256, 256, 16
        $region28: #{_mlp_forward.1} parent=19 // pred_fallthru
          _
      $region20: #{_mlp_forward.1} parent=5 // pred_fallthru
        _
      %p212 = scmp.le.s32.totalorder 1, %s14
      %p213 = scmp.lt.s32.totalorder %s14, 3
      %p214 = pnand %p212, %p213
      %p215 = pneg %p214
      // Predicated region
      $region29: #{_mlp_forward.1} parent=5 // pred_check
        _
      $region30: #{_mlp_forward.1} parent=5 // pred_check_branch
        %217 = sbr.rel (%p214) target = $region32
      $region31: #{_mlp_forward.1} parent=5 // pred_region
        %s218 = ssub.s32 %s14, 1
        // Predicated region
        $region33: #{_mlp_forward.1} parent=31 // pred_check
          %p219 = pneg %p52
        $region34: #{_mlp_forward.1} parent=31 // pred_check_branch
          %221 = sbr.rel (%p219) target = $region36
        $region35: #{_mlp_forward.1} parent=31 // pred_region
          %223 = dma.done [#allocation4], 4608
        $region36: #{_mlp_forward.1} parent=31 // pred_fallthru
          _
        %s224 = sand.u32 %s19, 1
        %s225 = scalar_lea.sflag [#allocation7], %s224
        %s226 = sand.u32 %s65, 1
        %s227 = smul.addr %s226, 2048
        %s228 = scalar_lea.vmem [#allocation6], %s227
        // Predicated region
        $region37: #{_mlp_forward.1} parent=31 // pred_check
          %p229 = pneg %p78
        $region38: #{_mlp_forward.1} parent=31 // pred_check_branch
          %231 = sbr.rel (%p229) target = $region40
        $region39: #{_mlp_forward.1} parent=31 // pred_region
          %233 = dma.done %s225, 32768
        $region40: #{_mlp_forward.1} parent=31 // pred_fallthru
          _
        %s234 = sand.u32 %s19, 1
        %s235 = scalar_lea.sflag [#allocation7], %s234
        %s236 = sand.u32 %s91, 1
        %s237 = smul.addr %s236, 1024
        %s238 = scalar_lea.vmem [#allocation8], %s237
        // Predicated region
        $region41: #{_mlp_forward.1} parent=31 // pred_check
          %p239 = pneg %p104
        $region42: #{_mlp_forward.1} parent=31 // pred_check_branch
          %241 = sbr.rel (%p239) target = $region44
        $region43: #{_mlp_forward.1} parent=31 // pred_region
          %243 = dma.done %s235, 16384
        $region44: #{_mlp_forward.1} parent=31 // pred_fallthru
          _
        %p244 = pneg %p52
        %p245 = pneg %p49
        %s246 = sand.u32 %s19, 1
        %s247 = scalar_lea.sflag [#allocation7], %s246
        %s248 = sand.u32 %s65, 1
        %s249 = smul.addr %s248, 2048
        %s250 = scalar_lea.vmem [#allocation6], %s249
        %p251 = pneg %p78
        %p252 = pneg %p75
        %s253 = sand.u32 %s19, 1
        %s254 = scalar_lea.sflag [#allocation7], %s253
        %s255 = sand.u32 %s91, 1
        %s256 = smul.addr %s255, 1024
        %s257 = scalar_lea.vmem [#allocation8], %s256
        %p258 = pneg %p104
        %p259 = pneg %p101
        %p260 = pneg %p130
        %p261 = pneg %p127
        %s262 = smul.u32 18, %s23
        %s263 = smul.u32 64, %s24
        %s264 = smul.u32 18, %s23
        %p265 = scmp.eq.s32.totalorder %s24, 0
        // Predicated region
        $region45: #{_mlp_forward.1} parent=31 // pred_check
          %p266 = pneg %p265
        $region46: #{_mlp_forward.1} parent=31 // pred_check_branch
          %268 = sbr.rel (%p266) target = $region48
        $region47: #{_mlp_forward.1} parent=31 // pred_region
          %269 = vst [vmem:[#allocation2] sm:$0xff] 0.0
          %270 = vst [vmem:[#allocation2 + $0x8] sm:$0xff] 0.0
          %271 = vst [vmem:[#allocation2 + $0x10] sm:$0xff] 0.0
          %272 = vst [vmem:[#allocation2 + $0x18] sm:$0xff] 0.0
          %273 = vst [vmem:[#allocation2 + $0x20] sm:$0xff] 0.0
          %274 = vst [vmem:[#allocation2 + $0x28] sm:$0xff] 0.0
          %275 = vst [vmem:[#allocation2 + $0x30] sm:$0xff] 0.0
          %276 = vst [vmem:[#allocation2 + $0x38] sm:$0xff] 0.0
          %277 = vst [vmem:[#allocation2 + $0x40] sm:$0xff] 0.0
          %278 = vst [vmem:[#allocation2 + $0x48] sm:$0xff] 0.0
          %279 = vst [vmem:[#allocation2 + $0x50] sm:$0xff] 0.0
          %280 = vst [vmem:[#allocation2 + $0x58] sm:$0xff] 0.0
          %281 = vst [vmem:[#allocation2 + $0x60] sm:$0xff] 0.0
          %282 = vst [vmem:[#allocation2 + $0x68] sm:$0xff] 0.0
          %283 = vst [vmem:[#allocation2 + $0x70] sm:$0xff] 0.0
          %284 = vst [vmem:[#allocation2 + $0x78] sm:$0xff] 0.0
          %285 = vst [vmem:[#allocation2 + $0x80] sm:$0xff] 0.0
          %286 = vst [vmem:[#allocation2 + $0x88] sm:$0xff] 0.0
          %287 = vst [vmem:[#allocation2 + $0x90] sm:$0xff] 0.0
          %288 = vst [vmem:[#allocation2 + $0x98] sm:$0xff] 0.0
          %289 = vst [vmem:[#allocation2 + $0xa0] sm:$0xff] 0.0
          %290 = vst [vmem:[#allocation2 + $0xa8] sm:$0xff] 0.0
          %291 = vst [vmem:[#allocation2 + $0xb0] sm:$0xff] 0.0
          %292 = vst [vmem:[#allocation2 + $0xb8] sm:$0xff] 0.0
          %293 = vst [vmem:[#allocation2 + $0xc0] sm:$0xff] 0.0
          %294 = vst [vmem:[#allocation2 + $0xc8] sm:$0xff] 0.0
          %295 = vst [vmem:[#allocation2 + $0xd0] sm:$0xff] 0.0
          %296 = vst [vmem:[#allocation2 + $0xd8] sm:$0xff] 0.0
          %297 = vst [vmem:[#allocation2 + $0xe0] sm:$0xff] 0.0
          %298 = vst [vmem:[#allocation2 + $0xe8] sm:$0xff] 0.0
          %299 = vst [vmem:[#allocation2 + $0xf0] sm:$0xff] 0.0
          %300 = vst [vmem:[#allocation2 + $0xf8] sm:$0xff] 0.0
          %301 = vst [vmem:[#allocation2 + $0x100] sm:$0xff] 0.0
          %302 = vst [vmem:[#allocation2 + $0x108] sm:$0xff] 0.0
          %303 = vst [vmem:[#allocation2 + $0x110] sm:$0xff] 0.0
          %304 = vst [vmem:[#allocation2 + $0x118] sm:$0xff] 0.0
        $region48: #{_mlp_forward.1} parent=31 // pred_fallthru
          _
        %v305 = vld [vmem:[#allocation3] sm:$0xff]
        %v306 = vld [vmem:[#allocation3 + $0x8] sm:$0xff]
        %v307 = vld [vmem:[#allocation3 + $0x10] sm:$0xff]
        %v308 = vld [vmem:[#allocation3 + $0x18] sm:$0xff]
        %v309 = vld [vmem:[#allocation3 + $0x20] sm:$0xff]
        %v310 = vld [vmem:[#allocation3 + $0x28] sm:$0xff]
        %v311 = vld [vmem:[#allocation3 + $0x30] sm:$0xff]
        %v312 = vld [vmem:[#allocation3 + $0x38] sm:$0xff]
        %v313 = vld [vmem:[#allocation3 + $0x40] sm:$0xff]
        %v314 = vld [vmem:[#allocation3 + $0x48] sm:$0xff]
        %v315 = vld [vmem:[#allocation3 + $0x50] sm:$0xff]
        %v316 = vld [vmem:[#allocation3 + $0x58] sm:$0xff]
        %v317 = vld [vmem:[#allocation3 + $0x60] sm:$0xff]
        %v318 = vld [vmem:[#allocation3 + $0x68] sm:$0xff]
        %v319 = vld [vmem:[#allocation3 + $0x70] sm:$0xff]
        %v320 = vld [vmem:[#allocation3 + $0x78] sm:$0xff]
        %v321 = vld [vmem:[#allocation3 + $0x80] sm:$0xff]
        %v322 = vld [vmem:[#allocation3 + $0x88] sm:$0xff]
        %v323 = vld [vmem:[#allocation3 + $0x90] sm:$0xff]
        %v324 = vld [vmem:[#allocation3 + $0x98] sm:$0xff]
        %v325 = vld [vmem:[#allocation3 + $0xa0] sm:$0xff]
        %v326 = vld [vmem:[#allocation3 + $0xa8] sm:$0xff]
        %v327 = vld [vmem:[#allocation3 + $0xb0] sm:$0xff]
        %v328 = vld [vmem:[#allocation3 + $0xb8] sm:$0xff]
        %v329 = vld [vmem:[#allocation3 + $0xc0] sm:$0xff]
        %v330 = vld [vmem:[#allocation3 + $0xc8] sm:$0xff]
        %v331 = vld [vmem:[#allocation3 + $0xd0] sm:$0xff]
        %v332 = vld [vmem:[#allocation3 + $0xd8] sm:$0xff]
        %v333 = vld [vmem:[#allocation3 + $0xe0] sm:$0xff]
        %v334 = vld [vmem:[#allocation3 + $0xe8] sm:$0xff]
        %v335 = vld [vmem:[#allocation3 + $0xf0] sm:$0xff]
        %v336 = vld [vmem:[#allocation3 + $0xf8] sm:$0xff]
        %v337 = vld [vmem:[#allocation3 + $0x100] sm:$0xff]
        %v338 = vld [vmem:[#allocation3 + $0x108] sm:$0xff]
        %v339 = vld [vmem:[#allocation3 + $0x110] sm:$0xff]
        %v340 = vld [vmem:[#allocation3 + $0x118] sm:$0xff]
        %v341 = vld [vmem:[%s228] sm:$0xff]
        %v342 = vld [vmem:[%s228 + $0x8] sm:$0xff]
        %v343 = vld [vmem:[%s228 + $0x10] sm:$0xff]
        %v344 = vld [vmem:[%s228 + $0x18] sm:$0xff]
        %v345 = vld [vmem:[%s228 + $0x20] sm:$0xff]
        %v346 = vld [vmem:[%s228 + $0x28] sm:$0xff]
        %v347 = vld [vmem:[%s228 + $0x30] sm:$0xff]
        %v348 = vld [vmem:[%s228 + $0x38] sm:$0xff]
        %v349 = vld [vmem:[%s228 + $0x40] sm:$0xff]
        %v350 = vld [vmem:[%s228 + $0x48] sm:$0xff]
        %v351 = vld [vmem:[%s228 + $0x50] sm:$0xff]
        %v352 = vld [vmem:[%s228 + $0x58] sm:$0xff]
        %v353 = vld [vmem:[%s228 + $0x60] sm:$0xff]
        %v354 = vld [vmem:[%s228 + $0x68] sm:$0xff]
        %v355 = vld [vmem:[%s228 + $0x70] sm:$0xff]
        %v356 = vld [vmem:[%s228 + $0x78] sm:$0xff]
        %v357 = vld [vmem:[%s228 + $0x80] sm:$0xff]
        %v358 = vld [vmem:[%s228 + $0x88] sm:$0xff]
        %v359 = vld [vmem:[%s228 + $0x90] sm:$0xff]
        %v360 = vld [vmem:[%s228 + $0x98] sm:$0xff]
        %v361 = vld [vmem:[%s228 + $0xa0] sm:$0xff]
        %v362 = vld [vmem:[%s228 + $0xa8] sm:$0xff]
        %v363 = vld [vmem:[%s228 + $0xb0] sm:$0xff]
        %v364 = vld [vmem:[%s228 + $0xb8] sm:$0xff]
        %v365 = vld [vmem:[%s228 + $0xc0] sm:$0xff]
        %v366 = vld [vmem:[%s228 + $0xc8] sm:$0xff]
        %v367 = vld [vmem:[%s228 + $0xd0] sm:$0xff]
        %v368 = vld [vmem:[%s228 + $0xd8] sm:$0xff]
        %v369 = vld [vmem:[%s228 + $0xe0] sm:$0xff]
        %v370 = vld [vmem:[%s228 + $0xe8] sm:$0xff]
        %v371 = vld [vmem:[%s228 + $0xf0] sm:$0xff]
        %v372 = vld [vmem:[%s228 + $0xf8] sm:$0xff]
        %v373 = vld [vmem:[%s228 + $0x100] sm:$0xff]
        %v374 = vld [vmem:[%s228 + $0x108] sm:$0xff]
        %v375 = vld [vmem:[%s228 + $0x110] sm:$0xff]
        %v376 = vld [vmem:[%s228 + $0x118] sm:$0xff]
        %v377 = vld [vmem:[%s228 + $0x120] sm:$0xff]
        %v378 = vld [vmem:[%s228 + $0x128] sm:$0xff]
        %v379 = vld [vmem:[%s228 + $0x130] sm:$0xff]
        %v380 = vld [vmem:[%s228 + $0x138] sm:$0xff]
        %v381 = vld [vmem:[%s228 + $0x140] sm:$0xff]
        %v382 = vld [vmem:[%s228 + $0x148] sm:$0xff]
        %v383 = vld [vmem:[%s228 + $0x150] sm:$0xff]
        %v384 = vld [vmem:[%s228 + $0x158] sm:$0xff]
        %v385 = vld [vmem:[%s228 + $0x160] sm:$0xff]
        %v386 = vld [vmem:[%s228 + $0x168] sm:$0xff]
        %v387 = vld [vmem:[%s228 + $0x170] sm:$0xff]
        %v388 = vld [vmem:[%s228 + $0x178] sm:$0xff]
        %v389 = vld [vmem:[%s228 + $0x180] sm:$0xff]
        %v390 = vld [vmem:[%s228 + $0x188] sm:$0xff]
        %v391 = vld [vmem:[%s228 + $0x190] sm:$0xff]
        %v392 = vld [vmem:[%s228 + $0x198] sm:$0xff]
        %v393 = vld [vmem:[%s228 + $0x1a0] sm:$0xff]
        %v394 = vld [vmem:[%s228 + $0x1a8] sm:$0xff]
        %v395 = vld [vmem:[%s228 + $0x1b0] sm:$0xff]
        %v396 = vld [vmem:[%s228 + $0x1b8] sm:$0xff]
        %v397 = vld [vmem:[%s228 + $0x1c0] sm:$0xff]
        %v398 = vld [vmem:[%s228 + $0x1c8] sm:$0xff]
        %v399 = vld [vmem:[%s228 + $0x1d0] sm:$0xff]
        %v400 = vld [vmem:[%s228 + $0x1d8] sm:$0xff]
        %v401 = vld [vmem:[%s228 + $0x1e0] sm:$0xff]
        %v402 = vld [vmem:[%s228 + $0x1e8] sm:$0xff]
        %v403 = vld [vmem:[%s228 + $0x1f0] sm:$0xff]
        %v404 = vld [vmem:[%s228 + $0x1f8] sm:$0xff]
        %v405 = vld [vmem:[%s228 + $0x200] sm:$0xff]
        %v406 = vld [vmem:[%s228 + $0x208] sm:$0xff]
        %v407 = vld [vmem:[%s228 + $0x210] sm:$0xff]
        %v408 = vld [vmem:[%s228 + $0x218] sm:$0xff]
        %v409 = vld [vmem:[%s228 + $0x220] sm:$0xff]
        %v410 = vld [vmem:[%s228 + $0x228] sm:$0xff]
        %v411 = vld [vmem:[%s228 + $0x230] sm:$0xff]
        %v412 = vld [vmem:[%s228 + $0x238] sm:$0xff]
        %v413 = vld [vmem:[%s228 + $0x240] sm:$0xff]
        %v414 = vld [vmem:[%s228 + $0x248] sm:$0xff]
        %v415 = vld [vmem:[%s228 + $0x250] sm:$0xff]
        %v416 = vld [vmem:[%s228 + $0x258] sm:$0xff]
        %v417 = vld [vmem:[%s228 + $0x260] sm:$0xff]
        %v418 = vld [vmem:[%s228 + $0x268] sm:$0xff]
        %v419 = vld [vmem:[%s228 + $0x270] sm:$0xff]
        %v420 = vld [vmem:[%s228 + $0x278] sm:$0xff]
        %v421 = vld [vmem:[%s228 + $0x280] sm:$0xff]
        %v422 = vld [vmem:[%s228 + $0x288] sm:$0xff]
        %v423 = vld [vmem:[%s228 + $0x290] sm:$0xff]
        %v424 = vld [vmem:[%s228 + $0x298] sm:$0xff]
        %v425 = vld [vmem:[%s228 + $0x2a0] sm:$0xff]
        %v426 = vld [vmem:[%s228 + $0x2a8] sm:$0xff]
        %v427 = vld [vmem:[%s228 + $0x2b0] sm:$0xff]
        %v428 = vld [vmem:[%s228 + $0x2b8] sm:$0xff]
        %v429 = vld [vmem:[%s228 + $0x2c0] sm:$0xff]
        %v430 = vld [vmem:[%s228 + $0x2c8] sm:$0xff]
        %v431 = vld [vmem:[%s228 + $0x2d0] sm:$0xff]
        %v432 = vld [vmem:[%s228 + $0x2d8] sm:$0xff]
        %v433 = vld [vmem:[%s228 + $0x2e0] sm:$0xff]
        %v434 = vld [vmem:[%s228 + $0x2e8] sm:$0xff]
        %v435 = vld [vmem:[%s228 + $0x2f0] sm:$0xff]
        %v436 = vld [vmem:[%s228 + $0x2f8] sm:$0xff]
        %v437 = vld [vmem:[%s228 + $0x300] sm:$0xff]
        %v438 = vld [vmem:[%s228 + $0x308] sm:$0xff]
        %v439 = vld [vmem:[%s228 + $0x310] sm:$0xff]
        %v440 = vld [vmem:[%s228 + $0x318] sm:$0xff]
        %v441 = vld [vmem:[%s228 + $0x320] sm:$0xff]
        %v442 = vld [vmem:[%s228 + $0x328] sm:$0xff]
        %v443 = vld [vmem:[%s228 + $0x330] sm:$0xff]
        %v444 = vld [vmem:[%s228 + $0x338] sm:$0xff]
        %v445 = vld [vmem:[%s228 + $0x340] sm:$0xff]
        %v446 = vld [vmem:[%s228 + $0x348] sm:$0xff]
        %v447 = vld [vmem:[%s228 + $0x350] sm:$0xff]
        %v448 = vld [vmem:[%s228 + $0x358] sm:$0xff]
        %v449 = vld [vmem:[%s228 + $0x360] sm:$0xff]
        %v450 = vld [vmem:[%s228 + $0x368] sm:$0xff]
        %v451 = vld [vmem:[%s228 + $0x370] sm:$0xff]
        %v452 = vld [vmem:[%s228 + $0x378] sm:$0xff]
        %v453 = vld [vmem:[%s228 + $0x380] sm:$0xff]
        %v454 = vld [vmem:[%s228 + $0x388] sm:$0xff]
        %v455 = vld [vmem:[%s228 + $0x390] sm:$0xff]
        %v456 = vld [vmem:[%s228 + $0x398] sm:$0xff]
        %v457 = vld [vmem:[%s228 + $0x3a0] sm:$0xff]
        %v458 = vld [vmem:[%s228 + $0x3a8] sm:$0xff]
        %v459 = vld [vmem:[%s228 + $0x3b0] sm:$0xff]
        %v460 = vld [vmem:[%s228 + $0x3b8] sm:$0xff]
        %v461 = vld [vmem:[%s228 + $0x3c0] sm:$0xff]
        %v462 = vld [vmem:[%s228 + $0x3c8] sm:$0xff]
        %v463 = vld [vmem:[%s228 + $0x3d0] sm:$0xff]
        %v464 = vld [vmem:[%s228 + $0x3d8] sm:$0xff]
        %v465 = vld [vmem:[%s228 + $0x3e0] sm:$0xff]
        %v466 = vld [vmem:[%s228 + $0x3e8] sm:$0xff]
        %v467 = vld [vmem:[%s228 + $0x3f0] sm:$0xff]
        %v468 = vld [vmem:[%s228 + $0x3f8] sm:$0xff]
        %v469 = vld [vmem:[%s228 + $0x400] sm:$0xff]
        %v470 = vld [vmem:[%s228 + $0x408] sm:$0xff]
        %v471 = vld [vmem:[%s228 + $0x410] sm:$0xff]
        %v472 = vld [vmem:[%s228 + $0x418] sm:$0xff]
        %v473 = vld [vmem:[%s228 + $0x420] sm:$0xff]
        %v474 = vld [vmem:[%s228 + $0x428] sm:$0xff]
        %v475 = vld [vmem:[%s228 + $0x430] sm:$0xff]
        %v476 = vld [vmem:[%s228 + $0x438] sm:$0xff]
        %v477 = vld [vmem:[%s228 + $0x440] sm:$0xff]
        %v478 = vld [vmem:[%s228 + $0x448] sm:$0xff]
        %v479 = vld [vmem:[%s228 + $0x450] sm:$0xff]
        %v480 = vld [vmem:[%s228 + $0x458] sm:$0xff]
        %v481 = vld [vmem:[%s228 + $0x460] sm:$0xff]
        %v482 = vld [vmem:[%s228 + $0x468] sm:$0xff]
        %v483 = vld [vmem:[%s228 + $0x470] sm:$0xff]
        %v484 = vld [vmem:[%s228 + $0x478] sm:$0xff]
        %v485 = vld [vmem:[%s228 + $0x480] sm:$0xff]
        %v486 = vld [vmem:[%s228 + $0x488] sm:$0xff]
        %v487 = vld [vmem:[%s228 + $0x490] sm:$0xff]
        %v488 = vld [vmem:[%s228 + $0x498] sm:$0xff]
        %v489 = vld [vmem:[%s228 + $0x4a0] sm:$0xff]
        %v490 = vld [vmem:[%s228 + $0x4a8] sm:$0xff]
        %v491 = vld [vmem:[%s228 + $0x4b0] sm:$0xff]
        %v492 = vld [vmem:[%s228 + $0x4b8] sm:$0xff]
        %v493 = vld [vmem:[%s228 + $0x4c0] sm:$0xff]
        %v494 = vld [vmem:[%s228 + $0x4c8] sm:$0xff]
        %v495 = vld [vmem:[%s228 + $0x4d0] sm:$0xff]
        %v496 = vld [vmem:[%s228 + $0x4d8] sm:$0xff]
        %v497 = vld [vmem:[%s228 + $0x4e0] sm:$0xff]
        %v498 = vld [vmem:[%s228 + $0x4e8] sm:$0xff]
        %v499 = vld [vmem:[%s228 + $0x4f0] sm:$0xff]
        %v500 = vld [vmem:[%s228 + $0x4f8] sm:$0xff]
        %v501 = vld [vmem:[%s228 + $0x500] sm:$0xff]
        %v502 = vld [vmem:[%s228 + $0x508] sm:$0xff]
        %v503 = vld [vmem:[%s228 + $0x510] sm:$0xff]
        %v504 = vld [vmem:[%s228 + $0x518] sm:$0xff]
        %v505 = vld [vmem:[%s228 + $0x520] sm:$0xff]
        %v506 = vld [vmem:[%s228 + $0x528] sm:$0xff]
        %v507 = vld [vmem:[%s228 + $0x530] sm:$0xff]
        %v508 = vld [vmem:[%s228 + $0x538] sm:$0xff]
        %v509 = vld [vmem:[%s228 + $0x540] sm:$0xff]
        %v510 = vld [vmem:[%s228 + $0x548] sm:$0xff]
        %v511 = vld [vmem:[%s228 + $0x550] sm:$0xff]
        %v512 = vld [vmem:[%s228 + $0x558] sm:$0xff]
        %v513 = vld [vmem:[%s228 + $0x560] sm:$0xff]
        %v514 = vld [vmem:[%s228 + $0x568] sm:$0xff]
        %v515 = vld [vmem:[%s228 + $0x570] sm:$0xff]
        %v516 = vld [vmem:[%s228 + $0x578] sm:$0xff]
        %v517 = vld [vmem:[%s228 + $0x580] sm:$0xff]
        %v518 = vld [vmem:[%s228 + $0x588] sm:$0xff]
        %v519 = vld [vmem:[%s228 + $0x590] sm:$0xff]
        %v520 = vld [vmem:[%s228 + $0x598] sm:$0xff]
        %v521 = vld [vmem:[%s228 + $0x5a0] sm:$0xff]
        %v522 = vld [vmem:[%s228 + $0x5a8] sm:$0xff]
        %v523 = vld [vmem:[%s228 + $0x5b0] sm:$0xff]
        %v524 = vld [vmem:[%s228 + $0x5b8] sm:$0xff]
        %v525 = vld [vmem:[%s228 + $0x5c0] sm:$0xff]
        %v526 = vld [vmem:[%s228 + $0x5c8] sm:$0xff]
        %v527 = vld [vmem:[%s228 + $0x5d0] sm:$0xff]
        %v528 = vld [vmem:[%s228 + $0x5d8] sm:$0xff]
        %v529 = vld [vmem:[%s228 + $0x5e0] sm:$0xff]
        %v530 = vld [vmem:[%s228 + $0x5e8] sm:$0xff]
        %v531 = vld [vmem:[%s228 + $0x5f0] sm:$0xff]
        %v532 = vld [vmem:[%s228 + $0x5f8] sm:$0xff]
        %v533 = vld [vmem:[%s228 + $0x600] sm:$0xff]
        %v534 = vld [vmem:[%s228 + $0x608] sm:$0xff]
        %v535 = vld [vmem:[%s228 + $0x610] sm:$0xff]
        %v536 = vld [vmem:[%s228 + $0x618] sm:$0xff]
        %v537 = vld [vmem:[%s228 + $0x620] sm:$0xff]
        %v538 = vld [vmem:[%s228 + $0x628] sm:$0xff]
        %v539 = vld [vmem:[%s228 + $0x630] sm:$0xff]
        %v540 = vld [vmem:[%s228 + $0x638] sm:$0xff]
        %v541 = vld [vmem:[%s228 + $0x640] sm:$0xff]
        %v542 = vld [vmem:[%s228 + $0x648] sm:$0xff]
        %v543 = vld [vmem:[%s228 + $0x650] sm:$0xff]
        %v544 = vld [vmem:[%s228 + $0x658] sm:$0xff]
        %v545 = vld [vmem:[%s228 + $0x660] sm:$0xff]
        %v546 = vld [vmem:[%s228 + $0x668] sm:$0xff]
        %v547 = vld [vmem:[%s228 + $0x670] sm:$0xff]
        %v548 = vld [vmem:[%s228 + $0x678] sm:$0xff]
        %v549 = vld [vmem:[%s228 + $0x680] sm:$0xff]
        %v550 = vld [vmem:[%s228 + $0x688] sm:$0xff]
        %v551 = vld [vmem:[%s228 + $0x690] sm:$0xff]
        %v552 = vld [vmem:[%s228 + $0x698] sm:$0xff]
        %v553 = vld [vmem:[%s228 + $0x6a0] sm:$0xff]
        %v554 = vld [vmem:[%s228 + $0x6a8] sm:$0xff]
        %v555 = vld [vmem:[%s228 + $0x6b0] sm:$0xff]
        %v556 = vld [vmem:[%s228 + $0x6b8] sm:$0xff]
        %v557 = vld [vmem:[%s228 + $0x6c0] sm:$0xff]
        %v558 = vld [vmem:[%s228 + $0x6c8] sm:$0xff]
        %v559 = vld [vmem:[%s228 + $0x6d0] sm:$0xff]
        %v560 = vld [vmem:[%s228 + $0x6d8] sm:$0xff]
        %v561 = vld [vmem:[%s228 + $0x6e0] sm:$0xff]
        %v562 = vld [vmem:[%s228 + $0x6e8] sm:$0xff]
        %v563 = vld [vmem:[%s228 + $0x6f0] sm:$0xff]
        %v564 = vld [vmem:[%s228 + $0x6f8] sm:$0xff]
        %v565 = vld [vmem:[%s228 + $0x700] sm:$0xff]
        %v566 = vld [vmem:[%s228 + $0x708] sm:$0xff]
        %v567 = vld [vmem:[%s228 + $0x710] sm:$0xff]
        %v568 = vld [vmem:[%s228 + $0x718] sm:$0xff]
        %v569 = vld [vmem:[%s228 + $0x720] sm:$0xff]
        %v570 = vld [vmem:[%s228 + $0x728] sm:$0xff]
        %v571 = vld [vmem:[%s228 + $0x730] sm:$0xff]
        %v572 = vld [vmem:[%s228 + $0x738] sm:$0xff]
        %v573 = vld [vmem:[%s228 + $0x740] sm:$0xff]
        %v574 = vld [vmem:[%s228 + $0x748] sm:$0xff]
        %v575 = vld [vmem:[%s228 + $0x750] sm:$0xff]
        %v576 = vld [vmem:[%s228 + $0x758] sm:$0xff]
        %v577 = vld [vmem:[%s228 + $0x760] sm:$0xff]
        %v578 = vld [vmem:[%s228 + $0x768] sm:$0xff]
        %v579 = vld [vmem:[%s228 + $0x770] sm:$0xff]
        %v580 = vld [vmem:[%s228 + $0x778] sm:$0xff]
        %v581 = vld [vmem:[%s228 + $0x780] sm:$0xff]
        %v582 = vld [vmem:[%s228 + $0x788] sm:$0xff]
        %v583 = vld [vmem:[%s228 + $0x790] sm:$0xff]
        %v584 = vld [vmem:[%s228 + $0x798] sm:$0xff]
        %v585 = vld [vmem:[%s228 + $0x7a0] sm:$0xff]
        %v586 = vld [vmem:[%s228 + $0x7a8] sm:$0xff]
        %v587 = vld [vmem:[%s228 + $0x7b0] sm:$0xff]
        %v588 = vld [vmem:[%s228 + $0x7b8] sm:$0xff]
        %v589 = vld [vmem:[%s228 + $0x7c0] sm:$0xff]
        %v590 = vld [vmem:[%s228 + $0x7c8] sm:$0xff]
        %v591 = vld [vmem:[%s228 + $0x7d0] sm:$0xff]
        %v592 = vld [vmem:[%s228 + $0x7d8] sm:$0xff]
        %v593 = vld [vmem:[%s228 + $0x7e0] sm:$0xff]
        %v594 = vld [vmem:[%s228 + $0x7e8] sm:$0xff]
        %v595 = vld [vmem:[%s228 + $0x7f0] sm:$0xff]
        %v596 = vld [vmem:[%s228 + $0x7f8] sm:$0xff]
        %597 = vmatpush.msra.mxu0 %v461
        %598 = vmatpush.msra.mxu0 %v453
        %599 = vmatpush.msra.mxu0 %v445
        %600 = vmatpush.msra.mxu0 %v437
        %601 = vmatpush.msra.mxu0 %v429
        %602 = vmatpush.msra.mxu0 %v421
        %603 = vmatpush.msra.mxu0 %v413
        %604 = vmatpush.msra.mxu0 %v405
        %605 = vmatpush.msra.mxu0 %v397
        %606 = vmatpush.msra.mxu0 %v389
        %607 = vmatpush.msra.mxu0 %v381
        %608 = vmatpush.msra.mxu0 %v373
        %609 = vmatpush.msra.mxu0 %v365
        %610 = vmatpush.msra.mxu0 %v357
        %611 = vmatpush.msra.mxu0 %v349
        %612 = vmatpush.msra.mxu0 %v341
        %613 = vmatmul.f32.gmra.mxu0 %v305
        %v614 = vpop.f32.mrf.mxu0
        %v615 = vadd.f32 0.0, %v614
        %616 = vmatmul.f32.gmra.mxu0 %v307
        %v617 = vpop.f32.mrf.mxu0
        %v618 = vadd.f32 0.0, %v617
        %619 = vmatmul.f32.gmra.mxu0 %v309
        %v620 = vpop.f32.mrf.mxu0
        %v621 = vadd.f32 0.0, %v620
        %622 = vmatmul.f32.gmra.mxu0 %v311
        %v623 = vpop.f32.mrf.mxu0
        %v624 = vadd.f32 0.0, %v623
        %625 = vmatmul.f32.gmra.mxu0 %v313
        %v626 = vpop.f32.mrf.mxu0
        %v627 = vadd.f32 0.0, %v626
        %628 = vmatmul.f32.gmra.mxu0 %v315
        %v629 = vpop.f32.mrf.mxu0
        %v630 = vadd.f32 0.0, %v629
        %631 = vmatmul.f32.gmra.mxu0 %v317
        %v632 = vpop.f32.mrf.mxu0
        %v633 = vadd.f32 0.0, %v632
        %634 = vmatmul.f32.gmra.mxu0 %v319
        %v635 = vpop.f32.mrf.mxu0
        %v636 = vadd.f32 0.0, %v635
        %637 = vmatmul.f32.gmra.mxu0 %v321
        %v638 = vpop.f32.mrf.mxu0
        %v639 = vadd.f32 0.0, %v638
        %640 = vmatmul.f32.gmra.mxu0 %v323
        %v641 = vpop.f32.mrf.mxu0
        %v642 = vadd.f32 0.0, %v641
        %643 = vmatmul.f32.gmra.mxu0 %v325
        %v644 = vpop.f32.mrf.mxu0
        %v645 = vadd.f32 0.0, %v644
        %646 = vmatmul.f32.gmra.mxu0 %v327
        %v647 = vpop.f32.mrf.mxu0
        %v648 = vadd.f32 0.0, %v647
        %649 = vmatmul.f32.gmra.mxu0 %v329
        %v650 = vpop.f32.mrf.mxu0
        %v651 = vadd.f32 0.0, %v650
        %652 = vmatmul.f32.gmra.mxu0 %v331
        %v653 = vpop.f32.mrf.mxu0
        %v654 = vadd.f32 0.0, %v653
        %655 = vmatmul.f32.gmra.mxu0 %v333
        %v656 = vpop.f32.mrf.mxu0
        %v657 = vadd.f32 0.0, %v656
        %658 = vmatmul.f32.gmra.mxu0 %v335
        %v659 = vpop.f32.mrf.mxu0
        %v660 = vadd.f32 0.0, %v659
        %661 = vmatmul.f32.gmra.mxu0 %v337
        %v662 = vpop.f32.mrf.mxu0
        %v663 = vadd.f32 0.0, %v662
        %664 = vmatmul.f32.gmra.mxu0 %v339
        %v665 = vpop.f32.mrf.mxu0
        %v666 = vadd.f32 0.0, %v665
        %667 = vdwg.mxu0
        %668 = vmatpush.msra.mxu0 %v589
        %669 = vmatpush.msra.mxu0 %v581
        %670 = vmatpush.msra.mxu0 %v573
        %671 = vmatpush.msra.mxu0 %v565
        %672 = vmatpush.msra.mxu0 %v557
        %673 = vmatpush.msra.mxu0 %v549
        %674 = vmatpush.msra.mxu0 %v541
        %675 = vmatpush.msra.mxu0 %v533
        %676 = vmatpush.msra.mxu0 %v525
        %677 = vmatpush.msra.mxu0 %v517
        %678 = vmatpush.msra.mxu0 %v509
        %679 = vmatpush.msra.mxu0 %v501
        %680 = vmatpush.msra.mxu0 %v493
        %681 = vmatpush.msra.mxu0 %v485
        %682 = vmatpush.msra.mxu0 %v477
        %683 = vmatpush.msra.mxu0 %v469
        %684 = vmatmul.f32.gmra.mxu0 %v306
        %v685 = vpop.f32.mrf.mxu0
        %v686 = vadd.f32 %v615, %v685
        %687 = vmatmul.f32.gmra.mxu0 %v308
        %v688 = vpop.f32.mrf.mxu0
        %v689 = vadd.f32 %v618, %v688
        %690 = vmatmul.f32.gmra.mxu0 %v310
        %v691 = vpop.f32.mrf.mxu0
        %v692 = vadd.f32 %v621, %v691
        %693 = vmatmul.f32.gmra.mxu0 %v312
        %v694 = vpop.f32.mrf.mxu0
        %v695 = vadd.f32 %v624, %v694
        %696 = vmatmul.f32.gmra.mxu0 %v314
        %v697 = vpop.f32.mrf.mxu0
        %v698 = vadd.f32 %v627, %v697
        %699 = vmatmul.f32.gmra.mxu0 %v316
        %v700 = vpop.f32.mrf.mxu0
        %v701 = vadd.f32 %v630, %v700
        %702 = vmatmul.f32.gmra.mxu0 %v318
        %v703 = vpop.f32.mrf.mxu0
        %v704 = vadd.f32 %v633, %v703
        %705 = vmatmul.f32.gmra.mxu0 %v320
        %v706 = vpop.f32.mrf.mxu0
        %v707 = vadd.f32 %v636, %v706
        %708 = vmatmul.f32.gmra.mxu0 %v322
        %v709 = vpop.f32.mrf.mxu0
        %v710 = vadd.f32 %v639, %v709
        %711 = vmatmul.f32.gmra.mxu0 %v324
        %v712 = vpop.f32.mrf.mxu0
        %v713 = vadd.f32 %v642, %v712
        %714 = vmatmul.f32.gmra.mxu0 %v326
        %v715 = vpop.f32.mrf.mxu0
        %v716 = vadd.f32 %v645, %v715
        %717 = vmatmul.f32.gmra.mxu0 %v328
        %v718 = vpop.f32.mrf.mxu0
        %v719 = vadd.f32 %v648, %v718
        %720 = vmatmul.f32.gmra.mxu0 %v330
        %v721 = vpop.f32.mrf.mxu0
        %v722 = vadd.f32 %v651, %v721
        %723 = vmatmul.f32.gmra.mxu0 %v332
        %v724 = vpop.f32.mrf.mxu0
        %v725 = vadd.f32 %v654, %v724
        %726 = vmatmul.f32.gmra.mxu0 %v334
        %v727 = vpop.f32.mrf.mxu0
        %v728 = vadd.f32 %v657, %v727
        %729 = vmatmul.f32.gmra.mxu0 %v336
        %v730 = vpop.f32.mrf.mxu0
        %v731 = vadd.f32 %v660, %v730
        %732 = vmatmul.f32.gmra.mxu0 %v338
        %v733 = vpop.f32.mrf.mxu0
        %v734 = vadd.f32 %v663, %v733
        %735 = vmatmul.f32.gmra.mxu0 %v340
        %v736 = vpop.f32.mrf.mxu0
        %v737 = vadd.f32 %v666, %v736
        %738 = vdwg.mxu0
        %739 = vmatpush.msra.mxu0 %v462
        %740 = vmatpush.msra.mxu0 %v454
        %741 = vmatpush.msra.mxu0 %v446
        %742 = vmatpush.msra.mxu0 %v438
        %743 = vmatpush.msra.mxu0 %v430
        %744 = vmatpush.msra.mxu0 %v422
        %745 = vmatpush.msra.mxu0 %v414
        %746 = vmatpush.msra.mxu0 %v406
        %747 = vmatpush.msra.mxu0 %v398
        %748 = vmatpush.msra.mxu0 %v390
        %749 = vmatpush.msra.mxu0 %v382
        %750 = vmatpush.msra.mxu0 %v374
        %751 = vmatpush.msra.mxu0 %v366
        %752 = vmatpush.msra.mxu0 %v358
        %753 = vmatpush.msra.mxu0 %v350
        %754 = vmatpush.msra.mxu0 %v342
        %755 = vmatmul.f32.gmra.mxu0 %v305
        %v756 = vpop.f32.mrf.mxu0
        %v757 = vadd.f32 0.0, %v756
        %758 = vmatmul.f32.gmra.mxu0 %v307
        %v759 = vpop.f32.mrf.mxu0
        %v760 = vadd.f32 0.0, %v759
        %761 = vmatmul.f32.gmra.mxu0 %v309
        %v762 = vpop.f32.mrf.mxu0
        %v763 = vadd.f32 0.0, %v762
        %764 = vmatmul.f32.gmra.mxu0 %v311
        %v765 = vpop.f32.mrf.mxu0
        %v766 = vadd.f32 0.0, %v765
        %767 = vmatmul.f32.gmra.mxu0 %v313
        %v768 = vpop.f32.mrf.mxu0
        %v769 = vadd.f32 0.0, %v768
        %770 = vmatmul.f32.gmra.mxu0 %v315
        %v771 = vpop.f32.mrf.mxu0
        %v772 = vadd.f32 0.0, %v771
        %773 = vmatmul.f32.gmra.mxu0 %v317
        %v774 = vpop.f32.mrf.mxu0
        %v775 = vadd.f32 0.0, %v774
        %776 = vmatmul.f32.gmra.mxu0 %v319
        %v777 = vpop.f32.mrf.mxu0
        %v778 = vadd.f32 0.0, %v777
        %779 = vmatmul.f32.gmra.mxu0 %v321
        %v780 = vpop.f32.mrf.mxu0
        %v781 = vadd.f32 0.0, %v780
        %782 = vmatmul.f32.gmra.mxu0 %v323
        %v783 = vpop.f32.mrf.mxu0
        %v784 = vadd.f32 0.0, %v783
        %785 = vmatmul.f32.gmra.mxu0 %v325
        %v786 = vpop.f32.mrf.mxu0
        %v787 = vadd.f32 0.0, %v786
        %788 = vmatmul.f32.gmra.mxu0 %v327
        %v789 = vpop.f32.mrf.mxu0
        %v790 = vadd.f32 0.0, %v789
        %791 = vmatmul.f32.gmra.mxu0 %v329
        %v792 = vpop.f32.mrf.mxu0
        %v793 = vadd.f32 0.0, %v792
        %794 = vmatmul.f32.gmra.mxu0 %v331
        %v795 = vpop.f32.mrf.mxu0
        %v796 = vadd.f32 0.0, %v795
        %797 = vmatmul.f32.gmra.mxu0 %v333
        %v798 = vpop.f32.mrf.mxu0
        %v799 = vadd.f32 0.0, %v798
        %800 = vmatmul.f32.gmra.mxu0 %v335
        %v801 = vpop.f32.mrf.mxu0
        %v802 = vadd.f32 0.0, %v801
        %803 = vmatmul.f32.gmra.mxu0 %v337
        %v804 = vpop.f32.mrf.mxu0
        %v805 = vadd.f32 0.0, %v804
        %806 = vmatmul.f32.gmra.mxu0 %v339
        %v807 = vpop.f32.mrf.mxu0
        %v808 = vadd.f32 0.0, %v807
        %809 = vdwg.mxu0
        %810 = vmatpush.msra.mxu0 %v590
        %811 = vmatpush.msra.mxu0 %v582
        %812 = vmatpush.msra.mxu0 %v574
        %813 = vmatpush.msra.mxu0 %v566
        %814 = vmatpush.msra.mxu0 %v558
        %815 = vmatpush.msra.mxu0 %v550
        %816 = vmatpush.msra.mxu0 %v542
        %817 = vmatpush.msra.mxu0 %v534
        %818 = vmatpush.msra.mxu0 %v526
        %819 = vmatpush.msra.mxu0 %v518
        %820 = vmatpush.msra.mxu0 %v510
        %821 = vmatpush.msra.mxu0 %v502
        %822 = vmatpush.msra.mxu0 %v494
        %823 = vmatpush.msra.mxu0 %v486
        %824 = vmatpush.msra.mxu0 %v478
        %825 = vmatpush.msra.mxu0 %v470
        %826 = vmatmul.f32.gmra.mxu0 %v306
        %v827 = vpop.f32.mrf.mxu0
        %v828 = vadd.f32 %v757, %v827
        %829 = vmatmul.f32.gmra.mxu0 %v308
        %v830 = vpop.f32.mrf.mxu0
        %v831 = vadd.f32 %v760, %v830
        %832 = vmatmul.f32.gmra.mxu0 %v310
        %v833 = vpop.f32.mrf.mxu0
        %v834 = vadd.f32 %v763, %v833
        %835 = vmatmul.f32.gmra.mxu0 %v312
        %v836 = vpop.f32.mrf.mxu0
        %v837 = vadd.f32 %v766, %v836
        %838 = vmatmul.f32.gmra.mxu0 %v314
        %v839 = vpop.f32.mrf.mxu0
        %v840 = vadd.f32 %v769, %v839
        %841 = vmatmul.f32.gmra.mxu0 %v316
        %v842 = vpop.f32.mrf.mxu0
        %v843 = vadd.f32 %v772, %v842
        %844 = vmatmul.f32.gmra.mxu0 %v318
        %v845 = vpop.f32.mrf.mxu0
        %v846 = vadd.f32 %v775, %v845
        %847 = vmatmul.f32.gmra.mxu0 %v320
        %v848 = vpop.f32.mrf.mxu0
        %v849 = vadd.f32 %v778, %v848
        %850 = vmatmul.f32.gmra.mxu0 %v322
        %v851 = vpop.f32.mrf.mxu0
        %v852 = vadd.f32 %v781, %v851
        %853 = vmatmul.f32.gmra.mxu0 %v324
        %v854 = vpop.f32.mrf.mxu0
        %v855 = vadd.f32 %v784, %v854
        %856 = vmatmul.f32.gmra.mxu0 %v326
        %v857 = vpop.f32.mrf.mxu0
        %v858 = vadd.f32 %v787, %v857
        %859 = vmatmul.f32.gmra.mxu0 %v328
        %v860 = vpop.f32.mrf.mxu0
        %v861 = vadd.f32 %v790, %v860
        %862 = vmatmul.f32.gmra.mxu0 %v330
        %v863 = vpop.f32.mrf.mxu0
        %v864 = vadd.f32 %v793, %v863
        %865 = vmatmul.f32.gmra.mxu0 %v332
        %v866 = vpop.f32.mrf.mxu0
        %v867 = vadd.f32 %v796, %v866
        %868 = vmatmul.f32.gmra.mxu0 %v334
        %v869 = vpop.f32.mrf.mxu0
        %v870 = vadd.f32 %v799, %v869
        %871 = vmatmul.f32.gmra.mxu0 %v336
        %v872 = vpop.f32.mrf.mxu0
        %v873 = vadd.f32 %v802, %v872
        %874 = vmatmul.f32.gmra.mxu0 %v338
        %v875 = vpop.f32.mrf.mxu0
        %v876 = vadd.f32 %v805, %v875
        %877 = vmatmul.f32.gmra.mxu0 %v340
        %v878 = vpop.f32.mrf.mxu0
        %v879 = vadd.f32 %v808, %v878
        %880 = vdwg.mxu0
        %881 = vmatpush.msra.mxu0 %v463
        %882 = vmatpush.msra.mxu0 %v455
        %883 = vmatpush.msra.mxu0 %v447
        %884 = vmatpush.msra.mxu0 %v439
        %885 = vmatpush.msra.mxu0 %v431
        %886 = vmatpush.msra.mxu0 %v423
        %887 = vmatpush.msra.mxu0 %v415
        %888 = vmatpush.msra.mxu0 %v407
        %889 = vmatpush.msra.mxu0 %v399
        %890 = vmatpush.msra.mxu0 %v391
        %891 = vmatpush.msra.mxu0 %v383
        %892 = vmatpush.msra.mxu0 %v375
        %893 = vmatpush.msra.mxu0 %v367
        %894 = vmatpush.msra.mxu0 %v359
        %895 = vmatpush.msra.mxu0 %v351
        %896 = vmatpush.msra.mxu0 %v343
        %897 = vmatmul.f32.gmra.mxu0 %v305
        %v898 = vpop.f32.mrf.mxu0
        %v899 = vadd.f32 0.0, %v898
        %900 = vmatmul.f32.gmra.mxu0 %v307
        %v901 = vpop.f32.mrf.mxu0
        %v902 = vadd.f32 0.0, %v901
        %903 = vmatmul.f32.gmra.mxu0 %v309
        %v904 = vpop.f32.mrf.mxu0
        %v905 = vadd.f32 0.0, %v904
        %906 = vmatmul.f32.gmra.mxu0 %v311
        %v907 = vpop.f32.mrf.mxu0
        %v908 = vadd.f32 0.0, %v907
        %909 = vmatmul.f32.gmra.mxu0 %v313
        %v910 = vpop.f32.mrf.mxu0
        %v911 = vadd.f32 0.0, %v910
        %912 = vmatmul.f32.gmra.mxu0 %v315
        %v913 = vpop.f32.mrf.mxu0
        %v914 = vadd.f32 0.0, %v913
        %915 = vmatmul.f32.gmra.mxu0 %v317
        %v916 = vpop.f32.mrf.mxu0
        %v917 = vadd.f32 0.0, %v916
        %918 = vmatmul.f32.gmra.mxu0 %v319
        %v919 = vpop.f32.mrf.mxu0
        %v920 = vadd.f32 0.0, %v919
        %921 = vmatmul.f32.gmra.mxu0 %v321
        %v922 = vpop.f32.mrf.mxu0
        %v923 = vadd.f32 0.0, %v922
        %924 = vmatmul.f32.gmra.mxu0 %v323
        %v925 = vpop.f32.mrf.mxu0
        %v926 = vadd.f32 0.0, %v925
        %927 = vmatmul.f32.gmra.mxu0 %v325
        %v928 = vpop.f32.mrf.mxu0
        %v929 = vadd.f32 0.0, %v928
        %930 = vmatmul.f32.gmra.mxu0 %v327
        %v931 = vpop.f32.mrf.mxu0
        %v932 = vadd.f32 0.0, %v931
        %933 = vmatmul.f32.gmra.mxu0 %v329
        %v934 = vpop.f32.mrf.mxu0
        %v935 = vadd.f32 0.0, %v934
        %936 = vmatmul.f32.gmra.mxu0 %v331
        %v937 = vpop.f32.mrf.mxu0
        %v938 = vadd.f32 0.0, %v937
        %939 = vmatmul.f32.gmra.mxu0 %v333
        %v940 = vpop.f32.mrf.mxu0
        %v941 = vadd.f32 0.0, %v940
        %942 = vmatmul.f32.gmra.mxu0 %v335
        %v943 = vpop.f32.mrf.mxu0
        %v944 = vadd.f32 0.0, %v943
        %945 = vmatmul.f32.gmra.mxu0 %v337
        %v946 = vpop.f32.mrf.mxu0
        %v947 = vadd.f32 0.0, %v946
        %948 = vmatmul.f32.gmra.mxu0 %v339
        %v949 = vpop.f32.mrf.mxu0
        %v950 = vadd.f32 0.0, %v949
        %951 = vdwg.mxu0
        %952 = vmatpush.msra.mxu0 %v591
        %953 = vmatpush.msra.mxu0 %v583
        %954 = vmatpush.msra.mxu0 %v575
        %955 = vmatpush.msra.mxu0 %v567
        %956 = vmatpush.msra.mxu0 %v559
        %957 = vmatpush.msra.mxu0 %v551
        %958 = vmatpush.msra.mxu0 %v543
        %959 = vmatpush.msra.mxu0 %v535
        %960 = vmatpush.msra.mxu0 %v527
        %961 = vmatpush.msra.mxu0 %v519
        %962 = vmatpush.msra.mxu0 %v511
        %963 = vmatpush.msra.mxu0 %v503
        %964 = vmatpush.msra.mxu0 %v495
        %965 = vmatpush.msra.mxu0 %v487
        %966 = vmatpush.msra.mxu0 %v479
        %967 = vmatpush.msra.mxu0 %v471
        %968 = vmatmul.f32.gmra.mxu0 %v306
        %v969 = vpop.f32.mrf.mxu0
        %v970 = vadd.f32 %v899, %v969
        %971 = vmatmul.f32.gmra.mxu0 %v308
        %v972 = vpop.f32.mrf.mxu0
        %v973 = vadd.f32 %v902, %v972
        %974 = vmatmul.f32.gmra.mxu0 %v310
        %v975 = vpop.f32.mrf.mxu0
        %v976 = vadd.f32 %v905, %v975
        %977 = vmatmul.f32.gmra.mxu0 %v312
        %v978 = vpop.f32.mrf.mxu0
        %v979 = vadd.f32 %v908, %v978
        %980 = vmatmul.f32.gmra.mxu0 %v314
        %v981 = vpop.f32.mrf.mxu0
        %v982 = vadd.f32 %v911, %v981
        %983 = vmatmul.f32.gmra.mxu0 %v316
        %v984 = vpop.f32.mrf.mxu0
        %v985 = vadd.f32 %v914, %v984
        %986 = vmatmul.f32.gmra.mxu0 %v318
        %v987 = vpop.f32.mrf.mxu0
        %v988 = vadd.f32 %v917, %v987
        %989 = vmatmul.f32.gmra.mxu0 %v320
        %v990 = vpop.f32.mrf.mxu0
        %v991 = vadd.f32 %v920, %v990
        %992 = vmatmul.f32.gmra.mxu0 %v322
        %v993 = vpop.f32.mrf.mxu0
        %v994 = vadd.f32 %v923, %v993
        %995 = vmatmul.f32.gmra.mxu0 %v324
        %v996 = vpop.f32.mrf.mxu0
        %v997 = vadd.f32 %v926, %v996
        %998 = vmatmul.f32.gmra.mxu0 %v326
        %v999 = vpop.f32.mrf.mxu0
        %v1000 = vadd.f32 %v929, %v999
        %1001 = vmatmul.f32.gmra.mxu0 %v328
        %v1002 = vpop.f32.mrf.mxu0
        %v1003 = vadd.f32 %v932, %v1002
        %1004 = vmatmul.f32.gmra.mxu0 %v330
        %v1005 = vpop.f32.mrf.mxu0
        %v1006 = vadd.f32 %v935, %v1005
        %1007 = vmatmul.f32.gmra.mxu0 %v332
        %v1008 = vpop.f32.mrf.mxu0
        %v1009 = vadd.f32 %v938, %v1008
        %1010 = vmatmul.f32.gmra.mxu0 %v334
        %v1011 = vpop.f32.mrf.mxu0
        %v1012 = vadd.f32 %v941, %v1011
        %1013 = vmatmul.f32.gmra.mxu0 %v336
        %v1014 = vpop.f32.mrf.mxu0
        %v1015 = vadd.f32 %v944, %v1014
        %1016 = vmatmul.f32.gmra.mxu0 %v338
        %v1017 = vpop.f32.mrf.mxu0
        %v1018 = vadd.f32 %v947, %v1017
        %1019 = vmatmul.f32.gmra.mxu0 %v340
        %v1020 = vpop.f32.mrf.mxu0
        %v1021 = vadd.f32 %v950, %v1020
        %1022 = vdwg.mxu0
        %1023 = vmatpush.msra.mxu0 %v464
        %1024 = vmatpush.msra.mxu0 %v456
        %1025 = vmatpush.msra.mxu0 %v448
        %1026 = vmatpush.msra.mxu0 %v440
        %1027 = vmatpush.msra.mxu0 %v432
        %1028 = vmatpush.msra.mxu0 %v424
        %1029 = vmatpush.msra.mxu0 %v416
        %1030 = vmatpush.msra.mxu0 %v408
        %1031 = vmatpush.msra.mxu0 %v400
        %1032 = vmatpush.msra.mxu0 %v392
        %1033 = vmatpush.msra.mxu0 %v384
        %1034 = vmatpush.msra.mxu0 %v376
        %1035 = vmatpush.msra.mxu0 %v368
        %1036 = vmatpush.msra.mxu0 %v360
        %1037 = vmatpush.msra.mxu0 %v352
        %1038 = vmatpush.msra.mxu0 %v344
        %1039 = vmatmul.f32.gmra.mxu0 %v305
        %v1040 = vpop.f32.mrf.mxu0
        %v1041 = vadd.f32 0.0, %v1040
        %1042 = vmatmul.f32.gmra.mxu0 %v307
        %v1043 = vpop.f32.mrf.mxu0
        %v1044 = vadd.f32 0.0, %v1043
        %1045 = vmatmul.f32.gmra.mxu0 %v309
        %v1046 = vpop.f32.mrf.mxu0
        %v1047 = vadd.f32 0.0, %v1046
        %1048 = vmatmul.f32.gmra.mxu0 %v311
        %v1049 = vpop.f32.mrf.mxu0
        %v1050 = vadd.f32 0.0, %v1049
        %1051 = vmatmul.f32.gmra.mxu0 %v313
        %v1052 = vpop.f32.mrf.mxu0
        %v1053 = vadd.f32 0.0, %v1052
        %1054 = vmatmul.f32.gmra.mxu0 %v315
        %v1055 = vpop.f32.mrf.mxu0
        %v1056 = vadd.f32 0.0, %v1055
        %1057 = vmatmul.f32.gmra.mxu0 %v317
        %v1058 = vpop.f32.mrf.mxu0
        %v1059 = vadd.f32 0.0, %v1058
        %1060 = vmatmul.f32.gmra.mxu0 %v319
        %v1061 = vpop.f32.mrf.mxu0
        %v1062 = vadd.f32 0.0, %v1061
        %1063 = vmatmul.f32.gmra.mxu0 %v321
        %v1064 = vpop.f32.mrf.mxu0
        %v1065 = vadd.f32 0.0, %v1064
        %1066 = vmatmul.f32.gmra.mxu0 %v323
        %v1067 = vpop.f32.mrf.mxu0
        %v1068 = vadd.f32 0.0, %v1067
        %1069 = vmatmul.f32.gmra.mxu0 %v325
        %v1070 = vpop.f32.mrf.mxu0
        %v1071 = vadd.f32 0.0, %v1070
        %1072 = vmatmul.f32.gmra.mxu0 %v327
        %v1073 = vpop.f32.mrf.mxu0
        %v1074 = vadd.f32 0.0, %v1073
        %1075 = vmatmul.f32.gmra.mxu0 %v329
        %v1076 = vpop.f32.mrf.mxu0
        %v1077 = vadd.f32 0.0, %v1076
        %1078 = vmatmul.f32.gmra.mxu0 %v331
        %v1079 = vpop.f32.mrf.mxu0
        %v1080 = vadd.f32 0.0, %v1079
        %1081 = vmatmul.f32.gmra.mxu0 %v333
        %v1082 = vpop.f32.mrf.mxu0
        %v1083 = vadd.f32 0.0, %v1082
        %1084 = vmatmul.f32.gmra.mxu0 %v335
        %v1085 = vpop.f32.mrf.mxu0
        %v1086 = vadd.f32 0.0, %v1085
        %1087 = vmatmul.f32.gmra.mxu0 %v337
        %v1088 = vpop.f32.mrf.mxu0
        %v1089 = vadd.f32 0.0, %v1088
        %1090 = vmatmul.f32.gmra.mxu0 %v339
        %v1091 = vpop.f32.mrf.mxu0
        %v1092 = vadd.f32 0.0, %v1091
        %1093 = vdwg.mxu0
        %1094 = vmatpush.msra.mxu0 %v592
        %1095 = vmatpush.msra.mxu0 %v584
        %1096 = vmatpush.msra.mxu0 %v576
        %1097 = vmatpush.msra.mxu0 %v568
        %1098 = vmatpush.msra.mxu0 %v560
        %1099 = vmatpush.msra.mxu0 %v552
        %1100 = vmatpush.msra.mxu0 %v544
        %1101 = vmatpush.msra.mxu0 %v536
        %1102 = vmatpush.msra.mxu0 %v528
        %1103 = vmatpush.msra.mxu0 %v520
        %1104 = vmatpush.msra.mxu0 %v512
        %1105 = vmatpush.msra.mxu0 %v504
        %1106 = vmatpush.msra.mxu0 %v496
        %1107 = vmatpush.msra.mxu0 %v488
        %1108 = vmatpush.msra.mxu0 %v480
        %1109 = vmatpush.msra.mxu0 %v472
        %1110 = vmatmul.f32.gmra.mxu0 %v306
        %v1111 = vpop.f32.mrf.mxu0
        %v1112 = vadd.f32 %v1041, %v1111
        %1113 = vmatmul.f32.gmra.mxu0 %v308
        %v1114 = vpop.f32.mrf.mxu0
        %v1115 = vadd.f32 %v1044, %v1114
        %1116 = vmatmul.f32.gmra.mxu0 %v310
        %v1117 = vpop.f32.mrf.mxu0
        %v1118 = vadd.f32 %v1047, %v1117
        %1119 = vmatmul.f32.gmra.mxu0 %v312
        %v1120 = vpop.f32.mrf.mxu0
        %v1121 = vadd.f32 %v1050, %v1120
        %1122 = vmatmul.f32.gmra.mxu0 %v314
        %v1123 = vpop.f32.mrf.mxu0
        %v1124 = vadd.f32 %v1053, %v1123
        %1125 = vmatmul.f32.gmra.mxu0 %v316
        %v1126 = vpop.f32.mrf.mxu0
        %v1127 = vadd.f32 %v1056, %v1126
        %1128 = vmatmul.f32.gmra.mxu0 %v318
        %v1129 = vpop.f32.mrf.mxu0
        %v1130 = vadd.f32 %v1059, %v1129
        %1131 = vmatmul.f32.gmra.mxu0 %v320
        %v1132 = vpop.f32.mrf.mxu0
        %v1133 = vadd.f32 %v1062, %v1132
        %1134 = vmatmul.f32.gmra.mxu0 %v322
        %v1135 = vpop.f32.mrf.mxu0
        %v1136 = vadd.f32 %v1065, %v1135
        %1137 = vmatmul.f32.gmra.mxu0 %v324
        %v1138 = vpop.f32.mrf.mxu0
        %v1139 = vadd.f32 %v1068, %v1138
        %1140 = vmatmul.f32.gmra.mxu0 %v326
        %v1141 = vpop.f32.mrf.mxu0
        %v1142 = vadd.f32 %v1071, %v1141
        %1143 = vmatmul.f32.gmra.mxu0 %v328
        %v1144 = vpop.f32.mrf.mxu0
        %v1145 = vadd.f32 %v1074, %v1144
        %1146 = vmatmul.f32.gmra.mxu0 %v330
        %v1147 = vpop.f32.mrf.mxu0
        %v1148 = vadd.f32 %v1077, %v1147
        %1149 = vmatmul.f32.gmra.mxu0 %v332
        %v1150 = vpop.f32.mrf.mxu0
        %v1151 = vadd.f32 %v1080, %v1150
        %1152 = vmatmul.f32.gmra.mxu0 %v334
        %v1153 = vpop.f32.mrf.mxu0
        %v1154 = vadd.f32 %v1083, %v1153
        %1155 = vmatmul.f32.gmra.mxu0 %v336
        %v1156 = vpop.f32.mrf.mxu0
        %v1157 = vadd.f32 %v1086, %v1156
        %1158 = vmatmul.f32.gmra.mxu0 %v338
        %v1159 = vpop.f32.mrf.mxu0
        %v1160 = vadd.f32 %v1089, %v1159
        %1161 = vmatmul.f32.gmra.mxu0 %v340
        %v1162 = vpop.f32.mrf.mxu0
        %v1163 = vadd.f32 %v1092, %v1162
        %1164 = vdwg.mxu0
        %1165 = vmatpush.msra.mxu0 %v465
        %1166 = vmatpush.msra.mxu0 %v457
        %1167 = vmatpush.msra.mxu0 %v449
        %1168 = vmatpush.msra.mxu0 %v441
        %1169 = vmatpush.msra.mxu0 %v433
        %1170 = vmatpush.msra.mxu0 %v425
        %1171 = vmatpush.msra.mxu0 %v417
        %1172 = vmatpush.msra.mxu0 %v409
        %1173 = vmatpush.msra.mxu0 %v401
        %1174 = vmatpush.msra.mxu0 %v393
        %1175 = vmatpush.msra.mxu0 %v385
        %1176 = vmatpush.msra.mxu0 %v377
        %1177 = vmatpush.msra.mxu0 %v369
        %1178 = vmatpush.msra.mxu0 %v361
        %1179 = vmatpush.msra.mxu0 %v353
        %1180 = vmatpush.msra.mxu0 %v345
        %1181 = vmatmul.f32.gmra.mxu0 %v305
        %v1182 = vpop.f32.mrf.mxu0
        %v1183 = vadd.f32 0.0, %v1182
        %1184 = vmatmul.f32.gmra.mxu0 %v307
        %v1185 = vpop.f32.mrf.mxu0
        %v1186 = vadd.f32 0.0, %v1185
        %1187 = vmatmul.f32.gmra.mxu0 %v309
        %v1188 = vpop.f32.mrf.mxu0
        %v1189 = vadd.f32 0.0, %v1188
        %1190 = vmatmul.f32.gmra.mxu0 %v311
        %v1191 = vpop.f32.mrf.mxu0
        %v1192 = vadd.f32 0.0, %v1191
        %1193 = vmatmul.f32.gmra.mxu0 %v313
        %v1194 = vpop.f32.mrf.mxu0
        %v1195 = vadd.f32 0.0, %v1194
        %1196 = vmatmul.f32.gmra.mxu0 %v315
        %v1197 = vpop.f32.mrf.mxu0
        %v1198 = vadd.f32 0.0, %v1197
        %1199 = vmatmul.f32.gmra.mxu0 %v317
        %v1200 = vpop.f32.mrf.mxu0
        %v1201 = vadd.f32 0.0, %v1200
        %1202 = vmatmul.f32.gmra.mxu0 %v319
        %v1203 = vpop.f32.mrf.mxu0
        %v1204 = vadd.f32 0.0, %v1203
        %1205 = vmatmul.f32.gmra.mxu0 %v321
        %v1206 = vpop.f32.mrf.mxu0
        %v1207 = vadd.f32 0.0, %v1206
        %1208 = vmatmul.f32.gmra.mxu0 %v323
        %v1209 = vpop.f32.mrf.mxu0
        %v1210 = vadd.f32 0.0, %v1209
        %1211 = vmatmul.f32.gmra.mxu0 %v325
        %v1212 = vpop.f32.mrf.mxu0
        %v1213 = vadd.f32 0.0, %v1212
        %1214 = vmatmul.f32.gmra.mxu0 %v327
        %v1215 = vpop.f32.mrf.mxu0
        %v1216 = vadd.f32 0.0, %v1215
        %1217 = vmatmul.f32.gmra.mxu0 %v329
        %v1218 = vpop.f32.mrf.mxu0
        %v1219 = vadd.f32 0.0, %v1218
        %1220 = vmatmul.f32.gmra.mxu0 %v331
        %v1221 = vpop.f32.mrf.mxu0
        %v1222 = vadd.f32 0.0, %v1221
        %1223 = vmatmul.f32.gmra.mxu0 %v333
        %v1224 = vpop.f32.mrf.mxu0
        %v1225 = vadd.f32 0.0, %v1224
        %1226 = vmatmul.f32.gmra.mxu0 %v335
        %v1227 = vpop.f32.mrf.mxu0
        %v1228 = vadd.f32 0.0, %v1227
        %1229 = vmatmul.f32.gmra.mxu0 %v337
        %v1230 = vpop.f32.mrf.mxu0
        %v1231 = vadd.f32 0.0, %v1230
        %1232 = vmatmul.f32.gmra.mxu0 %v339
        %v1233 = vpop.f32.mrf.mxu0
        %v1234 = vadd.f32 0.0, %v1233
        %1235 = vdwg.mxu0
        %1236 = vmatpush.msra.mxu0 %v593
        %1237 = vmatpush.msra.mxu0 %v585
        %1238 = vmatpush.msra.mxu0 %v577
        %1239 = vmatpush.msra.mxu0 %v569
        %1240 = vmatpush.msra.mxu0 %v561
        %1241 = vmatpush.msra.mxu0 %v553
        %1242 = vmatpush.msra.mxu0 %v545
        %1243 = vmatpush.msra.mxu0 %v537
        %1244 = vmatpush.msra.mxu0 %v529
        %1245 = vmatpush.msra.mxu0 %v521
        %1246 = vmatpush.msra.mxu0 %v513
        %1247 = vmatpush.msra.mxu0 %v505
        %1248 = vmatpush.msra.mxu0 %v497
        %1249 = vmatpush.msra.mxu0 %v489
        %1250 = vmatpush.msra.mxu0 %v481
        %1251 = vmatpush.msra.mxu0 %v473
        %1252 = vmatmul.f32.gmra.mxu0 %v306
        %v1253 = vpop.f32.mrf.mxu0
        %v1254 = vadd.f32 %v1183, %v1253
        %1255 = vmatmul.f32.gmra.mxu0 %v308
        %v1256 = vpop.f32.mrf.mxu0
        %v1257 = vadd.f32 %v1186, %v1256
        %1258 = vmatmul.f32.gmra.mxu0 %v310
        %v1259 = vpop.f32.mrf.mxu0
        %v1260 = vadd.f32 %v1189, %v1259
        %1261 = vmatmul.f32.gmra.mxu0 %v312
        %v1262 = vpop.f32.mrf.mxu0
        %v1263 = vadd.f32 %v1192, %v1262
        %1264 = vmatmul.f32.gmra.mxu0 %v314
        %v1265 = vpop.f32.mrf.mxu0
        %v1266 = vadd.f32 %v1195, %v1265
        %1267 = vmatmul.f32.gmra.mxu0 %v316
        %v1268 = vpop.f32.mrf.mxu0
        %v1269 = vadd.f32 %v1198, %v1268
        %1270 = vmatmul.f32.gmra.mxu0 %v318
        %v1271 = vpop.f32.mrf.mxu0
        %v1272 = vadd.f32 %v1201, %v1271
        %1273 = vmatmul.f32.gmra.mxu0 %v320
        %v1274 = vpop.f32.mrf.mxu0
        %v1275 = vadd.f32 %v1204, %v1274
        %1276 = vmatmul.f32.gmra.mxu0 %v322
        %v1277 = vpop.f32.mrf.mxu0
        %v1278 = vadd.f32 %v1207, %v1277
        %1279 = vmatmul.f32.gmra.mxu0 %v324
        %v1280 = vpop.f32.mrf.mxu0
        %v1281 = vadd.f32 %v1210, %v1280
        %1282 = vmatmul.f32.gmra.mxu0 %v326
        %v1283 = vpop.f32.mrf.mxu0
        %v1284 = vadd.f32 %v1213, %v1283
        %1285 = vmatmul.f32.gmra.mxu0 %v328
        %v1286 = vpop.f32.mrf.mxu0
        %v1287 = vadd.f32 %v1216, %v1286
        %1288 = vmatmul.f32.gmra.mxu0 %v330
        %v1289 = vpop.f32.mrf.mxu0
        %v1290 = vadd.f32 %v1219, %v1289
        %1291 = vmatmul.f32.gmra.mxu0 %v332
        %v1292 = vpop.f32.mrf.mxu0
        %v1293 = vadd.f32 %v1222, %v1292
        %1294 = vmatmul.f32.gmra.mxu0 %v334
        %v1295 = vpop.f32.mrf.mxu0
        %v1296 = vadd.f32 %v1225, %v1295
        %1297 = vmatmul.f32.gmra.mxu0 %v336
        %v1298 = vpop.f32.mrf.mxu0
        %v1299 = vadd.f32 %v1228, %v1298
        %1300 = vmatmul.f32.gmra.mxu0 %v338
        %v1301 = vpop.f32.mrf.mxu0
        %v1302 = vadd.f32 %v1231, %v1301
        %1303 = vmatmul.f32.gmra.mxu0 %v340
        %v1304 = vpop.f32.mrf.mxu0
        %v1305 = vadd.f32 %v1234, %v1304
        %1306 = vdwg.mxu0
        %1307 = vmatpush.msra.mxu0 %v466
        %1308 = vmatpush.msra.mxu0 %v458
        %1309 = vmatpush.msra.mxu0 %v450
        %1310 = vmatpush.msra.mxu0 %v442
        %1311 = vmatpush.msra.mxu0 %v434
        %1312 = vmatpush.msra.mxu0 %v426
        %1313 = vmatpush.msra.mxu0 %v418
        %1314 = vmatpush.msra.mxu0 %v410
        %1315 = vmatpush.msra.mxu0 %v402
        %1316 = vmatpush.msra.mxu0 %v394
        %1317 = vmatpush.msra.mxu0 %v386
        %1318 = vmatpush.msra.mxu0 %v378
        %1319 = vmatpush.msra.mxu0 %v370
        %1320 = vmatpush.msra.mxu0 %v362
        %1321 = vmatpush.msra.mxu0 %v354
        %1322 = vmatpush.msra.mxu0 %v346
        %1323 = vmatmul.f32.gmra.mxu0 %v305
        %v1324 = vpop.f32.mrf.mxu0
        %v1325 = vadd.f32 0.0, %v1324
        %1326 = vmatmul.f32.gmra.mxu0 %v307
        %v1327 = vpop.f32.mrf.mxu0
        %v1328 = vadd.f32 0.0, %v1327
        %1329 = vmatmul.f32.gmra.mxu0 %v309
        %v1330 = vpop.f32.mrf.mxu0
        %v1331 = vadd.f32 0.0, %v1330
        %1332 = vmatmul.f32.gmra.mxu0 %v311
        %v1333 = vpop.f32.mrf.mxu0
        %v1334 = vadd.f32 0.0, %v1333
        %1335 = vmatmul.f32.gmra.mxu0 %v313
        %v1336 = vpop.f32.mrf.mxu0
        %v1337 = vadd.f32 0.0, %v1336
        %1338 = vmatmul.f32.gmra.mxu0 %v315
        %v1339 = vpop.f32.mrf.mxu0
        %v1340 = vadd.f32 0.0, %v1339
        %1341 = vmatmul.f32.gmra.mxu0 %v317
        %v1342 = vpop.f32.mrf.mxu0
        %v1343 = vadd.f32 0.0, %v1342
        %1344 = vmatmul.f32.gmra.mxu0 %v319
        %v1345 = vpop.f32.mrf.mxu0
        %v1346 = vadd.f32 0.0, %v1345
        %1347 = vmatmul.f32.gmra.mxu0 %v321
        %v1348 = vpop.f32.mrf.mxu0
        %v1349 = vadd.f32 0.0, %v1348
        %1350 = vmatmul.f32.gmra.mxu0 %v323
        %v1351 = vpop.f32.mrf.mxu0
        %v1352 = vadd.f32 0.0, %v1351
        %1353 = vmatmul.f32.gmra.mxu0 %v325
        %v1354 = vpop.f32.mrf.mxu0
        %v1355 = vadd.f32 0.0, %v1354
        %1356 = vmatmul.f32.gmra.mxu0 %v327
        %v1357 = vpop.f32.mrf.mxu0
        %v1358 = vadd.f32 0.0, %v1357
        %1359 = vmatmul.f32.gmra.mxu0 %v329
        %v1360 = vpop.f32.mrf.mxu0
        %v1361 = vadd.f32 0.0, %v1360
        %1362 = vmatmul.f32.gmra.mxu0 %v331
        %v1363 = vpop.f32.mrf.mxu0
        %v1364 = vadd.f32 0.0, %v1363
        %1365 = vmatmul.f32.gmra.mxu0 %v333
        %v1366 = vpop.f32.mrf.mxu0
        %v1367 = vadd.f32 0.0, %v1366
        %1368 = vmatmul.f32.gmra.mxu0 %v335
        %v1369 = vpop.f32.mrf.mxu0
        %v1370 = vadd.f32 0.0, %v1369
        %1371 = vmatmul.f32.gmra.mxu0 %v337
        %v1372 = vpop.f32.mrf.mxu0
        %v1373 = vadd.f32 0.0, %v1372
        %1374 = vmatmul.f32.gmra.mxu0 %v339
        %v1375 = vpop.f32.mrf.mxu0
        %v1376 = vadd.f32 0.0, %v1375
        %1377 = vdwg.mxu0
        %1378 = vmatpush.msra.mxu0 %v594
        %1379 = vmatpush.msra.mxu0 %v586
        %1380 = vmatpush.msra.mxu0 %v578
        %1381 = vmatpush.msra.mxu0 %v570
        %1382 = vmatpush.msra.mxu0 %v562
        %1383 = vmatpush.msra.mxu0 %v554
        %1384 = vmatpush.msra.mxu0 %v546
        %1385 = vmatpush.msra.mxu0 %v538
        %1386 = vmatpush.msra.mxu0 %v530
        %1387 = vmatpush.msra.mxu0 %v522
        %1388 = vmatpush.msra.mxu0 %v514
        %1389 = vmatpush.msra.mxu0 %v506
        %1390 = vmatpush.msra.mxu0 %v498
        %1391 = vmatpush.msra.mxu0 %v490
        %1392 = vmatpush.msra.mxu0 %v482
        %1393 = vmatpush.msra.mxu0 %v474
        %1394 = vmatmul.f32.gmra.mxu0 %v306
        %v1395 = vpop.f32.mrf.mxu0
        %v1396 = vadd.f32 %v1325, %v1395
        %1397 = vmatmul.f32.gmra.mxu0 %v308
        %v1398 = vpop.f32.mrf.mxu0
        %v1399 = vadd.f32 %v1328, %v1398
        %1400 = vmatmul.f32.gmra.mxu0 %v310
        %v1401 = vpop.f32.mrf.mxu0
        %v1402 = vadd.f32 %v1331, %v1401
        %1403 = vmatmul.f32.gmra.mxu0 %v312
        %v1404 = vpop.f32.mrf.mxu0
        %v1405 = vadd.f32 %v1334, %v1404
        %1406 = vmatmul.f32.gmra.mxu0 %v314
        %v1407 = vpop.f32.mrf.mxu0
        %v1408 = vadd.f32 %v1337, %v1407
        %1409 = vmatmul.f32.gmra.mxu0 %v316
        %v1410 = vpop.f32.mrf.mxu0
        %v1411 = vadd.f32 %v1340, %v1410
        %1412 = vmatmul.f32.gmra.mxu0 %v318
        %v1413 = vpop.f32.mrf.mxu0
        %v1414 = vadd.f32 %v1343, %v1413
        %1415 = vmatmul.f32.gmra.mxu0 %v320
        %v1416 = vpop.f32.mrf.mxu0
        %v1417 = vadd.f32 %v1346, %v1416
        %1418 = vmatmul.f32.gmra.mxu0 %v322
        %v1419 = vpop.f32.mrf.mxu0
        %v1420 = vadd.f32 %v1349, %v1419
        %1421 = vmatmul.f32.gmra.mxu0 %v324
        %v1422 = vpop.f32.mrf.mxu0
        %v1423 = vadd.f32 %v1352, %v1422
        %1424 = vmatmul.f32.gmra.mxu0 %v326
        %v1425 = vpop.f32.mrf.mxu0
        %v1426 = vadd.f32 %v1355, %v1425
        %1427 = vmatmul.f32.gmra.mxu0 %v328
        %v1428 = vpop.f32.mrf.mxu0
        %v1429 = vadd.f32 %v1358, %v1428
        %1430 = vmatmul.f32.gmra.mxu0 %v330
        %v1431 = vpop.f32.mrf.mxu0
        %v1432 = vadd.f32 %v1361, %v1431
        %1433 = vmatmul.f32.gmra.mxu0 %v332
        %v1434 = vpop.f32.mrf.mxu0
        %v1435 = vadd.f32 %v1364, %v1434
        %1436 = vmatmul.f32.gmra.mxu0 %v334
        %v1437 = vpop.f32.mrf.mxu0
        %v1438 = vadd.f32 %v1367, %v1437
        %1439 = vmatmul.f32.gmra.mxu0 %v336
        %v1440 = vpop.f32.mrf.mxu0
        %v1441 = vadd.f32 %v1370, %v1440
        %1442 = vmatmul.f32.gmra.mxu0 %v338
        %v1443 = vpop.f32.mrf.mxu0
        %v1444 = vadd.f32 %v1373, %v1443
        %1445 = vmatmul.f32.gmra.mxu0 %v340
        %v1446 = vpop.f32.mrf.mxu0
        %v1447 = vadd.f32 %v1376, %v1446
        %1448 = vdwg.mxu0
        %1449 = vmatpush.msra.mxu0 %v467
        %1450 = vmatpush.msra.mxu0 %v459
        %1451 = vmatpush.msra.mxu0 %v451
        %1452 = vmatpush.msra.mxu0 %v443
        %1453 = vmatpush.msra.mxu0 %v435
        %1454 = vmatpush.msra.mxu0 %v427
        %1455 = vmatpush.msra.mxu0 %v419
        %1456 = vmatpush.msra.mxu0 %v411
        %1457 = vmatpush.msra.mxu0 %v403
        %1458 = vmatpush.msra.mxu0 %v395
        %1459 = vmatpush.msra.mxu0 %v387
        %1460 = vmatpush.msra.mxu0 %v379
        %1461 = vmatpush.msra.mxu0 %v371
        %1462 = vmatpush.msra.mxu0 %v363
        %1463 = vmatpush.msra.mxu0 %v355
        %1464 = vmatpush.msra.mxu0 %v347
        %1465 = vmatmul.f32.gmra.mxu0 %v305
        %v1466 = vpop.f32.mrf.mxu0
        %v1467 = vadd.f32 0.0, %v1466
        %1468 = vmatmul.f32.gmra.mxu0 %v307
        %v1469 = vpop.f32.mrf.mxu0
        %v1470 = vadd.f32 0.0, %v1469
        %1471 = vmatmul.f32.gmra.mxu0 %v309
        %v1472 = vpop.f32.mrf.mxu0
        %v1473 = vadd.f32 0.0, %v1472
        %1474 = vmatmul.f32.gmra.mxu0 %v311
        %v1475 = vpop.f32.mrf.mxu0
        %v1476 = vadd.f32 0.0, %v1475
        %1477 = vmatmul.f32.gmra.mxu0 %v313
        %v1478 = vpop.f32.mrf.mxu0
        %v1479 = vadd.f32 0.0, %v1478
        %1480 = vmatmul.f32.gmra.mxu0 %v315
        %v1481 = vpop.f32.mrf.mxu0
        %v1482 = vadd.f32 0.0, %v1481
        %1483 = vmatmul.f32.gmra.mxu0 %v317
        %v1484 = vpop.f32.mrf.mxu0
        %v1485 = vadd.f32 0.0, %v1484
        %1486 = vmatmul.f32.gmra.mxu0 %v319
        %v1487 = vpop.f32.mrf.mxu0
        %v1488 = vadd.f32 0.0, %v1487
        %1489 = vmatmul.f32.gmra.mxu0 %v321
        %v1490 = vpop.f32.mrf.mxu0
        %v1491 = vadd.f32 0.0, %v1490
        %1492 = vmatmul.f32.gmra.mxu0 %v323
        %v1493 = vpop.f32.mrf.mxu0
        %v1494 = vadd.f32 0.0, %v1493
        %1495 = vmatmul.f32.gmra.mxu0 %v325
        %v1496 = vpop.f32.mrf.mxu0
        %v1497 = vadd.f32 0.0, %v1496
        %1498 = vmatmul.f32.gmra.mxu0 %v327
        %v1499 = vpop.f32.mrf.mxu0
        %v1500 = vadd.f32 0.0, %v1499
        %1501 = vmatmul.f32.gmra.mxu0 %v329
        %v1502 = vpop.f32.mrf.mxu0
        %v1503 = vadd.f32 0.0, %v1502
        %1504 = vmatmul.f32.gmra.mxu0 %v331
        %v1505 = vpop.f32.mrf.mxu0
        %v1506 = vadd.f32 0.0, %v1505
        %1507 = vmatmul.f32.gmra.mxu0 %v333
        %v1508 = vpop.f32.mrf.mxu0
        %v1509 = vadd.f32 0.0, %v1508
        %1510 = vmatmul.f32.gmra.mxu0 %v335
        %v1511 = vpop.f32.mrf.mxu0
        %v1512 = vadd.f32 0.0, %v1511
        %1513 = vmatmul.f32.gmra.mxu0 %v337
        %v1514 = vpop.f32.mrf.mxu0
        %v1515 = vadd.f32 0.0, %v1514
        %1516 = vmatmul.f32.gmra.mxu0 %v339
        %v1517 = vpop.f32.mrf.mxu0
        %v1518 = vadd.f32 0.0, %v1517
        %1519 = vdwg.mxu0
        %1520 = vmatpush.msra.mxu0 %v595
        %1521 = vmatpush.msra.mxu0 %v587
        %1522 = vmatpush.msra.mxu0 %v579
        %1523 = vmatpush.msra.mxu0 %v571
        %1524 = vmatpush.msra.mxu0 %v563
        %1525 = vmatpush.msra.mxu0 %v555
        %1526 = vmatpush.msra.mxu0 %v547
        %1527 = vmatpush.msra.mxu0 %v539
        %1528 = vmatpush.msra.mxu0 %v531
        %1529 = vmatpush.msra.mxu0 %v523
        %1530 = vmatpush.msra.mxu0 %v515
        %1531 = vmatpush.msra.mxu0 %v507
        %1532 = vmatpush.msra.mxu0 %v499
        %1533 = vmatpush.msra.mxu0 %v491
        %1534 = vmatpush.msra.mxu0 %v483
        %1535 = vmatpush.msra.mxu0 %v475
        %1536 = vmatmul.f32.gmra.mxu0 %v306
        %v1537 = vpop.f32.mrf.mxu0
        %v1538 = vadd.f32 %v1467, %v1537
        %1539 = vmatmul.f32.gmra.mxu0 %v308
        %v1540 = vpop.f32.mrf.mxu0
        %v1541 = vadd.f32 %v1470, %v1540
        %1542 = vmatmul.f32.gmra.mxu0 %v310
        %v1543 = vpop.f32.mrf.mxu0
        %v1544 = vadd.f32 %v1473, %v1543
        %1545 = vmatmul.f32.gmra.mxu0 %v312
        %v1546 = vpop.f32.mrf.mxu0
        %v1547 = vadd.f32 %v1476, %v1546
        %1548 = vmatmul.f32.gmra.mxu0 %v314
        %v1549 = vpop.f32.mrf.mxu0
        %v1550 = vadd.f32 %v1479, %v1549
        %1551 = vmatmul.f32.gmra.mxu0 %v316
        %v1552 = vpop.f32.mrf.mxu0
        %v1553 = vadd.f32 %v1482, %v1552
        %1554 = vmatmul.f32.gmra.mxu0 %v318
        %v1555 = vpop.f32.mrf.mxu0
        %v1556 = vadd.f32 %v1485, %v1555
        %1557 = vmatmul.f32.gmra.mxu0 %v320
        %v1558 = vpop.f32.mrf.mxu0
        %v1559 = vadd.f32 %v1488, %v1558
        %1560 = vmatmul.f32.gmra.mxu0 %v322
        %v1561 = vpop.f32.mrf.mxu0
        %v1562 = vadd.f32 %v1491, %v1561
        %1563 = vmatmul.f32.gmra.mxu0 %v324
        %v1564 = vpop.f32.mrf.mxu0
        %v1565 = vadd.f32 %v1494, %v1564
        %1566 = vmatmul.f32.gmra.mxu0 %v326
        %v1567 = vpop.f32.mrf.mxu0
        %v1568 = vadd.f32 %v1497, %v1567
        %1569 = vmatmul.f32.gmra.mxu0 %v328
        %v1570 = vpop.f32.mrf.mxu0
        %v1571 = vadd.f32 %v1500, %v1570
        %1572 = vmatmul.f32.gmra.mxu0 %v330
        %v1573 = vpop.f32.mrf.mxu0
        %v1574 = vadd.f32 %v1503, %v1573
        %1575 = vmatmul.f32.gmra.mxu0 %v332
        %v1576 = vpop.f32.mrf.mxu0
        %v1577 = vadd.f32 %v1506, %v1576
        %1578 = vmatmul.f32.gmra.mxu0 %v334
        %v1579 = vpop.f32.mrf.mxu0
        %v1580 = vadd.f32 %v1509, %v1579
        %1581 = vmatmul.f32.gmra.mxu0 %v336
        %v1582 = vpop.f32.mrf.mxu0
        %v1583 = vadd.f32 %v1512, %v1582
        %1584 = vmatmul.f32.gmra.mxu0 %v338
        %v1585 = vpop.f32.mrf.mxu0
        %v1586 = vadd.f32 %v1515, %v1585
        %1587 = vmatmul.f32.gmra.mxu0 %v340
        %v1588 = vpop.f32.mrf.mxu0
        %v1589 = vadd.f32 %v1518, %v1588
        %1590 = vdwg.mxu0
        %1591 = vmatpush.msra.mxu0 %v468
        %1592 = vmatpush.msra.mxu0 %v460
        %1593 = vmatpush.msra.mxu0 %v452
        %1594 = vmatpush.msra.mxu0 %v444
        %1595 = vmatpush.msra.mxu0 %v436
        %1596 = vmatpush.msra.mxu0 %v428
        %1597 = vmatpush.msra.mxu0 %v420
        %1598 = vmatpush.msra.mxu0 %v412
        %1599 = vmatpush.msra.mxu0 %v404
        %1600 = vmatpush.msra.mxu0 %v396
        %1601 = vmatpush.msra.mxu0 %v388
        %1602 = vmatpush.msra.mxu0 %v380
        %1603 = vmatpush.msra.mxu0 %v372
        %1604 = vmatpush.msra.mxu0 %v364
        %1605 = vmatpush.msra.mxu0 %v356
        %1606 = vmatpush.msra.mxu0 %v348
        %1607 = vmatmul.f32.gmra.mxu0 %v305
        %v1608 = vpop.f32.mrf.mxu0
        %v1609 = vadd.f32 0.0, %v1608
        %1610 = vmatmul.f32.gmra.mxu0 %v307
        %v1611 = vpop.f32.mrf.mxu0
        %v1612 = vadd.f32 0.0, %v1611
        %1613 = vmatmul.f32.gmra.mxu0 %v309
        %v1614 = vpop.f32.mrf.mxu0
        %v1615 = vadd.f32 0.0, %v1614
        %1616 = vmatmul.f32.gmra.mxu0 %v311
        %v1617 = vpop.f32.mrf.mxu0
        %v1618 = vadd.f32 0.0, %v1617
        %1619 = vmatmul.f32.gmra.mxu0 %v313
        %v1620 = vpop.f32.mrf.mxu0
        %v1621 = vadd.f32 0.0, %v1620
        %1622 = vmatmul.f32.gmra.mxu0 %v315
        %v1623 = vpop.f32.mrf.mxu0
        %v1624 = vadd.f32 0.0, %v1623
        %1625 = vmatmul.f32.gmra.mxu0 %v317
        %v1626 = vpop.f32.mrf.mxu0
        %v1627 = vadd.f32 0.0, %v1626
        %1628 = vmatmul.f32.gmra.mxu0 %v319
        %v1629 = vpop.f32.mrf.mxu0
        %v1630 = vadd.f32 0.0, %v1629
        %1631 = vmatmul.f32.gmra.mxu0 %v321
        %v1632 = vpop.f32.mrf.mxu0
        %v1633 = vadd.f32 0.0, %v1632
        %1634 = vmatmul.f32.gmra.mxu0 %v323
        %v1635 = vpop.f32.mrf.mxu0
        %v1636 = vadd.f32 0.0, %v1635
        %1637 = vmatmul.f32.gmra.mxu0 %v325
        %v1638 = vpop.f32.mrf.mxu0
        %v1639 = vadd.f32 0.0, %v1638
        %1640 = vmatmul.f32.gmra.mxu0 %v327
        %v1641 = vpop.f32.mrf.mxu0
        %v1642 = vadd.f32 0.0, %v1641
        %1643 = vmatmul.f32.gmra.mxu0 %v329
        %v1644 = vpop.f32.mrf.mxu0
        %v1645 = vadd.f32 0.0, %v1644
        %1646 = vmatmul.f32.gmra.mxu0 %v331
        %v1647 = vpop.f32.mrf.mxu0
        %v1648 = vadd.f32 0.0, %v1647
        %1649 = vmatmul.f32.gmra.mxu0 %v333
        %v1650 = vpop.f32.mrf.mxu0
        %v1651 = vadd.f32 0.0, %v1650
        %1652 = vmatmul.f32.gmra.mxu0 %v335
        %v1653 = vpop.f32.mrf.mxu0
        %v1654 = vadd.f32 0.0, %v1653
        %1655 = vmatmul.f32.gmra.mxu0 %v337
        %v1656 = vpop.f32.mrf.mxu0
        %v1657 = vadd.f32 0.0, %v1656
        %1658 = vmatmul.f32.gmra.mxu0 %v339
        %v1659 = vpop.f32.mrf.mxu0
        %v1660 = vadd.f32 0.0, %v1659
        %1661 = vdwg.mxu0
        %1662 = vmatpush.msra.mxu0 %v596
        %1663 = vmatpush.msra.mxu0 %v588
        %1664 = vmatpush.msra.mxu0 %v580
        %1665 = vmatpush.msra.mxu0 %v572
        %1666 = vmatpush.msra.mxu0 %v564
        %1667 = vmatpush.msra.mxu0 %v556
        %1668 = vmatpush.msra.mxu0 %v548
        %1669 = vmatpush.msra.mxu0 %v540
        %1670 = vmatpush.msra.mxu0 %v532
        %1671 = vmatpush.msra.mxu0 %v524
        %1672 = vmatpush.msra.mxu0 %v516
        %1673 = vmatpush.msra.mxu0 %v508
        %1674 = vmatpush.msra.mxu0 %v500
        %1675 = vmatpush.msra.mxu0 %v492
        %1676 = vmatpush.msra.mxu0 %v484
        %1677 = vmatpush.msra.mxu0 %v476
        %1678 = vmatmul.f32.gmra.mxu0 %v306
        %v1679 = vpop.f32.mrf.mxu0
        %v1680 = vadd.f32 %v1609, %v1679
        %1681 = vmatmul.f32.gmra.mxu0 %v308
        %v1682 = vpop.f32.mrf.mxu0
        %v1683 = vadd.f32 %v1612, %v1682
        %1684 = vmatmul.f32.gmra.mxu0 %v310
        %v1685 = vpop.f32.mrf.mxu0
        %v1686 = vadd.f32 %v1615, %v1685
        %1687 = vmatmul.f32.gmra.mxu0 %v312
        %v1688 = vpop.f32.mrf.mxu0
        %v1689 = vadd.f32 %v1618, %v1688
        %1690 = vmatmul.f32.gmra.mxu0 %v314
        %v1691 = vpop.f32.mrf.mxu0
        %v1692 = vadd.f32 %v1621, %v1691
        %1693 = vmatmul.f32.gmra.mxu0 %v316
        %v1694 = vpop.f32.mrf.mxu0
        %v1695 = vadd.f32 %v1624, %v1694
        %1696 = vmatmul.f32.gmra.mxu0 %v318
        %v1697 = vpop.f32.mrf.mxu0
        %v1698 = vadd.f32 %v1627, %v1697
        %1699 = vmatmul.f32.gmra.mxu0 %v320
        %v1700 = vpop.f32.mrf.mxu0
        %v1701 = vadd.f32 %v1630, %v1700
        %1702 = vmatmul.f32.gmra.mxu0 %v322
        %v1703 = vpop.f32.mrf.mxu0
        %v1704 = vadd.f32 %v1633, %v1703
        %1705 = vmatmul.f32.gmra.mxu0 %v324
        %v1706 = vpop.f32.mrf.mxu0
        %v1707 = vadd.f32 %v1636, %v1706
        %1708 = vmatmul.f32.gmra.mxu0 %v326
        %v1709 = vpop.f32.mrf.mxu0
        %v1710 = vadd.f32 %v1639, %v1709
        %1711 = vmatmul.f32.gmra.mxu0 %v328
        %v1712 = vpop.f32.mrf.mxu0
        %v1713 = vadd.f32 %v1642, %v1712
        %1714 = vmatmul.f32.gmra.mxu0 %v330
        %v1715 = vpop.f32.mrf.mxu0
        %v1716 = vadd.f32 %v1645, %v1715
        %1717 = vmatmul.f32.gmra.mxu0 %v332
        %v1718 = vpop.f32.mrf.mxu0
        %v1719 = vadd.f32 %v1648, %v1718
        %1720 = vmatmul.f32.gmra.mxu0 %v334
        %v1721 = vpop.f32.mrf.mxu0
        %v1722 = vadd.f32 %v1651, %v1721
        %1723 = vmatmul.f32.gmra.mxu0 %v336
        %v1724 = vpop.f32.mrf.mxu0
        %v1725 = vadd.f32 %v1654, %v1724
        %1726 = vmatmul.f32.gmra.mxu0 %v338
        %v1727 = vpop.f32.mrf.mxu0
        %v1728 = vadd.f32 %v1657, %v1727
        %1729 = vmatmul.f32.gmra.mxu0 %v340
        %v1730 = vpop.f32.mrf.mxu0
        %v1731 = vadd.f32 %v1660, %v1730
        %1732 = vdwg.mxu0
        %v1733 = vxor.u32 %v1254, 2147483648
        %v1734 = vxor.u32 %v1396, 2147483648
        %v1735 = vxor.u32 %v1538, 2147483648
        %v1736 = vxor.u32 %v1680, 2147483648
        %v1737 = vxor.u32 %v1257, 2147483648
        %v1738 = vxor.u32 %v1399, 2147483648
        %v1739 = vxor.u32 %v1541, 2147483648
        %v1740 = vxor.u32 %v1683, 2147483648
        %v1741 = vxor.u32 %v1260, 2147483648
        %v1742 = vxor.u32 %v1402, 2147483648
        %v1743 = vxor.u32 %v1544, 2147483648
        %v1744 = vxor.u32 %v1686, 2147483648
        %v1745 = vxor.u32 %v1263, 2147483648
        %v1746 = vxor.u32 %v1405, 2147483648
        %v1747 = vxor.u32 %v1547, 2147483648
        %v1748 = vxor.u32 %v1689, 2147483648
        %v1749 = vxor.u32 %v1266, 2147483648
        %v1750 = vxor.u32 %v1408, 2147483648
        %v1751 = vxor.u32 %v1550, 2147483648
        %v1752 = vxor.u32 %v1692, 2147483648
        %v1753 = vxor.u32 %v1269, 2147483648
        %v1754 = vxor.u32 %v1411, 2147483648
        %v1755 = vxor.u32 %v1553, 2147483648
        %v1756 = vxor.u32 %v1695, 2147483648
        %v1757 = vxor.u32 %v1272, 2147483648
        %v1758 = vxor.u32 %v1414, 2147483648
        %v1759 = vxor.u32 %v1556, 2147483648
        %v1760 = vxor.u32 %v1698, 2147483648
        %v1761 = vxor.u32 %v1275, 2147483648
        %v1762 = vxor.u32 %v1417, 2147483648
        %v1763 = vxor.u32 %v1559, 2147483648
        %v1764 = vxor.u32 %v1701, 2147483648
        %v1765 = vxor.u32 %v1278, 2147483648
        %v1766 = vxor.u32 %v1420, 2147483648
        %v1767 = vxor.u32 %v1562, 2147483648
        %v1768 = vxor.u32 %v1704, 2147483648
        %v1769 = vxor.u32 %v1281, 2147483648
        %v1770 = vxor.u32 %v1423, 2147483648
        %v1771 = vxor.u32 %v1565, 2147483648
        %v1772 = vxor.u32 %v1707, 2147483648
        %v1773 = vxor.u32 %v1284, 2147483648
        %v1774 = vxor.u32 %v1426, 2147483648
        %v1775 = vxor.u32 %v1568, 2147483648
        %v1776 = vxor.u32 %v1710, 2147483648
        %v1777 = vxor.u32 %v1287, 2147483648
        %v1778 = vxor.u32 %v1429, 2147483648
        %v1779 = vxor.u32 %v1571, 2147483648
        %v1780 = vxor.u32 %v1713, 2147483648
        %v1781 = vxor.u32 %v1290, 2147483648
        %v1782 = vxor.u32 %v1432, 2147483648
        %v1783 = vxor.u32 %v1574, 2147483648
        %v1784 = vxor.u32 %v1716, 2147483648
        %v1785 = vxor.u32 %v1293, 2147483648
        %v1786 = vxor.u32 %v1435, 2147483648
        %v1787 = vxor.u32 %v1577, 2147483648
        %v1788 = vxor.u32 %v1719, 2147483648
        %v1789 = vxor.u32 %v1296, 2147483648
        %v1790 = vxor.u32 %v1438, 2147483648
        %v1791 = vxor.u32 %v1580, 2147483648
        %v1792 = vxor.u32 %v1722, 2147483648
        %v1793 = vxor.u32 %v1299, 2147483648
        %v1794 = vxor.u32 %v1441, 2147483648
        %v1795 = vxor.u32 %v1583, 2147483648
        %v1796 = vxor.u32 %v1725, 2147483648
        %v1797 = vxor.u32 %v1302, 2147483648
        %v1798 = vxor.u32 %v1444, 2147483648
        %v1799 = vxor.u32 %v1586, 2147483648
        %v1800 = vxor.u32 %v1728, 2147483648
        %v1801 = vxor.u32 %v1305, 2147483648
        %v1802 = vxor.u32 %v1447, 2147483648
        %v1803 = vxor.u32 %v1589, 2147483648
        %v1804 = vxor.u32 %v1731, 2147483648
        %v1805 = vmul.f32 %v1733, 1.442695
        %v1806 = vpow.pop %v1805
        %v1807 = vmul.f32 %v1734, 1.442695
        %v1808 = vpow.pop %v1807
        %v1809 = vmul.f32 %v1735, 1.442695
        %v1810 = vpow.pop %v1809
        %v1811 = vmul.f32 %v1736, 1.442695
        %v1812 = vpow.pop %v1811
        %v1813 = vmul.f32 %v1737, 1.442695
        %v1814 = vpow.pop %v1813
        %v1815 = vmul.f32 %v1738, 1.442695
        %v1816 = vpow.pop %v1815
        %v1817 = vmul.f32 %v1739, 1.442695
        %v1818 = vpow.pop %v1817
        %v1819 = vmul.f32 %v1740, 1.442695
        %v1820 = vpow.pop %v1819
        %v1821 = vmul.f32 %v1741, 1.442695
        %v1822 = vpow.pop %v1821
        %v1823 = vmul.f32 %v1742, 1.442695
        %v1824 = vpow.pop %v1823
        %v1825 = vmul.f32 %v1743, 1.442695
        %v1826 = vpow.pop %v1825
        %v1827 = vmul.f32 %v1744, 1.442695
        %v1828 = vpow.pop %v1827
        %v1829 = vmul.f32 %v1745, 1.442695
        %v1830 = vpow.pop %v1829
        %v1831 = vmul.f32 %v1746, 1.442695
        %v1832 = vpow.pop %v1831
        %v1833 = vmul.f32 %v1747, 1.442695
        %v1834 = vpow.pop %v1833
        %v1835 = vmul.f32 %v1748, 1.442695
        %v1836 = vpow.pop %v1835
        %v1837 = vmul.f32 %v1749, 1.442695
        %v1838 = vpow.pop %v1837
        %v1839 = vmul.f32 %v1750, 1.442695
        %v1840 = vpow.pop %v1839
        %v1841 = vmul.f32 %v1751, 1.442695
        %v1842 = vpow.pop %v1841
        %v1843 = vmul.f32 %v1752, 1.442695
        %v1844 = vpow.pop %v1843
        %v1845 = vmul.f32 %v1753, 1.442695
        %v1846 = vpow.pop %v1845
        %v1847 = vmul.f32 %v1754, 1.442695
        %v1848 = vpow.pop %v1847
        %v1849 = vmul.f32 %v1755, 1.442695
        %v1850 = vpow.pop %v1849
        %v1851 = vmul.f32 %v1756, 1.442695
        %v1852 = vpow.pop %v1851
        %v1853 = vmul.f32 %v1757, 1.442695
        %v1854 = vpow.pop %v1853
        %v1855 = vmul.f32 %v1758, 1.442695
        %v1856 = vpow.pop %v1855
        %v1857 = vmul.f32 %v1759, 1.442695
        %v1858 = vpow.pop %v1857
        %v1859 = vmul.f32 %v1760, 1.442695
        %v1860 = vpow.pop %v1859
        %v1861 = vmul.f32 %v1761, 1.442695
        %v1862 = vpow.pop %v1861
        %v1863 = vmul.f32 %v1762, 1.442695
        %v1864 = vpow.pop %v1863
        %v1865 = vmul.f32 %v1763, 1.442695
        %v1866 = vpow.pop %v1865
        %v1867 = vmul.f32 %v1764, 1.442695
        %v1868 = vpow.pop %v1867
        %v1869 = vmul.f32 %v1765, 1.442695
        %v1870 = vpow.pop %v1869
        %v1871 = vmul.f32 %v1766, 1.442695
        %v1872 = vpow.pop %v1871
        %v1873 = vmul.f32 %v1767, 1.442695
        %v1874 = vpow.pop %v1873
        %v1875 = vmul.f32 %v1768, 1.442695
        %v1876 = vpow.pop %v1875
        %v1877 = vmul.f32 %v1769, 1.442695
        %v1878 = vpow.pop %v1877
        %v1879 = vmul.f32 %v1770, 1.442695
        %v1880 = vpow.pop %v1879
        %v1881 = vmul.f32 %v1771, 1.442695
        %v1882 = vpow.pop %v1881
        %v1883 = vmul.f32 %v1772, 1.442695
        %v1884 = vpow.pop %v1883
        %v1885 = vmul.f32 %v1773, 1.442695
        %v1886 = vpow.pop %v1885
        %v1887 = vmul.f32 %v1774, 1.442695
        %v1888 = vpow.pop %v1887
        %v1889 = vmul.f32 %v1775, 1.442695
        %v1890 = vpow.pop %v1889
        %v1891 = vmul.f32 %v1776, 1.442695
        %v1892 = vpow.pop %v1891
        %v1893 = vmul.f32 %v1777, 1.442695
        %v1894 = vpow.pop %v1893
        %v1895 = vmul.f32 %v1778, 1.442695
        %v1896 = vpow.pop %v1895
        %v1897 = vmul.f32 %v1779, 1.442695
        %v1898 = vpow.pop %v1897
        %v1899 = vmul.f32 %v1780, 1.442695
        %v1900 = vpow.pop %v1899
        %v1901 = vmul.f32 %v1781, 1.442695
        %v1902 = vpow.pop %v1901
        %v1903 = vmul.f32 %v1782, 1.442695
        %v1904 = vpow.pop %v1903
        %v1905 = vmul.f32 %v1783, 1.442695
        %v1906 = vpow.pop %v1905
        %v1907 = vmul.f32 %v1784, 1.442695
        %v1908 = vpow.pop %v1907
        %v1909 = vmul.f32 %v1785, 1.442695
        %v1910 = vpow.pop %v1909
        %v1911 = vmul.f32 %v1786, 1.442695
        %v1912 = vpow.pop %v1911
        %v1913 = vmul.f32 %v1787, 1.442695
        %v1914 = vpow.pop %v1913
        %v1915 = vmul.f32 %v1788, 1.442695
        %v1916 = vpow.pop %v1915
        %v1917 = vmul.f32 %v1789, 1.442695
        %v1918 = vpow.pop %v1917
        %v1919 = vmul.f32 %v1790, 1.442695
        %v1920 = vpow.pop %v1919
        %v1921 = vmul.f32 %v1791, 1.442695
        %v1922 = vpow.pop %v1921
        %v1923 = vmul.f32 %v1792, 1.442695
        %v1924 = vpow.pop %v1923
        %v1925 = vmul.f32 %v1793, 1.442695
        %v1926 = vpow.pop %v1925
        %v1927 = vmul.f32 %v1794, 1.442695
        %v1928 = vpow.pop %v1927
        %v1929 = vmul.f32 %v1795, 1.442695
        %v1930 = vpow.pop %v1929
        %v1931 = vmul.f32 %v1796, 1.442695
        %v1932 = vpow.pop %v1931
        %v1933 = vmul.f32 %v1797, 1.442695
        %v1934 = vpow.pop %v1933
        %v1935 = vmul.f32 %v1798, 1.442695
        %v1936 = vpow.pop %v1935
        %v1937 = vmul.f32 %v1799, 1.442695
        %v1938 = vpow.pop %v1937
        %v1939 = vmul.f32 %v1800, 1.442695
        %v1940 = vpow.pop %v1939
        %v1941 = vmul.f32 %v1801, 1.442695
        %v1942 = vpow.pop %v1941
        %v1943 = vmul.f32 %v1802, 1.442695
        %v1944 = vpow.pop %v1943
        %v1945 = vmul.f32 %v1803, 1.442695
        %v1946 = vpow.pop %v1945
        %v1947 = vmul.f32 %v1804, 1.442695
        %v1948 = vpow.pop %v1947
        %v1949 = vadd.f32 %v1806, 1.0
        %v1950 = vadd.f32 %v1808, 1.0
        %v1951 = vadd.f32 %v1810, 1.0
        %v1952 = vadd.f32 %v1812, 1.0
        %v1953 = vadd.f32 %v1814, 1.0
        %v1954 = vadd.f32 %v1816, 1.0
        %v1955 = vadd.f32 %v1818, 1.0
        %v1956 = vadd.f32 %v1820, 1.0
        %v1957 = vadd.f32 %v1822, 1.0
        %v1958 = vadd.f32 %v1824, 1.0
        %v1959 = vadd.f32 %v1826, 1.0
        %v1960 = vadd.f32 %v1828, 1.0
        %v1961 = vadd.f32 %v1830, 1.0
        %v1962 = vadd.f32 %v1832, 1.0
        %v1963 = vadd.f32 %v1834, 1.0
        %v1964 = vadd.f32 %v1836, 1.0
        %v1965 = vadd.f32 %v1838, 1.0
        %v1966 = vadd.f32 %v1840, 1.0
        %v1967 = vadd.f32 %v1842, 1.0
        %v1968 = vadd.f32 %v1844, 1.0
        %v1969 = vadd.f32 %v1846, 1.0
        %v1970 = vadd.f32 %v1848, 1.0
        %v1971 = vadd.f32 %v1850, 1.0
        %v1972 = vadd.f32 %v1852, 1.0
        %v1973 = vadd.f32 %v1854, 1.0
        %v1974 = vadd.f32 %v1856, 1.0
        %v1975 = vadd.f32 %v1858, 1.0
        %v1976 = vadd.f32 %v1860, 1.0
        %v1977 = vadd.f32 %v1862, 1.0
        %v1978 = vadd.f32 %v1864, 1.0
        %v1979 = vadd.f32 %v1866, 1.0
        %v1980 = vadd.f32 %v1868, 1.0
        %v1981 = vadd.f32 %v1870, 1.0
        %v1982 = vadd.f32 %v1872, 1.0
        %v1983 = vadd.f32 %v1874, 1.0
        %v1984 = vadd.f32 %v1876, 1.0
        %v1985 = vadd.f32 %v1878, 1.0
        %v1986 = vadd.f32 %v1880, 1.0
        %v1987 = vadd.f32 %v1882, 1.0
        %v1988 = vadd.f32 %v1884, 1.0
        %v1989 = vadd.f32 %v1886, 1.0
        %v1990 = vadd.f32 %v1888, 1.0
        %v1991 = vadd.f32 %v1890, 1.0
        %v1992 = vadd.f32 %v1892, 1.0
        %v1993 = vadd.f32 %v1894, 1.0
        %v1994 = vadd.f32 %v1896, 1.0
        %v1995 = vadd.f32 %v1898, 1.0
        %v1996 = vadd.f32 %v1900, 1.0
        %v1997 = vadd.f32 %v1902, 1.0
        %v1998 = vadd.f32 %v1904, 1.0
        %v1999 = vadd.f32 %v1906, 1.0
        %v2000 = vadd.f32 %v1908, 1.0
        %v2001 = vadd.f32 %v1910, 1.0
        %v2002 = vadd.f32 %v1912, 1.0
        %v2003 = vadd.f32 %v1914, 1.0
        %v2004 = vadd.f32 %v1916, 1.0
        %v2005 = vadd.f32 %v1918, 1.0
        %v2006 = vadd.f32 %v1920, 1.0
        %v2007 = vadd.f32 %v1922, 1.0
        %v2008 = vadd.f32 %v1924, 1.0
        %v2009 = vadd.f32 %v1926, 1.0
        %v2010 = vadd.f32 %v1928, 1.0
        %v2011 = vadd.f32 %v1930, 1.0
        %v2012 = vadd.f32 %v1932, 1.0
        %v2013 = vadd.f32 %v1934, 1.0
        %v2014 = vadd.f32 %v1936, 1.0
        %v2015 = vadd.f32 %v1938, 1.0
        %v2016 = vadd.f32 %v1940, 1.0
        %v2017 = vadd.f32 %v1942, 1.0
        %v2018 = vadd.f32 %v1944, 1.0
        %v2019 = vadd.f32 %v1946, 1.0
        %v2020 = vadd.f32 %v1948, 1.0
        %v2021 = vrcp.pop %v1949
        %v2022 = vmul.f32 %v1949, %v2021
        %v2023 = vsub.f32 1.0, %v2022
        %v2024 = vmul.f32 %v2021, %v2023
        %v2025 = vadd.f32 %v2021, %v2024
        %vm2026 = vweird.f32 %v1949
        %vm2027 = vweird.f32 %v2021
        %vm2028 = vmor %vm2026, %vm2027
        %v2029 = vsel %vm2028, %v2021, %v2025
        %v2030 = vand.u32 2147483647, %v1949
        %vm2031 = vcmp.eq.f32.partialorder %v2030, 8.507059e+37
        %v2032 = vand.u32 %v1949, 2147483648
        %v2033 = vor.u32 1.1754944e-38, %v2032
        %v2034 = vsel %vm2031, %v2033, %v2029
        %v2035 = vmul.f32 1.0, %v2034
        %v2036 = vrcp.pop %v1950
        %v2037 = vmul.f32 %v1950, %v2036
        %v2038 = vsub.f32 1.0, %v2037
        %v2039 = vmul.f32 %v2036, %v2038
        %v2040 = vadd.f32 %v2036, %v2039
        %vm2041 = vweird.f32 %v1950
        %vm2042 = vweird.f32 %v2036
        %vm2043 = vmor %vm2041, %vm2042
        %v2044 = vsel %vm2043, %v2036, %v2040
        %v2045 = vand.u32 2147483647, %v1950
        %vm2046 = vcmp.eq.f32.partialorder %v2045, 8.507059e+37
        %v2047 = vand.u32 %v1950, 2147483648
        %v2048 = vor.u32 1.1754944e-38, %v2047
        %v2049 = vsel %vm2046, %v2048, %v2044
        %v2050 = vmul.f32 1.0, %v2049
        %v2051 = vrcp.pop %v1951
        %v2052 = vmul.f32 %v1951, %v2051
        %v2053 = vsub.f32 1.0, %v2052
        %v2054 = vmul.f32 %v2051, %v2053
        %v2055 = vadd.f32 %v2051, %v2054
        %vm2056 = vweird.f32 %v1951
        %vm2057 = vweird.f32 %v2051
        %vm2058 = vmor %vm2056, %vm2057
        %v2059 = vsel %vm2058, %v2051, %v2055
        %v2060 = vand.u32 2147483647, %v1951
        %vm2061 = vcmp.eq.f32.partialorder %v2060, 8.507059e+37
        %v2062 = vand.u32 %v1951, 2147483648
        %v2063 = vor.u32 1.1754944e-38, %v2062
        %v2064 = vsel %vm2061, %v2063, %v2059
        %v2065 = vmul.f32 1.0, %v2064
        %v2066 = vrcp.pop %v1952
        %v2067 = vmul.f32 %v1952, %v2066
        %v2068 = vsub.f32 1.0, %v2067
        %v2069 = vmul.f32 %v2066, %v2068
        %v2070 = vadd.f32 %v2066, %v2069
        %vm2071 = vweird.f32 %v1952
        %vm2072 = vweird.f32 %v2066
        %vm2073 = vmor %vm2071, %vm2072
        %v2074 = vsel %vm2073, %v2066, %v2070
        %v2075 = vand.u32 2147483647, %v1952
        %vm2076 = vcmp.eq.f32.partialorder %v2075, 8.507059e+37
        %v2077 = vand.u32 %v1952, 2147483648
        %v2078 = vor.u32 1.1754944e-38, %v2077
        %v2079 = vsel %vm2076, %v2078, %v2074
        %v2080 = vmul.f32 1.0, %v2079
        %v2081 = vrcp.pop %v1953
        %v2082 = vmul.f32 %v1953, %v2081
        %v2083 = vsub.f32 1.0, %v2082
        %v2084 = vmul.f32 %v2081, %v2083
        %v2085 = vadd.f32 %v2081, %v2084
        %vm2086 = vweird.f32 %v1953
        %vm2087 = vweird.f32 %v2081
        %vm2088 = vmor %vm2086, %vm2087
        %v2089 = vsel %vm2088, %v2081, %v2085
        %v2090 = vand.u32 2147483647, %v1953
        %vm2091 = vcmp.eq.f32.partialorder %v2090, 8.507059e+37
        %v2092 = vand.u32 %v1953, 2147483648
        %v2093 = vor.u32 1.1754944e-38, %v2092
        %v2094 = vsel %vm2091, %v2093, %v2089
        %v2095 = vmul.f32 1.0, %v2094
        %v2096 = vrcp.pop %v1954
        %v2097 = vmul.f32 %v1954, %v2096
        %v2098 = vsub.f32 1.0, %v2097
        %v2099 = vmul.f32 %v2096, %v2098
        %v2100 = vadd.f32 %v2096, %v2099
        %vm2101 = vweird.f32 %v1954
        %vm2102 = vweird.f32 %v2096
        %vm2103 = vmor %vm2101, %vm2102
        %v2104 = vsel %vm2103, %v2096, %v2100
        %v2105 = vand.u32 2147483647, %v1954
        %vm2106 = vcmp.eq.f32.partialorder %v2105, 8.507059e+37
        %v2107 = vand.u32 %v1954, 2147483648
        %v2108 = vor.u32 1.1754944e-38, %v2107
        %v2109 = vsel %vm2106, %v2108, %v2104
        %v2110 = vmul.f32 1.0, %v2109
        %v2111 = vrcp.pop %v1955
        %v2112 = vmul.f32 %v1955, %v2111
        %v2113 = vsub.f32 1.0, %v2112
        %v2114 = vmul.f32 %v2111, %v2113
        %v2115 = vadd.f32 %v2111, %v2114
        %vm2116 = vweird.f32 %v1955
        %vm2117 = vweird.f32 %v2111
        %vm2118 = vmor %vm2116, %vm2117
        %v2119 = vsel %vm2118, %v2111, %v2115
        %v2120 = vand.u32 2147483647, %v1955
        %vm2121 = vcmp.eq.f32.partialorder %v2120, 8.507059e+37
        %v2122 = vand.u32 %v1955, 2147483648
        %v2123 = vor.u32 1.1754944e-38, %v2122
        %v2124 = vsel %vm2121, %v2123, %v2119
        %v2125 = vmul.f32 1.0, %v2124
        %v2126 = vrcp.pop %v1956
        %v2127 = vmul.f32 %v1956, %v2126
        %v2128 = vsub.f32 1.0, %v2127
        %v2129 = vmul.f32 %v2126, %v2128
        %v2130 = vadd.f32 %v2126, %v2129
        %vm2131 = vweird.f32 %v1956
        %vm2132 = vweird.f32 %v2126
        %vm2133 = vmor %vm2131, %vm2132
        %v2134 = vsel %vm2133, %v2126, %v2130
        %v2135 = vand.u32 2147483647, %v1956
        %vm2136 = vcmp.eq.f32.partialorder %v2135, 8.507059e+37
        %v2137 = vand.u32 %v1956, 2147483648
        %v2138 = vor.u32 1.1754944e-38, %v2137
        %v2139 = vsel %vm2136, %v2138, %v2134
        %v2140 = vmul.f32 1.0, %v2139
        %v2141 = vrcp.pop %v1957
        %v2142 = vmul.f32 %v1957, %v2141
        %v2143 = vsub.f32 1.0, %v2142
        %v2144 = vmul.f32 %v2141, %v2143
        %v2145 = vadd.f32 %v2141, %v2144
        %vm2146 = vweird.f32 %v1957
        %vm2147 = vweird.f32 %v2141
        %vm2148 = vmor %vm2146, %vm2147
        %v2149 = vsel %vm2148, %v2141, %v2145
        %v2150 = vand.u32 2147483647, %v1957
        %vm2151 = vcmp.eq.f32.partialorder %v2150, 8.507059e+37
        %v2152 = vand.u32 %v1957, 2147483648
        %v2153 = vor.u32 1.1754944e-38, %v2152
        %v2154 = vsel %vm2151, %v2153, %v2149
        %v2155 = vmul.f32 1.0, %v2154
        %v2156 = vrcp.pop %v1958
        %v2157 = vmul.f32 %v1958, %v2156
        %v2158 = vsub.f32 1.0, %v2157
        %v2159 = vmul.f32 %v2156, %v2158
        %v2160 = vadd.f32 %v2156, %v2159
        %vm2161 = vweird.f32 %v1958
        %vm2162 = vweird.f32 %v2156
        %vm2163 = vmor %vm2161, %vm2162
        %v2164 = vsel %vm2163, %v2156, %v2160
        %v2165 = vand.u32 2147483647, %v1958
        %vm2166 = vcmp.eq.f32.partialorder %v2165, 8.507059e+37
        %v2167 = vand.u32 %v1958, 2147483648
        %v2168 = vor.u32 1.1754944e-38, %v2167
        %v2169 = vsel %vm2166, %v2168, %v2164
        %v2170 = vmul.f32 1.0, %v2169
        %v2171 = vrcp.pop %v1959
        %v2172 = vmul.f32 %v1959, %v2171
        %v2173 = vsub.f32 1.0, %v2172
        %v2174 = vmul.f32 %v2171, %v2173
        %v2175 = vadd.f32 %v2171, %v2174
        %vm2176 = vweird.f32 %v1959
        %vm2177 = vweird.f32 %v2171
        %vm2178 = vmor %vm2176, %vm2177
        %v2179 = vsel %vm2178, %v2171, %v2175
        %v2180 = vand.u32 2147483647, %v1959
        %vm2181 = vcmp.eq.f32.partialorder %v2180, 8.507059e+37
        %v2182 = vand.u32 %v1959, 2147483648
        %v2183 = vor.u32 1.1754944e-38, %v2182
        %v2184 = vsel %vm2181, %v2183, %v2179
        %v2185 = vmul.f32 1.0, %v2184
        %v2186 = vrcp.pop %v1960
        %v2187 = vmul.f32 %v1960, %v2186
        %v2188 = vsub.f32 1.0, %v2187
        %v2189 = vmul.f32 %v2186, %v2188
        %v2190 = vadd.f32 %v2186, %v2189
        %vm2191 = vweird.f32 %v1960
        %vm2192 = vweird.f32 %v2186
        %vm2193 = vmor %vm2191, %vm2192
        %v2194 = vsel %vm2193, %v2186, %v2190
        %v2195 = vand.u32 2147483647, %v1960
        %vm2196 = vcmp.eq.f32.partialorder %v2195, 8.507059e+37
        %v2197 = vand.u32 %v1960, 2147483648
        %v2198 = vor.u32 1.1754944e-38, %v2197
        %v2199 = vsel %vm2196, %v2198, %v2194
        %v2200 = vmul.f32 1.0, %v2199
        %v2201 = vrcp.pop %v1961
        %v2202 = vmul.f32 %v1961, %v2201
        %v2203 = vsub.f32 1.0, %v2202
        %v2204 = vmul.f32 %v2201, %v2203
        %v2205 = vadd.f32 %v2201, %v2204
        %vm2206 = vweird.f32 %v1961
        %vm2207 = vweird.f32 %v2201
        %vm2208 = vmor %vm2206, %vm2207
        %v2209 = vsel %vm2208, %v2201, %v2205
        %v2210 = vand.u32 2147483647, %v1961
        %vm2211 = vcmp.eq.f32.partialorder %v2210, 8.507059e+37
        %v2212 = vand.u32 %v1961, 2147483648
        %v2213 = vor.u32 1.1754944e-38, %v2212
        %v2214 = vsel %vm2211, %v2213, %v2209
        %v2215 = vmul.f32 1.0, %v2214
        %v2216 = vrcp.pop %v1962
        %v2217 = vmul.f32 %v1962, %v2216
        %v2218 = vsub.f32 1.0, %v2217
        %v2219 = vmul.f32 %v2216, %v2218
        %v2220 = vadd.f32 %v2216, %v2219
        %vm2221 = vweird.f32 %v1962
        %vm2222 = vweird.f32 %v2216
        %vm2223 = vmor %vm2221, %vm2222
        %v2224 = vsel %vm2223, %v2216, %v2220
        %v2225 = vand.u32 2147483647, %v1962
        %vm2226 = vcmp.eq.f32.partialorder %v2225, 8.507059e+37
        %v2227 = vand.u32 %v1962, 2147483648
        %v2228 = vor.u32 1.1754944e-38, %v2227
        %v2229 = vsel %vm2226, %v2228, %v2224
        %v2230 = vmul.f32 1.0, %v2229
        %v2231 = vrcp.pop %v1963
        %v2232 = vmul.f32 %v1963, %v2231
        %v2233 = vsub.f32 1.0, %v2232
        %v2234 = vmul.f32 %v2231, %v2233
        %v2235 = vadd.f32 %v2231, %v2234
        %vm2236 = vweird.f32 %v1963
        %vm2237 = vweird.f32 %v2231
        %vm2238 = vmor %vm2236, %vm2237
        %v2239 = vsel %vm2238, %v2231, %v2235
        %v2240 = vand.u32 2147483647, %v1963
        %vm2241 = vcmp.eq.f32.partialorder %v2240, 8.507059e+37
        %v2242 = vand.u32 %v1963, 2147483648
        %v2243 = vor.u32 1.1754944e-38, %v2242
        %v2244 = vsel %vm2241, %v2243, %v2239
        %v2245 = vmul.f32 1.0, %v2244
        %v2246 = vrcp.pop %v1964
        %v2247 = vmul.f32 %v1964, %v2246
        %v2248 = vsub.f32 1.0, %v2247
        %v2249 = vmul.f32 %v2246, %v2248
        %v2250 = vadd.f32 %v2246, %v2249
        %vm2251 = vweird.f32 %v1964
        %vm2252 = vweird.f32 %v2246
        %vm2253 = vmor %vm2251, %vm2252
        %v2254 = vsel %vm2253, %v2246, %v2250
        %v2255 = vand.u32 2147483647, %v1964
        %vm2256 = vcmp.eq.f32.partialorder %v2255, 8.507059e+37
        %v2257 = vand.u32 %v1964, 2147483648
        %v2258 = vor.u32 1.1754944e-38, %v2257
        %v2259 = vsel %vm2256, %v2258, %v2254
        %v2260 = vmul.f32 1.0, %v2259
        %v2261 = vrcp.pop %v1965
        %v2262 = vmul.f32 %v1965, %v2261
        %v2263 = vsub.f32 1.0, %v2262
        %v2264 = vmul.f32 %v2261, %v2263
        %v2265 = vadd.f32 %v2261, %v2264
        %vm2266 = vweird.f32 %v1965
        %vm2267 = vweird.f32 %v2261
        %vm2268 = vmor %vm2266, %vm2267
        %v2269 = vsel %vm2268, %v2261, %v2265
        %v2270 = vand.u32 2147483647, %v1965
        %vm2271 = vcmp.eq.f32.partialorder %v2270, 8.507059e+37
        %v2272 = vand.u32 %v1965, 2147483648
        %v2273 = vor.u32 1.1754944e-38, %v2272
        %v2274 = vsel %vm2271, %v2273, %v2269
        %v2275 = vmul.f32 1.0, %v2274
        %v2276 = vrcp.pop %v1966
        %v2277 = vmul.f32 %v1966, %v2276
        %v2278 = vsub.f32 1.0, %v2277
        %v2279 = vmul.f32 %v2276, %v2278
        %v2280 = vadd.f32 %v2276, %v2279
        %vm2281 = vweird.f32 %v1966
        %vm2282 = vweird.f32 %v2276
        %vm2283 = vmor %vm2281, %vm2282
        %v2284 = vsel %vm2283, %v2276, %v2280
        %v2285 = vand.u32 2147483647, %v1966
        %vm2286 = vcmp.eq.f32.partialorder %v2285, 8.507059e+37
        %v2287 = vand.u32 %v1966, 2147483648
        %v2288 = vor.u32 1.1754944e-38, %v2287
        %v2289 = vsel %vm2286, %v2288, %v2284
        %v2290 = vmul.f32 1.0, %v2289
        %v2291 = vrcp.pop %v1967
        %v2292 = vmul.f32 %v1967, %v2291
        %v2293 = vsub.f32 1.0, %v2292
        %v2294 = vmul.f32 %v2291, %v2293
        %v2295 = vadd.f32 %v2291, %v2294
        %vm2296 = vweird.f32 %v1967
        %vm2297 = vweird.f32 %v2291
        %vm2298 = vmor %vm2296, %vm2297
        %v2299 = vsel %vm2298, %v2291, %v2295
        %v2300 = vand.u32 2147483647, %v1967
        %vm2301 = vcmp.eq.f32.partialorder %v2300, 8.507059e+37
        %v2302 = vand.u32 %v1967, 2147483648
        %v2303 = vor.u32 1.1754944e-38, %v2302
        %v2304 = vsel %vm2301, %v2303, %v2299
        %v2305 = vmul.f32 1.0, %v2304
        %v2306 = vrcp.pop %v1968
        %v2307 = vmul.f32 %v1968, %v2306
        %v2308 = vsub.f32 1.0, %v2307
        %v2309 = vmul.f32 %v2306, %v2308
        %v2310 = vadd.f32 %v2306, %v2309
        %vm2311 = vweird.f32 %v1968
        %vm2312 = vweird.f32 %v2306
        %vm2313 = vmor %vm2311, %vm2312
        %v2314 = vsel %vm2313, %v2306, %v2310
        %v2315 = vand.u32 2147483647, %v1968
        %vm2316 = vcmp.eq.f32.partialorder %v2315, 8.507059e+37
        %v2317 = vand.u32 %v1968, 2147483648
        %v2318 = vor.u32 1.1754944e-38, %v2317
        %v2319 = vsel %vm2316, %v2318, %v2314
        %v2320 = vmul.f32 1.0, %v2319
        %v2321 = vrcp.pop %v1969
        %v2322 = vmul.f32 %v1969, %v2321
        %v2323 = vsub.f32 1.0, %v2322
        %v2324 = vmul.f32 %v2321, %v2323
        %v2325 = vadd.f32 %v2321, %v2324
        %vm2326 = vweird.f32 %v1969
        %vm2327 = vweird.f32 %v2321
        %vm2328 = vmor %vm2326, %vm2327
        %v2329 = vsel %vm2328, %v2321, %v2325
        %v2330 = vand.u32 2147483647, %v1969
        %vm2331 = vcmp.eq.f32.partialorder %v2330, 8.507059e+37
        %v2332 = vand.u32 %v1969, 2147483648
        %v2333 = vor.u32 1.1754944e-38, %v2332
        %v2334 = vsel %vm2331, %v2333, %v2329
        %v2335 = vmul.f32 1.0, %v2334
        %v2336 = vrcp.pop %v1970
        %v2337 = vmul.f32 %v1970, %v2336
        %v2338 = vsub.f32 1.0, %v2337
        %v2339 = vmul.f32 %v2336, %v2338
        %v2340 = vadd.f32 %v2336, %v2339
        %vm2341 = vweird.f32 %v1970
        %vm2342 = vweird.f32 %v2336
        %vm2343 = vmor %vm2341, %vm2342
        %v2344 = vsel %vm2343, %v2336, %v2340
        %v2345 = vand.u32 2147483647, %v1970
        %vm2346 = vcmp.eq.f32.partialorder %v2345, 8.507059e+37
        %v2347 = vand.u32 %v1970, 2147483648
        %v2348 = vor.u32 1.1754944e-38, %v2347
        %v2349 = vsel %vm2346, %v2348, %v2344
        %v2350 = vmul.f32 1.0, %v2349
        %v2351 = vrcp.pop %v1971
        %v2352 = vmul.f32 %v1971, %v2351
        %v2353 = vsub.f32 1.0, %v2352
        %v2354 = vmul.f32 %v2351, %v2353
        %v2355 = vadd.f32 %v2351, %v2354
        %vm2356 = vweird.f32 %v1971
        %vm2357 = vweird.f32 %v2351
        %vm2358 = vmor %vm2356, %vm2357
        %v2359 = vsel %vm2358, %v2351, %v2355
        %v2360 = vand.u32 2147483647, %v1971
        %vm2361 = vcmp.eq.f32.partialorder %v2360, 8.507059e+37
        %v2362 = vand.u32 %v1971, 2147483648
        %v2363 = vor.u32 1.1754944e-38, %v2362
        %v2364 = vsel %vm2361, %v2363, %v2359
        %v2365 = vmul.f32 1.0, %v2364
        %v2366 = vrcp.pop %v1972
        %v2367 = vmul.f32 %v1972, %v2366
        %v2368 = vsub.f32 1.0, %v2367
        %v2369 = vmul.f32 %v2366, %v2368
        %v2370 = vadd.f32 %v2366, %v2369
        %vm2371 = vweird.f32 %v1972
        %vm2372 = vweird.f32 %v2366
        %vm2373 = vmor %vm2371, %vm2372
        %v2374 = vsel %vm2373, %v2366, %v2370
        %v2375 = vand.u32 2147483647, %v1972
        %vm2376 = vcmp.eq.f32.partialorder %v2375, 8.507059e+37
        %v2377 = vand.u32 %v1972, 2147483648
        %v2378 = vor.u32 1.1754944e-38, %v2377
        %v2379 = vsel %vm2376, %v2378, %v2374
        %v2380 = vmul.f32 1.0, %v2379
        %v2381 = vrcp.pop %v1973
        %v2382 = vmul.f32 %v1973, %v2381
        %v2383 = vsub.f32 1.0, %v2382
        %v2384 = vmul.f32 %v2381, %v2383
        %v2385 = vadd.f32 %v2381, %v2384
        %vm2386 = vweird.f32 %v1973
        %vm2387 = vweird.f32 %v2381
        %vm2388 = vmor %vm2386, %vm2387
        %v2389 = vsel %vm2388, %v2381, %v2385
        %v2390 = vand.u32 2147483647, %v1973
        %vm2391 = vcmp.eq.f32.partialorder %v2390, 8.507059e+37
        %v2392 = vand.u32 %v1973, 2147483648
        %v2393 = vor.u32 1.1754944e-38, %v2392
        %v2394 = vsel %vm2391, %v2393, %v2389
        %v2395 = vmul.f32 1.0, %v2394
        %v2396 = vrcp.pop %v1974
        %v2397 = vmul.f32 %v1974, %v2396
        %v2398 = vsub.f32 1.0, %v2397
        %v2399 = vmul.f32 %v2396, %v2398
        %v2400 = vadd.f32 %v2396, %v2399
        %vm2401 = vweird.f32 %v1974
        %vm2402 = vweird.f32 %v2396
        %vm2403 = vmor %vm2401, %vm2402
        %v2404 = vsel %vm2403, %v2396, %v2400
        %v2405 = vand.u32 2147483647, %v1974
        %vm2406 = vcmp.eq.f32.partialorder %v2405, 8.507059e+37
        %v2407 = vand.u32 %v1974, 2147483648
        %v2408 = vor.u32 1.1754944e-38, %v2407
        %v2409 = vsel %vm2406, %v2408, %v2404
        %v2410 = vmul.f32 1.0, %v2409
        %v2411 = vrcp.pop %v1975
        %v2412 = vmul.f32 %v1975, %v2411
        %v2413 = vsub.f32 1.0, %v2412
        %v2414 = vmul.f32 %v2411, %v2413
        %v2415 = vadd.f32 %v2411, %v2414
        %vm2416 = vweird.f32 %v1975
        %vm2417 = vweird.f32 %v2411
        %vm2418 = vmor %vm2416, %vm2417
        %v2419 = vsel %vm2418, %v2411, %v2415
        %v2420 = vand.u32 2147483647, %v1975
        %vm2421 = vcmp.eq.f32.partialorder %v2420, 8.507059e+37
        %v2422 = vand.u32 %v1975, 2147483648
        %v2423 = vor.u32 1.1754944e-38, %v2422
        %v2424 = vsel %vm2421, %v2423, %v2419
        %v2425 = vmul.f32 1.0, %v2424
        %v2426 = vrcp.pop %v1976
        %v2427 = vmul.f32 %v1976, %v2426
        %v2428 = vsub.f32 1.0, %v2427
        %v2429 = vmul.f32 %v2426, %v2428
        %v2430 = vadd.f32 %v2426, %v2429
        %vm2431 = vweird.f32 %v1976
        %vm2432 = vweird.f32 %v2426
        %vm2433 = vmor %vm2431, %vm2432
        %v2434 = vsel %vm2433, %v2426, %v2430
        %v2435 = vand.u32 2147483647, %v1976
        %vm2436 = vcmp.eq.f32.partialorder %v2435, 8.507059e+37
        %v2437 = vand.u32 %v1976, 2147483648
        %v2438 = vor.u32 1.1754944e-38, %v2437
        %v2439 = vsel %vm2436, %v2438, %v2434
        %v2440 = vmul.f32 1.0, %v2439
        %v2441 = vrcp.pop %v1977
        %v2442 = vmul.f32 %v1977, %v2441
        %v2443 = vsub.f32 1.0, %v2442
        %v2444 = vmul.f32 %v2441, %v2443
        %v2445 = vadd.f32 %v2441, %v2444
        %vm2446 = vweird.f32 %v1977
        %vm2447 = vweird.f32 %v2441
        %vm2448 = vmor %vm2446, %vm2447
        %v2449 = vsel %vm2448, %v2441, %v2445
        %v2450 = vand.u32 2147483647, %v1977
        %vm2451 = vcmp.eq.f32.partialorder %v2450, 8.507059e+37
        %v2452 = vand.u32 %v1977, 2147483648
        %v2453 = vor.u32 1.1754944e-38, %v2452
        %v2454 = vsel %vm2451, %v2453, %v2449
        %v2455 = vmul.f32 1.0, %v2454
        %v2456 = vrcp.pop %v1978
        %v2457 = vmul.f32 %v1978, %v2456
        %v2458 = vsub.f32 1.0, %v2457
        %v2459 = vmul.f32 %v2456, %v2458
        %v2460 = vadd.f32 %v2456, %v2459
        %vm2461 = vweird.f32 %v1978
        %vm2462 = vweird.f32 %v2456
        %vm2463 = vmor %vm2461, %vm2462
        %v2464 = vsel %vm2463, %v2456, %v2460
        %v2465 = vand.u32 2147483647, %v1978
        %vm2466 = vcmp.eq.f32.partialorder %v2465, 8.507059e+37
        %v2467 = vand.u32 %v1978, 2147483648
        %v2468 = vor.u32 1.1754944e-38, %v2467
        %v2469 = vsel %vm2466, %v2468, %v2464
        %v2470 = vmul.f32 1.0, %v2469
        %v2471 = vrcp.pop %v1979
        %v2472 = vmul.f32 %v1979, %v2471
        %v2473 = vsub.f32 1.0, %v2472
        %v2474 = vmul.f32 %v2471, %v2473
        %v2475 = vadd.f32 %v2471, %v2474
        %vm2476 = vweird.f32 %v1979
        %vm2477 = vweird.f32 %v2471
        %vm2478 = vmor %vm2476, %vm2477
        %v2479 = vsel %vm2478, %v2471, %v2475
        %v2480 = vand.u32 2147483647, %v1979
        %vm2481 = vcmp.eq.f32.partialorder %v2480, 8.507059e+37
        %v2482 = vand.u32 %v1979, 2147483648
        %v2483 = vor.u32 1.1754944e-38, %v2482
        %v2484 = vsel %vm2481, %v2483, %v2479
        %v2485 = vmul.f32 1.0, %v2484
        %v2486 = vrcp.pop %v1980
        %v2487 = vmul.f32 %v1980, %v2486
        %v2488 = vsub.f32 1.0, %v2487
        %v2489 = vmul.f32 %v2486, %v2488
        %v2490 = vadd.f32 %v2486, %v2489
        %vm2491 = vweird.f32 %v1980
        %vm2492 = vweird.f32 %v2486
        %vm2493 = vmor %vm2491, %vm2492
        %v2494 = vsel %vm2493, %v2486, %v2490
        %v2495 = vand.u32 2147483647, %v1980
        %vm2496 = vcmp.eq.f32.partialorder %v2495, 8.507059e+37
        %v2497 = vand.u32 %v1980, 2147483648
        %v2498 = vor.u32 1.1754944e-38, %v2497
        %v2499 = vsel %vm2496, %v2498, %v2494
        %v2500 = vmul.f32 1.0, %v2499
        %v2501 = vrcp.pop %v1981
        %v2502 = vmul.f32 %v1981, %v2501
        %v2503 = vsub.f32 1.0, %v2502
        %v2504 = vmul.f32 %v2501, %v2503
        %v2505 = vadd.f32 %v2501, %v2504
        %vm2506 = vweird.f32 %v1981
        %vm2507 = vweird.f32 %v2501
        %vm2508 = vmor %vm2506, %vm2507
        %v2509 = vsel %vm2508, %v2501, %v2505
        %v2510 = vand.u32 2147483647, %v1981
        %vm2511 = vcmp.eq.f32.partialorder %v2510, 8.507059e+37
        %v2512 = vand.u32 %v1981, 2147483648
        %v2513 = vor.u32 1.1754944e-38, %v2512
        %v2514 = vsel %vm2511, %v2513, %v2509
        %v2515 = vmul.f32 1.0, %v2514
        %v2516 = vrcp.pop %v1982
        %v2517 = vmul.f32 %v1982, %v2516
        %v2518 = vsub.f32 1.0, %v2517
        %v2519 = vmul.f32 %v2516, %v2518
        %v2520 = vadd.f32 %v2516, %v2519
        %vm2521 = vweird.f32 %v1982
        %vm2522 = vweird.f32 %v2516
        %vm2523 = vmor %vm2521, %vm2522
        %v2524 = vsel %vm2523, %v2516, %v2520
        %v2525 = vand.u32 2147483647, %v1982
        %vm2526 = vcmp.eq.f32.partialorder %v2525, 8.507059e+37
        %v2527 = vand.u32 %v1982, 2147483648
        %v2528 = vor.u32 1.1754944e-38, %v2527
        %v2529 = vsel %vm2526, %v2528, %v2524
        %v2530 = vmul.f32 1.0, %v2529
        %v2531 = vrcp.pop %v1983
        %v2532 = vmul.f32 %v1983, %v2531
        %v2533 = vsub.f32 1.0, %v2532
        %v2534 = vmul.f32 %v2531, %v2533
        %v2535 = vadd.f32 %v2531, %v2534
        %vm2536 = vweird.f32 %v1983
        %vm2537 = vweird.f32 %v2531
        %vm2538 = vmor %vm2536, %vm2537
        %v2539 = vsel %vm2538, %v2531, %v2535
        %v2540 = vand.u32 2147483647, %v1983
        %vm2541 = vcmp.eq.f32.partialorder %v2540, 8.507059e+37
        %v2542 = vand.u32 %v1983, 2147483648
        %v2543 = vor.u32 1.1754944e-38, %v2542
        %v2544 = vsel %vm2541, %v2543, %v2539
        %v2545 = vmul.f32 1.0, %v2544
        %v2546 = vrcp.pop %v1984
        %v2547 = vmul.f32 %v1984, %v2546
        %v2548 = vsub.f32 1.0, %v2547
        %v2549 = vmul.f32 %v2546, %v2548
        %v2550 = vadd.f32 %v2546, %v2549
        %vm2551 = vweird.f32 %v1984
        %vm2552 = vweird.f32 %v2546
        %vm2553 = vmor %vm2551, %vm2552
        %v2554 = vsel %vm2553, %v2546, %v2550
        %v2555 = vand.u32 2147483647, %v1984
        %vm2556 = vcmp.eq.f32.partialorder %v2555, 8.507059e+37
        %v2557 = vand.u32 %v1984, 2147483648
        %v2558 = vor.u32 1.1754944e-38, %v2557
        %v2559 = vsel %vm2556, %v2558, %v2554
        %v2560 = vmul.f32 1.0, %v2559
        %v2561 = vrcp.pop %v1985
        %v2562 = vmul.f32 %v1985, %v2561
        %v2563 = vsub.f32 1.0, %v2562
        %v2564 = vmul.f32 %v2561, %v2563
        %v2565 = vadd.f32 %v2561, %v2564
        %vm2566 = vweird.f32 %v1985
        %vm2567 = vweird.f32 %v2561
        %vm2568 = vmor %vm2566, %vm2567
        %v2569 = vsel %vm2568, %v2561, %v2565
        %v2570 = vand.u32 2147483647, %v1985
        %vm2571 = vcmp.eq.f32.partialorder %v2570, 8.507059e+37
        %v2572 = vand.u32 %v1985, 2147483648
        %v2573 = vor.u32 1.1754944e-38, %v2572
        %v2574 = vsel %vm2571, %v2573, %v2569
        %v2575 = vmul.f32 1.0, %v2574
        %v2576 = vrcp.pop %v1986
        %v2577 = vmul.f32 %v1986, %v2576
        %v2578 = vsub.f32 1.0, %v2577
        %v2579 = vmul.f32 %v2576, %v2578
        %v2580 = vadd.f32 %v2576, %v2579
        %vm2581 = vweird.f32 %v1986
        %vm2582 = vweird.f32 %v2576
        %vm2583 = vmor %vm2581, %vm2582
        %v2584 = vsel %vm2583, %v2576, %v2580
        %v2585 = vand.u32 2147483647, %v1986
        %vm2586 = vcmp.eq.f32.partialorder %v2585, 8.507059e+37
        %v2587 = vand.u32 %v1986, 2147483648
        %v2588 = vor.u32 1.1754944e-38, %v2587
        %v2589 = vsel %vm2586, %v2588, %v2584
        %v2590 = vmul.f32 1.0, %v2589
        %v2591 = vrcp.pop %v1987
        %v2592 = vmul.f32 %v1987, %v2591
        %v2593 = vsub.f32 1.0, %v2592
        %v2594 = vmul.f32 %v2591, %v2593
        %v2595 = vadd.f32 %v2591, %v2594
        %vm2596 = vweird.f32 %v1987
        %vm2597 = vweird.f32 %v2591
        %vm2598 = vmor %vm2596, %vm2597
        %v2599 = vsel %vm2598, %v2591, %v2595
        %v2600 = vand.u32 2147483647, %v1987
        %vm2601 = vcmp.eq.f32.partialorder %v2600, 8.507059e+37
        %v2602 = vand.u32 %v1987, 2147483648
        %v2603 = vor.u32 1.1754944e-38, %v2602
        %v2604 = vsel %vm2601, %v2603, %v2599
        %v2605 = vmul.f32 1.0, %v2604
        %v2606 = vrcp.pop %v1988
        %v2607 = vmul.f32 %v1988, %v2606
        %v2608 = vsub.f32 1.0, %v2607
        %v2609 = vmul.f32 %v2606, %v2608
        %v2610 = vadd.f32 %v2606, %v2609
        %vm2611 = vweird.f32 %v1988
        %vm2612 = vweird.f32 %v2606
        %vm2613 = vmor %vm2611, %vm2612
        %v2614 = vsel %vm2613, %v2606, %v2610
        %v2615 = vand.u32 2147483647, %v1988
        %vm2616 = vcmp.eq.f32.partialorder %v2615, 8.507059e+37
        %v2617 = vand.u32 %v1988, 2147483648
        %v2618 = vor.u32 1.1754944e-38, %v2617
        %v2619 = vsel %vm2616, %v2618, %v2614
        %v2620 = vmul.f32 1.0, %v2619
        %v2621 = vrcp.pop %v1989
        %v2622 = vmul.f32 %v1989, %v2621
        %v2623 = vsub.f32 1.0, %v2622
        %v2624 = vmul.f32 %v2621, %v2623
        %v2625 = vadd.f32 %v2621, %v2624
        %vm2626 = vweird.f32 %v1989
        %vm2627 = vweird.f32 %v2621
        %vm2628 = vmor %vm2626, %vm2627
        %v2629 = vsel %vm2628, %v2621, %v2625
        %v2630 = vand.u32 2147483647, %v1989
        %vm2631 = vcmp.eq.f32.partialorder %v2630, 8.507059e+37
        %v2632 = vand.u32 %v1989, 2147483648
        %v2633 = vor.u32 1.1754944e-38, %v2632
        %v2634 = vsel %vm2631, %v2633, %v2629
        %v2635 = vmul.f32 1.0, %v2634
        %v2636 = vrcp.pop %v1990
        %v2637 = vmul.f32 %v1990, %v2636
        %v2638 = vsub.f32 1.0, %v2637
        %v2639 = vmul.f32 %v2636, %v2638
        %v2640 = vadd.f32 %v2636, %v2639
        %vm2641 = vweird.f32 %v1990
        %vm2642 = vweird.f32 %v2636
        %vm2643 = vmor %vm2641, %vm2642
        %v2644 = vsel %vm2643, %v2636, %v2640
        %v2645 = vand.u32 2147483647, %v1990
        %vm2646 = vcmp.eq.f32.partialorder %v2645, 8.507059e+37
        %v2647 = vand.u32 %v1990, 2147483648
        %v2648 = vor.u32 1.1754944e-38, %v2647
        %v2649 = vsel %vm2646, %v2648, %v2644
        %v2650 = vmul.f32 1.0, %v2649
        %v2651 = vrcp.pop %v1991
        %v2652 = vmul.f32 %v1991, %v2651
        %v2653 = vsub.f32 1.0, %v2652
        %v2654 = vmul.f32 %v2651, %v2653
        %v2655 = vadd.f32 %v2651, %v2654
        %vm2656 = vweird.f32 %v1991
        %vm2657 = vweird.f32 %v2651
        %vm2658 = vmor %vm2656, %vm2657
        %v2659 = vsel %vm2658, %v2651, %v2655
        %v2660 = vand.u32 2147483647, %v1991
        %vm2661 = vcmp.eq.f32.partialorder %v2660, 8.507059e+37
        %v2662 = vand.u32 %v1991, 2147483648
        %v2663 = vor.u32 1.1754944e-38, %v2662
        %v2664 = vsel %vm2661, %v2663, %v2659
        %v2665 = vmul.f32 1.0, %v2664
        %v2666 = vrcp.pop %v1992
        %v2667 = vmul.f32 %v1992, %v2666
        %v2668 = vsub.f32 1.0, %v2667
        %v2669 = vmul.f32 %v2666, %v2668
        %v2670 = vadd.f32 %v2666, %v2669
        %vm2671 = vweird.f32 %v1992
        %vm2672 = vweird.f32 %v2666
        %vm2673 = vmor %vm2671, %vm2672
        %v2674 = vsel %vm2673, %v2666, %v2670
        %v2675 = vand.u32 2147483647, %v1992
        %vm2676 = vcmp.eq.f32.partialorder %v2675, 8.507059e+37
        %v2677 = vand.u32 %v1992, 2147483648
        %v2678 = vor.u32 1.1754944e-38, %v2677
        %v2679 = vsel %vm2676, %v2678, %v2674
        %v2680 = vmul.f32 1.0, %v2679
        %v2681 = vrcp.pop %v1993
        %v2682 = vmul.f32 %v1993, %v2681
        %v2683 = vsub.f32 1.0, %v2682
        %v2684 = vmul.f32 %v2681, %v2683
        %v2685 = vadd.f32 %v2681, %v2684
        %vm2686 = vweird.f32 %v1993
        %vm2687 = vweird.f32 %v2681
        %vm2688 = vmor %vm2686, %vm2687
        %v2689 = vsel %vm2688, %v2681, %v2685
        %v2690 = vand.u32 2147483647, %v1993
        %vm2691 = vcmp.eq.f32.partialorder %v2690, 8.507059e+37
        %v2692 = vand.u32 %v1993, 2147483648
        %v2693 = vor.u32 1.1754944e-38, %v2692
        %v2694 = vsel %vm2691, %v2693, %v2689
        %v2695 = vmul.f32 1.0, %v2694
        %v2696 = vrcp.pop %v1994
        %v2697 = vmul.f32 %v1994, %v2696
        %v2698 = vsub.f32 1.0, %v2697
        %v2699 = vmul.f32 %v2696, %v2698
        %v2700 = vadd.f32 %v2696, %v2699
        %vm2701 = vweird.f32 %v1994
        %vm2702 = vweird.f32 %v2696
        %vm2703 = vmor %vm2701, %vm2702
        %v2704 = vsel %vm2703, %v2696, %v2700
        %v2705 = vand.u32 2147483647, %v1994
        %vm2706 = vcmp.eq.f32.partialorder %v2705, 8.507059e+37
        %v2707 = vand.u32 %v1994, 2147483648
        %v2708 = vor.u32 1.1754944e-38, %v2707
        %v2709 = vsel %vm2706, %v2708, %v2704
        %v2710 = vmul.f32 1.0, %v2709
        %v2711 = vrcp.pop %v1995
        %v2712 = vmul.f32 %v1995, %v2711
        %v2713 = vsub.f32 1.0, %v2712
        %v2714 = vmul.f32 %v2711, %v2713
        %v2715 = vadd.f32 %v2711, %v2714
        %vm2716 = vweird.f32 %v1995
        %vm2717 = vweird.f32 %v2711
        %vm2718 = vmor %vm2716, %vm2717
        %v2719 = vsel %vm2718, %v2711, %v2715
        %v2720 = vand.u32 2147483647, %v1995
        %vm2721 = vcmp.eq.f32.partialorder %v2720, 8.507059e+37
        %v2722 = vand.u32 %v1995, 2147483648
        %v2723 = vor.u32 1.1754944e-38, %v2722
        %v2724 = vsel %vm2721, %v2723, %v2719
        %v2725 = vmul.f32 1.0, %v2724
        %v2726 = vrcp.pop %v1996
        %v2727 = vmul.f32 %v1996, %v2726
        %v2728 = vsub.f32 1.0, %v2727
        %v2729 = vmul.f32 %v2726, %v2728
        %v2730 = vadd.f32 %v2726, %v2729
        %vm2731 = vweird.f32 %v1996
        %vm2732 = vweird.f32 %v2726
        %vm2733 = vmor %vm2731, %vm2732
        %v2734 = vsel %vm2733, %v2726, %v2730
        %v2735 = vand.u32 2147483647, %v1996
        %vm2736 = vcmp.eq.f32.partialorder %v2735, 8.507059e+37
        %v2737 = vand.u32 %v1996, 2147483648
        %v2738 = vor.u32 1.1754944e-38, %v2737
        %v2739 = vsel %vm2736, %v2738, %v2734
        %v2740 = vmul.f32 1.0, %v2739
        %v2741 = vrcp.pop %v1997
        %v2742 = vmul.f32 %v1997, %v2741
        %v2743 = vsub.f32 1.0, %v2742
        %v2744 = vmul.f32 %v2741, %v2743
        %v2745 = vadd.f32 %v2741, %v2744
        %vm2746 = vweird.f32 %v1997
        %vm2747 = vweird.f32 %v2741
        %vm2748 = vmor %vm2746, %vm2747
        %v2749 = vsel %vm2748, %v2741, %v2745
        %v2750 = vand.u32 2147483647, %v1997
        %vm2751 = vcmp.eq.f32.partialorder %v2750, 8.507059e+37
        %v2752 = vand.u32 %v1997, 2147483648
        %v2753 = vor.u32 1.1754944e-38, %v2752
        %v2754 = vsel %vm2751, %v2753, %v2749
        %v2755 = vmul.f32 1.0, %v2754
        %v2756 = vrcp.pop %v1998
        %v2757 = vmul.f32 %v1998, %v2756
        %v2758 = vsub.f32 1.0, %v2757
        %v2759 = vmul.f32 %v2756, %v2758
        %v2760 = vadd.f32 %v2756, %v2759
        %vm2761 = vweird.f32 %v1998
        %vm2762 = vweird.f32 %v2756
        %vm2763 = vmor %vm2761, %vm2762
        %v2764 = vsel %vm2763, %v2756, %v2760
        %v2765 = vand.u32 2147483647, %v1998
        %vm2766 = vcmp.eq.f32.partialorder %v2765, 8.507059e+37
        %v2767 = vand.u32 %v1998, 2147483648
        %v2768 = vor.u32 1.1754944e-38, %v2767
        %v2769 = vsel %vm2766, %v2768, %v2764
        %v2770 = vmul.f32 1.0, %v2769
        %v2771 = vrcp.pop %v1999
        %v2772 = vmul.f32 %v1999, %v2771
        %v2773 = vsub.f32 1.0, %v2772
        %v2774 = vmul.f32 %v2771, %v2773
        %v2775 = vadd.f32 %v2771, %v2774
        %vm2776 = vweird.f32 %v1999
        %vm2777 = vweird.f32 %v2771
        %vm2778 = vmor %vm2776, %vm2777
        %v2779 = vsel %vm2778, %v2771, %v2775
        %v2780 = vand.u32 2147483647, %v1999
        %vm2781 = vcmp.eq.f32.partialorder %v2780, 8.507059e+37
        %v2782 = vand.u32 %v1999, 2147483648
        %v2783 = vor.u32 1.1754944e-38, %v2782
        %v2784 = vsel %vm2781, %v2783, %v2779
        %v2785 = vmul.f32 1.0, %v2784
        %v2786 = vrcp.pop %v2000
        %v2787 = vmul.f32 %v2000, %v2786
        %v2788 = vsub.f32 1.0, %v2787
        %v2789 = vmul.f32 %v2786, %v2788
        %v2790 = vadd.f32 %v2786, %v2789
        %vm2791 = vweird.f32 %v2000
        %vm2792 = vweird.f32 %v2786
        %vm2793 = vmor %vm2791, %vm2792
        %v2794 = vsel %vm2793, %v2786, %v2790
        %v2795 = vand.u32 2147483647, %v2000
        %vm2796 = vcmp.eq.f32.partialorder %v2795, 8.507059e+37
        %v2797 = vand.u32 %v2000, 2147483648
        %v2798 = vor.u32 1.1754944e-38, %v2797
        %v2799 = vsel %vm2796, %v2798, %v2794
        %v2800 = vmul.f32 1.0, %v2799
        %v2801 = vrcp.pop %v2001
        %v2802 = vmul.f32 %v2001, %v2801
        %v2803 = vsub.f32 1.0, %v2802
        %v2804 = vmul.f32 %v2801, %v2803
        %v2805 = vadd.f32 %v2801, %v2804
        %vm2806 = vweird.f32 %v2001
        %vm2807 = vweird.f32 %v2801
        %vm2808 = vmor %vm2806, %vm2807
        %v2809 = vsel %vm2808, %v2801, %v2805
        %v2810 = vand.u32 2147483647, %v2001
        %vm2811 = vcmp.eq.f32.partialorder %v2810, 8.507059e+37
        %v2812 = vand.u32 %v2001, 2147483648
        %v2813 = vor.u32 1.1754944e-38, %v2812
        %v2814 = vsel %vm2811, %v2813, %v2809
        %v2815 = vmul.f32 1.0, %v2814
        %v2816 = vrcp.pop %v2002
        %v2817 = vmul.f32 %v2002, %v2816
        %v2818 = vsub.f32 1.0, %v2817
        %v2819 = vmul.f32 %v2816, %v2818
        %v2820 = vadd.f32 %v2816, %v2819
        %vm2821 = vweird.f32 %v2002
        %vm2822 = vweird.f32 %v2816
        %vm2823 = vmor %vm2821, %vm2822
        %v2824 = vsel %vm2823, %v2816, %v2820
        %v2825 = vand.u32 2147483647, %v2002
        %vm2826 = vcmp.eq.f32.partialorder %v2825, 8.507059e+37
        %v2827 = vand.u32 %v2002, 2147483648
        %v2828 = vor.u32 1.1754944e-38, %v2827
        %v2829 = vsel %vm2826, %v2828, %v2824
        %v2830 = vmul.f32 1.0, %v2829
        %v2831 = vrcp.pop %v2003
        %v2832 = vmul.f32 %v2003, %v2831
        %v2833 = vsub.f32 1.0, %v2832
        %v2834 = vmul.f32 %v2831, %v2833
        %v2835 = vadd.f32 %v2831, %v2834
        %vm2836 = vweird.f32 %v2003
        %vm2837 = vweird.f32 %v2831
        %vm2838 = vmor %vm2836, %vm2837
        %v2839 = vsel %vm2838, %v2831, %v2835
        %v2840 = vand.u32 2147483647, %v2003
        %vm2841 = vcmp.eq.f32.partialorder %v2840, 8.507059e+37
        %v2842 = vand.u32 %v2003, 2147483648
        %v2843 = vor.u32 1.1754944e-38, %v2842
        %v2844 = vsel %vm2841, %v2843, %v2839
        %v2845 = vmul.f32 1.0, %v2844
        %v2846 = vrcp.pop %v2004
        %v2847 = vmul.f32 %v2004, %v2846
        %v2848 = vsub.f32 1.0, %v2847
        %v2849 = vmul.f32 %v2846, %v2848
        %v2850 = vadd.f32 %v2846, %v2849
        %vm2851 = vweird.f32 %v2004
        %vm2852 = vweird.f32 %v2846
        %vm2853 = vmor %vm2851, %vm2852
        %v2854 = vsel %vm2853, %v2846, %v2850
        %v2855 = vand.u32 2147483647, %v2004
        %vm2856 = vcmp.eq.f32.partialorder %v2855, 8.507059e+37
        %v2857 = vand.u32 %v2004, 2147483648
        %v2858 = vor.u32 1.1754944e-38, %v2857
        %v2859 = vsel %vm2856, %v2858, %v2854
        %v2860 = vmul.f32 1.0, %v2859
        %v2861 = vrcp.pop %v2005
        %v2862 = vmul.f32 %v2005, %v2861
        %v2863 = vsub.f32 1.0, %v2862
        %v2864 = vmul.f32 %v2861, %v2863
        %v2865 = vadd.f32 %v2861, %v2864
        %vm2866 = vweird.f32 %v2005
        %vm2867 = vweird.f32 %v2861
        %vm2868 = vmor %vm2866, %vm2867
        %v2869 = vsel %vm2868, %v2861, %v2865
        %v2870 = vand.u32 2147483647, %v2005
        %vm2871 = vcmp.eq.f32.partialorder %v2870, 8.507059e+37
        %v2872 = vand.u32 %v2005, 2147483648
        %v2873 = vor.u32 1.1754944e-38, %v2872
        %v2874 = vsel %vm2871, %v2873, %v2869
        %v2875 = vmul.f32 1.0, %v2874
        %v2876 = vrcp.pop %v2006
        %v2877 = vmul.f32 %v2006, %v2876
        %v2878 = vsub.f32 1.0, %v2877
        %v2879 = vmul.f32 %v2876, %v2878
        %v2880 = vadd.f32 %v2876, %v2879
        %vm2881 = vweird.f32 %v2006
        %vm2882 = vweird.f32 %v2876
        %vm2883 = vmor %vm2881, %vm2882
        %v2884 = vsel %vm2883, %v2876, %v2880
        %v2885 = vand.u32 2147483647, %v2006
        %vm2886 = vcmp.eq.f32.partialorder %v2885, 8.507059e+37
        %v2887 = vand.u32 %v2006, 2147483648
        %v2888 = vor.u32 1.1754944e-38, %v2887
        %v2889 = vsel %vm2886, %v2888, %v2884
        %v2890 = vmul.f32 1.0, %v2889
        %v2891 = vrcp.pop %v2007
        %v2892 = vmul.f32 %v2007, %v2891
        %v2893 = vsub.f32 1.0, %v2892
        %v2894 = vmul.f32 %v2891, %v2893
        %v2895 = vadd.f32 %v2891, %v2894
        %vm2896 = vweird.f32 %v2007
        %vm2897 = vweird.f32 %v2891
        %vm2898 = vmor %vm2896, %vm2897
        %v2899 = vsel %vm2898, %v2891, %v2895
        %v2900 = vand.u32 2147483647, %v2007
        %vm2901 = vcmp.eq.f32.partialorder %v2900, 8.507059e+37
        %v2902 = vand.u32 %v2007, 2147483648
        %v2903 = vor.u32 1.1754944e-38, %v2902
        %v2904 = vsel %vm2901, %v2903, %v2899
        %v2905 = vmul.f32 1.0, %v2904
        %v2906 = vrcp.pop %v2008
        %v2907 = vmul.f32 %v2008, %v2906
        %v2908 = vsub.f32 1.0, %v2907
        %v2909 = vmul.f32 %v2906, %v2908
        %v2910 = vadd.f32 %v2906, %v2909
        %vm2911 = vweird.f32 %v2008
        %vm2912 = vweird.f32 %v2906
        %vm2913 = vmor %vm2911, %vm2912
        %v2914 = vsel %vm2913, %v2906, %v2910
        %v2915 = vand.u32 2147483647, %v2008
        %vm2916 = vcmp.eq.f32.partialorder %v2915, 8.507059e+37
        %v2917 = vand.u32 %v2008, 2147483648
        %v2918 = vor.u32 1.1754944e-38, %v2917
        %v2919 = vsel %vm2916, %v2918, %v2914
        %v2920 = vmul.f32 1.0, %v2919
        %v2921 = vrcp.pop %v2009
        %v2922 = vmul.f32 %v2009, %v2921
        %v2923 = vsub.f32 1.0, %v2922
        %v2924 = vmul.f32 %v2921, %v2923
        %v2925 = vadd.f32 %v2921, %v2924
        %vm2926 = vweird.f32 %v2009
        %vm2927 = vweird.f32 %v2921
        %vm2928 = vmor %vm2926, %vm2927
        %v2929 = vsel %vm2928, %v2921, %v2925
        %v2930 = vand.u32 2147483647, %v2009
        %vm2931 = vcmp.eq.f32.partialorder %v2930, 8.507059e+37
        %v2932 = vand.u32 %v2009, 2147483648
        %v2933 = vor.u32 1.1754944e-38, %v2932
        %v2934 = vsel %vm2931, %v2933, %v2929
        %v2935 = vmul.f32 1.0, %v2934
        %v2936 = vrcp.pop %v2010
        %v2937 = vmul.f32 %v2010, %v2936
        %v2938 = vsub.f32 1.0, %v2937
        %v2939 = vmul.f32 %v2936, %v2938
        %v2940 = vadd.f32 %v2936, %v2939
        %vm2941 = vweird.f32 %v2010
        %vm2942 = vweird.f32 %v2936
        %vm2943 = vmor %vm2941, %vm2942
        %v2944 = vsel %vm2943, %v2936, %v2940
        %v2945 = vand.u32 2147483647, %v2010
        %vm2946 = vcmp.eq.f32.partialorder %v2945, 8.507059e+37
        %v2947 = vand.u32 %v2010, 2147483648
        %v2948 = vor.u32 1.1754944e-38, %v2947
        %v2949 = vsel %vm2946, %v2948, %v2944
        %v2950 = vmul.f32 1.0, %v2949
        %v2951 = vrcp.pop %v2011
        %v2952 = vmul.f32 %v2011, %v2951
        %v2953 = vsub.f32 1.0, %v2952
        %v2954 = vmul.f32 %v2951, %v2953
        %v2955 = vadd.f32 %v2951, %v2954
        %vm2956 = vweird.f32 %v2011
        %vm2957 = vweird.f32 %v2951
        %vm2958 = vmor %vm2956, %vm2957
        %v2959 = vsel %vm2958, %v2951, %v2955
        %v2960 = vand.u32 2147483647, %v2011
        %vm2961 = vcmp.eq.f32.partialorder %v2960, 8.507059e+37
        %v2962 = vand.u32 %v2011, 2147483648
        %v2963 = vor.u32 1.1754944e-38, %v2962
        %v2964 = vsel %vm2961, %v2963, %v2959
        %v2965 = vmul.f32 1.0, %v2964
        %v2966 = vrcp.pop %v2012
        %v2967 = vmul.f32 %v2012, %v2966
        %v2968 = vsub.f32 1.0, %v2967
        %v2969 = vmul.f32 %v2966, %v2968
        %v2970 = vadd.f32 %v2966, %v2969
        %vm2971 = vweird.f32 %v2012
        %vm2972 = vweird.f32 %v2966
        %vm2973 = vmor %vm2971, %vm2972
        %v2974 = vsel %vm2973, %v2966, %v2970
        %v2975 = vand.u32 2147483647, %v2012
        %vm2976 = vcmp.eq.f32.partialorder %v2975, 8.507059e+37
        %v2977 = vand.u32 %v2012, 2147483648
        %v2978 = vor.u32 1.1754944e-38, %v2977
        %v2979 = vsel %vm2976, %v2978, %v2974
        %v2980 = vmul.f32 1.0, %v2979
        %v2981 = vrcp.pop %v2013
        %v2982 = vmul.f32 %v2013, %v2981
        %v2983 = vsub.f32 1.0, %v2982
        %v2984 = vmul.f32 %v2981, %v2983
        %v2985 = vadd.f32 %v2981, %v2984
        %vm2986 = vweird.f32 %v2013
        %vm2987 = vweird.f32 %v2981
        %vm2988 = vmor %vm2986, %vm2987
        %v2989 = vsel %vm2988, %v2981, %v2985
        %v2990 = vand.u32 2147483647, %v2013
        %vm2991 = vcmp.eq.f32.partialorder %v2990, 8.507059e+37
        %v2992 = vand.u32 %v2013, 2147483648
        %v2993 = vor.u32 1.1754944e-38, %v2992
        %v2994 = vsel %vm2991, %v2993, %v2989
        %v2995 = vmul.f32 1.0, %v2994
        %v2996 = vrcp.pop %v2014
        %v2997 = vmul.f32 %v2014, %v2996
        %v2998 = vsub.f32 1.0, %v2997
        %v2999 = vmul.f32 %v2996, %v2998
        %v3000 = vadd.f32 %v2996, %v2999
        %vm3001 = vweird.f32 %v2014
        %vm3002 = vweird.f32 %v2996
        %vm3003 = vmor %vm3001, %vm3002
        %v3004 = vsel %vm3003, %v2996, %v3000
        %v3005 = vand.u32 2147483647, %v2014
        %vm3006 = vcmp.eq.f32.partialorder %v3005, 8.507059e+37
        %v3007 = vand.u32 %v2014, 2147483648
        %v3008 = vor.u32 1.1754944e-38, %v3007
        %v3009 = vsel %vm3006, %v3008, %v3004
        %v3010 = vmul.f32 1.0, %v3009
        %v3011 = vrcp.pop %v2015
        %v3012 = vmul.f32 %v2015, %v3011
        %v3013 = vsub.f32 1.0, %v3012
        %v3014 = vmul.f32 %v3011, %v3013
        %v3015 = vadd.f32 %v3011, %v3014
        %vm3016 = vweird.f32 %v2015
        %vm3017 = vweird.f32 %v3011
        %vm3018 = vmor %vm3016, %vm3017
        %v3019 = vsel %vm3018, %v3011, %v3015
        %v3020 = vand.u32 2147483647, %v2015
        %vm3021 = vcmp.eq.f32.partialorder %v3020, 8.507059e+37
        %v3022 = vand.u32 %v2015, 2147483648
        %v3023 = vor.u32 1.1754944e-38, %v3022
        %v3024 = vsel %vm3021, %v3023, %v3019
        %v3025 = vmul.f32 1.0, %v3024
        %v3026 = vrcp.pop %v2016
        %v3027 = vmul.f32 %v2016, %v3026
        %v3028 = vsub.f32 1.0, %v3027
        %v3029 = vmul.f32 %v3026, %v3028
        %v3030 = vadd.f32 %v3026, %v3029
        %vm3031 = vweird.f32 %v2016
        %vm3032 = vweird.f32 %v3026
        %vm3033 = vmor %vm3031, %vm3032
        %v3034 = vsel %vm3033, %v3026, %v3030
        %v3035 = vand.u32 2147483647, %v2016
        %vm3036 = vcmp.eq.f32.partialorder %v3035, 8.507059e+37
        %v3037 = vand.u32 %v2016, 2147483648
        %v3038 = vor.u32 1.1754944e-38, %v3037
        %v3039 = vsel %vm3036, %v3038, %v3034
        %v3040 = vmul.f32 1.0, %v3039
        %v3041 = vrcp.pop %v2017
        %v3042 = vmul.f32 %v2017, %v3041
        %v3043 = vsub.f32 1.0, %v3042
        %v3044 = vmul.f32 %v3041, %v3043
        %v3045 = vadd.f32 %v3041, %v3044
        %vm3046 = vweird.f32 %v2017
        %vm3047 = vweird.f32 %v3041
        %vm3048 = vmor %vm3046, %vm3047
        %v3049 = vsel %vm3048, %v3041, %v3045
        %v3050 = vand.u32 2147483647, %v2017
        %vm3051 = vcmp.eq.f32.partialorder %v3050, 8.507059e+37
        %v3052 = vand.u32 %v2017, 2147483648
        %v3053 = vor.u32 1.1754944e-38, %v3052
        %v3054 = vsel %vm3051, %v3053, %v3049
        %v3055 = vmul.f32 1.0, %v3054
        %v3056 = vrcp.pop %v2018
        %v3057 = vmul.f32 %v2018, %v3056
        %v3058 = vsub.f32 1.0, %v3057
        %v3059 = vmul.f32 %v3056, %v3058
        %v3060 = vadd.f32 %v3056, %v3059
        %vm3061 = vweird.f32 %v2018
        %vm3062 = vweird.f32 %v3056
        %vm3063 = vmor %vm3061, %vm3062
        %v3064 = vsel %vm3063, %v3056, %v3060
        %v3065 = vand.u32 2147483647, %v2018
        %vm3066 = vcmp.eq.f32.partialorder %v3065, 8.507059e+37
        %v3067 = vand.u32 %v2018, 2147483648
        %v3068 = vor.u32 1.1754944e-38, %v3067
        %v3069 = vsel %vm3066, %v3068, %v3064
        %v3070 = vmul.f32 1.0, %v3069
        %v3071 = vrcp.pop %v2019
        %v3072 = vmul.f32 %v2019, %v3071
        %v3073 = vsub.f32 1.0, %v3072
        %v3074 = vmul.f32 %v3071, %v3073
        %v3075 = vadd.f32 %v3071, %v3074
        %vm3076 = vweird.f32 %v2019
        %vm3077 = vweird.f32 %v3071
        %vm3078 = vmor %vm3076, %vm3077
        %v3079 = vsel %vm3078, %v3071, %v3075
        %v3080 = vand.u32 2147483647, %v2019
        %vm3081 = vcmp.eq.f32.partialorder %v3080, 8.507059e+37
        %v3082 = vand.u32 %v2019, 2147483648
        %v3083 = vor.u32 1.1754944e-38, %v3082
        %v3084 = vsel %vm3081, %v3083, %v3079
        %v3085 = vmul.f32 1.0, %v3084
        %v3086 = vrcp.pop %v2020
        %v3087 = vmul.f32 %v2020, %v3086
        %v3088 = vsub.f32 1.0, %v3087
        %v3089 = vmul.f32 %v3086, %v3088
        %v3090 = vadd.f32 %v3086, %v3089
        %vm3091 = vweird.f32 %v2020
        %vm3092 = vweird.f32 %v3086
        %vm3093 = vmor %vm3091, %vm3092
        %v3094 = vsel %vm3093, %v3086, %v3090
        %v3095 = vand.u32 2147483647, %v2020
        %vm3096 = vcmp.eq.f32.partialorder %v3095, 8.507059e+37
        %v3097 = vand.u32 %v2020, 2147483648
        %v3098 = vor.u32 1.1754944e-38, %v3097
        %v3099 = vsel %vm3096, %v3098, %v3094
        %v3100 = vmul.f32 1.0, %v3099
        %v3101 = vmul.f32 %v1254, %v2035
        %v3102 = vmul.f32 %v1396, %v2050
        %v3103 = vmul.f32 %v1538, %v2065
        %v3104 = vmul.f32 %v1680, %v2080
        %v3105 = vmul.f32 %v1257, %v2095
        %v3106 = vmul.f32 %v1399, %v2110
        %v3107 = vmul.f32 %v1541, %v2125
        %v3108 = vmul.f32 %v1683, %v2140
        %v3109 = vmul.f32 %v1260, %v2155
        %v3110 = vmul.f32 %v1402, %v2170
        %v3111 = vmul.f32 %v1544, %v2185
        %v3112 = vmul.f32 %v1686, %v2200
        %v3113 = vmul.f32 %v1263, %v2215
        %v3114 = vmul.f32 %v1405, %v2230
        %v3115 = vmul.f32 %v1547, %v2245
        %v3116 = vmul.f32 %v1689, %v2260
        %v3117 = vmul.f32 %v1266, %v2275
        %v3118 = vmul.f32 %v1408, %v2290
        %v3119 = vmul.f32 %v1550, %v2305
        %v3120 = vmul.f32 %v1692, %v2320
        %v3121 = vmul.f32 %v1269, %v2335
        %v3122 = vmul.f32 %v1411, %v2350
        %v3123 = vmul.f32 %v1553, %v2365
        %v3124 = vmul.f32 %v1695, %v2380
        %v3125 = vmul.f32 %v1272, %v2395
        %v3126 = vmul.f32 %v1414, %v2410
        %v3127 = vmul.f32 %v1556, %v2425
        %v3128 = vmul.f32 %v1698, %v2440
        %v3129 = vmul.f32 %v1275, %v2455
        %v3130 = vmul.f32 %v1417, %v2470
        %v3131 = vmul.f32 %v1559, %v2485
        %v3132 = vmul.f32 %v1701, %v2500
        %v3133 = vmul.f32 %v1278, %v2515
        %v3134 = vmul.f32 %v1420, %v2530
        %v3135 = vmul.f32 %v1562, %v2545
        %v3136 = vmul.f32 %v1704, %v2560
        %v3137 = vmul.f32 %v1281, %v2575
        %v3138 = vmul.f32 %v1423, %v2590
        %v3139 = vmul.f32 %v1565, %v2605
        %v3140 = vmul.f32 %v1707, %v2620
        %v3141 = vmul.f32 %v1284, %v2635
        %v3142 = vmul.f32 %v1426, %v2650
        %v3143 = vmul.f32 %v1568, %v2665
        %v3144 = vmul.f32 %v1710, %v2680
        %v3145 = vmul.f32 %v1287, %v2695
        %v3146 = vmul.f32 %v1429, %v2710
        %v3147 = vmul.f32 %v1571, %v2725
        %v3148 = vmul.f32 %v1713, %v2740
        %v3149 = vmul.f32 %v1290, %v2755
        %v3150 = vmul.f32 %v1432, %v2770
        %v3151 = vmul.f32 %v1574, %v2785
        %v3152 = vmul.f32 %v1716, %v2800
        %v3153 = vmul.f32 %v1293, %v2815
        %v3154 = vmul.f32 %v1435, %v2830
        %v3155 = vmul.f32 %v1577, %v2845
        %v3156 = vmul.f32 %v1719, %v2860
        %v3157 = vmul.f32 %v1296, %v2875
        %v3158 = vmul.f32 %v1438, %v2890
        %v3159 = vmul.f32 %v1580, %v2905
        %v3160 = vmul.f32 %v1722, %v2920
        %v3161 = vmul.f32 %v1299, %v2935
        %v3162 = vmul.f32 %v1441, %v2950
        %v3163 = vmul.f32 %v1583, %v2965
        %v3164 = vmul.f32 %v1725, %v2980
        %v3165 = vmul.f32 %v1302, %v2995
        %v3166 = vmul.f32 %v1444, %v3010
        %v3167 = vmul.f32 %v1586, %v3025
        %v3168 = vmul.f32 %v1728, %v3040
        %v3169 = vmul.f32 %v1305, %v3055
        %v3170 = vmul.f32 %v1447, %v3070
        %v3171 = vmul.f32 %v1589, %v3085
        %v3172 = vmul.f32 %v1731, %v3100
        %v3173 = vmul.f32 %v3101, %v686
        %v3174 = vmul.f32 %v3102, %v828
        %v3175 = vmul.f32 %v3103, %v970
        %v3176 = vmul.f32 %v3104, %v1112
        %v3177 = vmul.f32 %v3105, %v689
        %v3178 = vmul.f32 %v3106, %v831
        %v3179 = vmul.f32 %v3107, %v973
        %v3180 = vmul.f32 %v3108, %v1115
        %v3181 = vmul.f32 %v3109, %v692
        %v3182 = vmul.f32 %v3110, %v834
        %v3183 = vmul.f32 %v3111, %v976
        %v3184 = vmul.f32 %v3112, %v1118
        %v3185 = vmul.f32 %v3113, %v695
        %v3186 = vmul.f32 %v3114, %v837
        %v3187 = vmul.f32 %v3115, %v979
        %v3188 = vmul.f32 %v3116, %v1121
        %v3189 = vmul.f32 %v3117, %v698
        %v3190 = vmul.f32 %v3118, %v840
        %v3191 = vmul.f32 %v3119, %v982
        %v3192 = vmul.f32 %v3120, %v1124
        %v3193 = vmul.f32 %v3121, %v701
        %v3194 = vmul.f32 %v3122, %v843
        %v3195 = vmul.f32 %v3123, %v985
        %v3196 = vmul.f32 %v3124, %v1127
        %v3197 = vmul.f32 %v3125, %v704
        %v3198 = vmul.f32 %v3126, %v846
        %v3199 = vmul.f32 %v3127, %v988
        %v3200 = vmul.f32 %v3128, %v1130
        %v3201 = vmul.f32 %v3129, %v707
        %v3202 = vmul.f32 %v3130, %v849
        %v3203 = vmul.f32 %v3131, %v991
        %v3204 = vmul.f32 %v3132, %v1133
        %v3205 = vmul.f32 %v3133, %v710
        %v3206 = vmul.f32 %v3134, %v852
        %v3207 = vmul.f32 %v3135, %v994
        %v3208 = vmul.f32 %v3136, %v1136
        %v3209 = vmul.f32 %v3137, %v713
        %v3210 = vmul.f32 %v3138, %v855
        %v3211 = vmul.f32 %v3139, %v997
        %v3212 = vmul.f32 %v3140, %v1139
        %v3213 = vmul.f32 %v3141, %v716
        %v3214 = vmul.f32 %v3142, %v858
        %v3215 = vmul.f32 %v3143, %v1000
        %v3216 = vmul.f32 %v3144, %v1142
        %v3217 = vmul.f32 %v3145, %v719
        %v3218 = vmul.f32 %v3146, %v861
        %v3219 = vmul.f32 %v3147, %v1003
        %v3220 = vmul.f32 %v3148, %v1145
        %v3221 = vmul.f32 %v3149, %v722
        %v3222 = vmul.f32 %v3150, %v864
        %v3223 = vmul.f32 %v3151, %v1006
        %v3224 = vmul.f32 %v3152, %v1148
        %v3225 = vmul.f32 %v3153, %v725
        %v3226 = vmul.f32 %v3154, %v867
        %v3227 = vmul.f32 %v3155, %v1009
        %v3228 = vmul.f32 %v3156, %v1151
        %v3229 = vmul.f32 %v3157, %v728
        %v3230 = vmul.f32 %v3158, %v870
        %v3231 = vmul.f32 %v3159, %v1012
        %v3232 = vmul.f32 %v3160, %v1154
        %v3233 = vmul.f32 %v3161, %v731
        %v3234 = vmul.f32 %v3162, %v873
        %v3235 = vmul.f32 %v3163, %v1015
        %v3236 = vmul.f32 %v3164, %v1157
        %v3237 = vmul.f32 %v3165, %v734
        %v3238 = vmul.f32 %v3166, %v876
        %v3239 = vmul.f32 %v3167, %v1018
        %v3240 = vmul.f32 %v3168, %v1160
        %v3241 = vmul.f32 %v3169, %v737
        %v3242 = vmul.f32 %v3170, %v879
        %v3243 = vmul.f32 %v3171, %v1021
        %v3244 = vmul.f32 %v3172, %v1163
        %v3245 = vld [vmem:[#allocation2] sm:$0xff]
        %v3246 = vld [vmem:[#allocation2 + $0x8] sm:$0xff]
        %v3247 = vld [vmem:[#allocation2 + $0x10] sm:$0xff]
        %v3248 = vld [vmem:[#allocation2 + $0x18] sm:$0xff]
        %v3249 = vld [vmem:[#allocation2 + $0x20] sm:$0xff]
        %v3250 = vld [vmem:[#allocation2 + $0x28] sm:$0xff]
        %v3251 = vld [vmem:[#allocation2 + $0x30] sm:$0xff]
        %v3252 = vld [vmem:[#allocation2 + $0x38] sm:$0xff]
        %v3253 = vld [vmem:[#allocation2 + $0x40] sm:$0xff]
        %v3254 = vld [vmem:[#allocation2 + $0x48] sm:$0xff]
        %v3255 = vld [vmem:[#allocation2 + $0x50] sm:$0xff]
        %v3256 = vld [vmem:[#allocation2 + $0x58] sm:$0xff]
        %v3257 = vld [vmem:[#allocation2 + $0x60] sm:$0xff]
        %v3258 = vld [vmem:[#allocation2 + $0x68] sm:$0xff]
        %v3259 = vld [vmem:[#allocation2 + $0x70] sm:$0xff]
        %v3260 = vld [vmem:[#allocation2 + $0x78] sm:$0xff]
        %v3261 = vld [vmem:[#allocation2 + $0x80] sm:$0xff]
        %v3262 = vld [vmem:[#allocation2 + $0x88] sm:$0xff]
        %v3263 = vld [vmem:[#allocation2 + $0x90] sm:$0xff]
        %v3264 = vld [vmem:[#allocation2 + $0x98] sm:$0xff]
        %v3265 = vld [vmem:[#allocation2 + $0xa0] sm:$0xff]
        %v3266 = vld [vmem:[#allocation2 + $0xa8] sm:$0xff]
        %v3267 = vld [vmem:[#allocation2 + $0xb0] sm:$0xff]
        %v3268 = vld [vmem:[#allocation2 + $0xb8] sm:$0xff]
        %v3269 = vld [vmem:[#allocation2 + $0xc0] sm:$0xff]
        %v3270 = vld [vmem:[#allocation2 + $0xc8] sm:$0xff]
        %v3271 = vld [vmem:[#allocation2 + $0xd0] sm:$0xff]
        %v3272 = vld [vmem:[#allocation2 + $0xd8] sm:$0xff]
        %v3273 = vld [vmem:[#allocation2 + $0xe0] sm:$0xff]
        %v3274 = vld [vmem:[#allocation2 + $0xe8] sm:$0xff]
        %v3275 = vld [vmem:[#allocation2 + $0xf0] sm:$0xff]
        %v3276 = vld [vmem:[#allocation2 + $0xf8] sm:$0xff]
        %v3277 = vld [vmem:[#allocation2 + $0x100] sm:$0xff]
        %v3278 = vld [vmem:[#allocation2 + $0x108] sm:$0xff]
        %v3279 = vld [vmem:[#allocation2 + $0x110] sm:$0xff]
        %v3280 = vld [vmem:[#allocation2 + $0x118] sm:$0xff]
        %v3281 = vld [vmem:[%s238] sm:$0xff]
        %v3282 = vld [vmem:[%s238 + $0x8] sm:$0xff]
        %v3283 = vld [vmem:[%s238 + $0x10] sm:$0xff]
        %v3284 = vld [vmem:[%s238 + $0x18] sm:$0xff]
        %v3285 = vld [vmem:[%s238 + $0x20] sm:$0xff]
        %v3286 = vld [vmem:[%s238 + $0x28] sm:$0xff]
        %v3287 = vld [vmem:[%s238 + $0x30] sm:$0xff]
        %v3288 = vld [vmem:[%s238 + $0x38] sm:$0xff]
        %v3289 = vld [vmem:[%s238 + $0x40] sm:$0xff]
        %v3290 = vld [vmem:[%s238 + $0x48] sm:$0xff]
        %v3291 = vld [vmem:[%s238 + $0x50] sm:$0xff]
        %v3292 = vld [vmem:[%s238 + $0x58] sm:$0xff]
        %v3293 = vld [vmem:[%s238 + $0x60] sm:$0xff]
        %v3294 = vld [vmem:[%s238 + $0x68] sm:$0xff]
        %v3295 = vld [vmem:[%s238 + $0x70] sm:$0xff]
        %v3296 = vld [vmem:[%s238 + $0x78] sm:$0xff]
        %v3297 = vld [vmem:[%s238 + $0x80] sm:$0xff]
        %v3298 = vld [vmem:[%s238 + $0x88] sm:$0xff]
        %v3299 = vld [vmem:[%s238 + $0x90] sm:$0xff]
        %v3300 = vld [vmem:[%s238 + $0x98] sm:$0xff]
        %v3301 = vld [vmem:[%s238 + $0xa0] sm:$0xff]
        %v3302 = vld [vmem:[%s238 + $0xa8] sm:$0xff]
        %v3303 = vld [vmem:[%s238 + $0xb0] sm:$0xff]
        %v3304 = vld [vmem:[%s238 + $0xb8] sm:$0xff]
        %v3305 = vld [vmem:[%s238 + $0xc0] sm:$0xff]
        %v3306 = vld [vmem:[%s238 + $0xc8] sm:$0xff]
        %v3307 = vld [vmem:[%s238 + $0xd0] sm:$0xff]
        %v3308 = vld [vmem:[%s238 + $0xd8] sm:$0xff]
        %v3309 = vld [vmem:[%s238 + $0xe0] sm:$0xff]
        %v3310 = vld [vmem:[%s238 + $0xe8] sm:$0xff]
        %v3311 = vld [vmem:[%s238 + $0xf0] sm:$0xff]
        %v3312 = vld [vmem:[%s238 + $0xf8] sm:$0xff]
        %v3313 = vld [vmem:[%s238 + $0x100] sm:$0xff]
        %v3314 = vld [vmem:[%s238 + $0x108] sm:$0xff]
        %v3315 = vld [vmem:[%s238 + $0x110] sm:$0xff]
        %v3316 = vld [vmem:[%s238 + $0x118] sm:$0xff]
        %v3317 = vld [vmem:[%s238 + $0x120] sm:$0xff]
        %v3318 = vld [vmem:[%s238 + $0x128] sm:$0xff]
        %v3319 = vld [vmem:[%s238 + $0x130] sm:$0xff]
        %v3320 = vld [vmem:[%s238 + $0x138] sm:$0xff]
        %v3321 = vld [vmem:[%s238 + $0x140] sm:$0xff]
        %v3322 = vld [vmem:[%s238 + $0x148] sm:$0xff]
        %v3323 = vld [vmem:[%s238 + $0x150] sm:$0xff]
        %v3324 = vld [vmem:[%s238 + $0x158] sm:$0xff]
        %v3325 = vld [vmem:[%s238 + $0x160] sm:$0xff]
        %v3326 = vld [vmem:[%s238 + $0x168] sm:$0xff]
        %v3327 = vld [vmem:[%s238 + $0x170] sm:$0xff]
        %v3328 = vld [vmem:[%s238 + $0x178] sm:$0xff]
        %v3329 = vld [vmem:[%s238 + $0x180] sm:$0xff]
        %v3330 = vld [vmem:[%s238 + $0x188] sm:$0xff]
        %v3331 = vld [vmem:[%s238 + $0x190] sm:$0xff]
        %v3332 = vld [vmem:[%s238 + $0x198] sm:$0xff]
        %v3333 = vld [vmem:[%s238 + $0x1a0] sm:$0xff]
        %v3334 = vld [vmem:[%s238 + $0x1a8] sm:$0xff]
        %v3335 = vld [vmem:[%s238 + $0x1b0] sm:$0xff]
        %v3336 = vld [vmem:[%s238 + $0x1b8] sm:$0xff]
        %v3337 = vld [vmem:[%s238 + $0x1c0] sm:$0xff]
        %v3338 = vld [vmem:[%s238 + $0x1c8] sm:$0xff]
        %v3339 = vld [vmem:[%s238 + $0x1d0] sm:$0xff]
        %v3340 = vld [vmem:[%s238 + $0x1d8] sm:$0xff]
        %v3341 = vld [vmem:[%s238 + $0x1e0] sm:$0xff]
        %v3342 = vld [vmem:[%s238 + $0x1e8] sm:$0xff]
        %v3343 = vld [vmem:[%s238 + $0x1f0] sm:$0xff]
        %v3344 = vld [vmem:[%s238 + $0x1f8] sm:$0xff]
        %v3345 = vld [vmem:[%s238 + $0x200] sm:$0xff]
        %v3346 = vld [vmem:[%s238 + $0x208] sm:$0xff]
        %v3347 = vld [vmem:[%s238 + $0x210] sm:$0xff]
        %v3348 = vld [vmem:[%s238 + $0x218] sm:$0xff]
        %v3349 = vld [vmem:[%s238 + $0x220] sm:$0xff]
        %v3350 = vld [vmem:[%s238 + $0x228] sm:$0xff]
        %v3351 = vld [vmem:[%s238 + $0x230] sm:$0xff]
        %v3352 = vld [vmem:[%s238 + $0x238] sm:$0xff]
        %v3353 = vld [vmem:[%s238 + $0x240] sm:$0xff]
        %v3354 = vld [vmem:[%s238 + $0x248] sm:$0xff]
        %v3355 = vld [vmem:[%s238 + $0x250] sm:$0xff]
        %v3356 = vld [vmem:[%s238 + $0x258] sm:$0xff]
        %v3357 = vld [vmem:[%s238 + $0x260] sm:$0xff]
        %v3358 = vld [vmem:[%s238 + $0x268] sm:$0xff]
        %v3359 = vld [vmem:[%s238 + $0x270] sm:$0xff]
        %v3360 = vld [vmem:[%s238 + $0x278] sm:$0xff]
        %v3361 = vld [vmem:[%s238 + $0x280] sm:$0xff]
        %v3362 = vld [vmem:[%s238 + $0x288] sm:$0xff]
        %v3363 = vld [vmem:[%s238 + $0x290] sm:$0xff]
        %v3364 = vld [vmem:[%s238 + $0x298] sm:$0xff]
        %v3365 = vld [vmem:[%s238 + $0x2a0] sm:$0xff]
        %v3366 = vld [vmem:[%s238 + $0x2a8] sm:$0xff]
        %v3367 = vld [vmem:[%s238 + $0x2b0] sm:$0xff]
        %v3368 = vld [vmem:[%s238 + $0x2b8] sm:$0xff]
        %v3369 = vld [vmem:[%s238 + $0x2c0] sm:$0xff]
        %v3370 = vld [vmem:[%s238 + $0x2c8] sm:$0xff]
        %v3371 = vld [vmem:[%s238 + $0x2d0] sm:$0xff]
        %v3372 = vld [vmem:[%s238 + $0x2d8] sm:$0xff]
        %v3373 = vld [vmem:[%s238 + $0x2e0] sm:$0xff]
        %v3374 = vld [vmem:[%s238 + $0x2e8] sm:$0xff]
        %v3375 = vld [vmem:[%s238 + $0x2f0] sm:$0xff]
        %v3376 = vld [vmem:[%s238 + $0x2f8] sm:$0xff]
        %v3377 = vld [vmem:[%s238 + $0x300] sm:$0xff]
        %v3378 = vld [vmem:[%s238 + $0x308] sm:$0xff]
        %v3379 = vld [vmem:[%s238 + $0x310] sm:$0xff]
        %v3380 = vld [vmem:[%s238 + $0x318] sm:$0xff]
        %v3381 = vld [vmem:[%s238 + $0x320] sm:$0xff]
        %v3382 = vld [vmem:[%s238 + $0x328] sm:$0xff]
        %v3383 = vld [vmem:[%s238 + $0x330] sm:$0xff]
        %v3384 = vld [vmem:[%s238 + $0x338] sm:$0xff]
        %v3385 = vld [vmem:[%s238 + $0x340] sm:$0xff]
        %v3386 = vld [vmem:[%s238 + $0x348] sm:$0xff]
        %v3387 = vld [vmem:[%s238 + $0x350] sm:$0xff]
        %v3388 = vld [vmem:[%s238 + $0x358] sm:$0xff]
        %v3389 = vld [vmem:[%s238 + $0x360] sm:$0xff]
        %v3390 = vld [vmem:[%s238 + $0x368] sm:$0xff]
        %v3391 = vld [vmem:[%s238 + $0x370] sm:$0xff]
        %v3392 = vld [vmem:[%s238 + $0x378] sm:$0xff]
        %v3393 = vld [vmem:[%s238 + $0x380] sm:$0xff]
        %v3394 = vld [vmem:[%s238 + $0x388] sm:$0xff]
        %v3395 = vld [vmem:[%s238 + $0x390] sm:$0xff]
        %v3396 = vld [vmem:[%s238 + $0x398] sm:$0xff]
        %v3397 = vld [vmem:[%s238 + $0x3a0] sm:$0xff]
        %v3398 = vld [vmem:[%s238 + $0x3a8] sm:$0xff]
        %v3399 = vld [vmem:[%s238 + $0x3b0] sm:$0xff]
        %v3400 = vld [vmem:[%s238 + $0x3b8] sm:$0xff]
        %v3401 = vld [vmem:[%s238 + $0x3c0] sm:$0xff]
        %v3402 = vld [vmem:[%s238 + $0x3c8] sm:$0xff]
        %v3403 = vld [vmem:[%s238 + $0x3d0] sm:$0xff]
        %v3404 = vld [vmem:[%s238 + $0x3d8] sm:$0xff]
        %v3405 = vld [vmem:[%s238 + $0x3e0] sm:$0xff]
        %v3406 = vld [vmem:[%s238 + $0x3e8] sm:$0xff]
        %v3407 = vld [vmem:[%s238 + $0x3f0] sm:$0xff]
        %v3408 = vld [vmem:[%s238 + $0x3f8] sm:$0xff]
        %3409 = vmatpush.msra.mxu0 %v3311
        %3410 = vmatpush.msra.mxu0 %v3309
        %3411 = vmatpush.msra.mxu0 %v3307
        %3412 = vmatpush.msra.mxu0 %v3305
        %3413 = vmatpush.msra.mxu0 %v3303
        %3414 = vmatpush.msra.mxu0 %v3301
        %3415 = vmatpush.msra.mxu0 %v3299
        %3416 = vmatpush.msra.mxu0 %v3297
        %3417 = vmatpush.msra.mxu0 %v3295
        %3418 = vmatpush.msra.mxu0 %v3293
        %3419 = vmatpush.msra.mxu0 %v3291
        %3420 = vmatpush.msra.mxu0 %v3289
        %3421 = vmatpush.msra.mxu0 %v3287
        %3422 = vmatpush.msra.mxu0 %v3285
        %3423 = vmatpush.msra.mxu0 %v3283
        %3424 = vmatpush.msra.mxu0 %v3281
        %3425 = vmatmul.f32.gmra.mxu0 %v3173
        %v3426 = vpop.f32.mrf.mxu0
        %v3427 = vadd.f32 0.0, %v3426
        %3428 = vmatmul.f32.gmra.mxu0 %v3177
        %v3429 = vpop.f32.mrf.mxu0
        %v3430 = vadd.f32 0.0, %v3429
        %3431 = vmatmul.f32.gmra.mxu0 %v3181
        %v3432 = vpop.f32.mrf.mxu0
        %v3433 = vadd.f32 0.0, %v3432
        %3434 = vmatmul.f32.gmra.mxu0 %v3185
        %v3435 = vpop.f32.mrf.mxu0
        %v3436 = vadd.f32 0.0, %v3435
        %3437 = vmatmul.f32.gmra.mxu0 %v3189
        %v3438 = vpop.f32.mrf.mxu0
        %v3439 = vadd.f32 0.0, %v3438
        %3440 = vmatmul.f32.gmra.mxu0 %v3193
        %v3441 = vpop.f32.mrf.mxu0
        %v3442 = vadd.f32 0.0, %v3441
        %3443 = vmatmul.f32.gmra.mxu0 %v3197
        %v3444 = vpop.f32.mrf.mxu0
        %v3445 = vadd.f32 0.0, %v3444
        %3446 = vmatmul.f32.gmra.mxu0 %v3201
        %v3447 = vpop.f32.mrf.mxu0
        %v3448 = vadd.f32 0.0, %v3447
        %3449 = vmatmul.f32.gmra.mxu0 %v3205
        %v3450 = vpop.f32.mrf.mxu0
        %v3451 = vadd.f32 0.0, %v3450
        %3452 = vmatmul.f32.gmra.mxu0 %v3209
        %v3453 = vpop.f32.mrf.mxu0
        %v3454 = vadd.f32 0.0, %v3453
        %3455 = vmatmul.f32.gmra.mxu0 %v3213
        %v3456 = vpop.f32.mrf.mxu0
        %v3457 = vadd.f32 0.0, %v3456
        %3458 = vmatmul.f32.gmra.mxu0 %v3217
        %v3459 = vpop.f32.mrf.mxu0
        %v3460 = vadd.f32 0.0, %v3459
        %3461 = vmatmul.f32.gmra.mxu0 %v3221
        %v3462 = vpop.f32.mrf.mxu0
        %v3463 = vadd.f32 0.0, %v3462
        %3464 = vmatmul.f32.gmra.mxu0 %v3225
        %v3465 = vpop.f32.mrf.mxu0
        %v3466 = vadd.f32 0.0, %v3465
        %3467 = vmatmul.f32.gmra.mxu0 %v3229
        %v3468 = vpop.f32.mrf.mxu0
        %v3469 = vadd.f32 0.0, %v3468
        %3470 = vmatmul.f32.gmra.mxu0 %v3233
        %v3471 = vpop.f32.mrf.mxu0
        %v3472 = vadd.f32 0.0, %v3471
        %3473 = vmatmul.f32.gmra.mxu0 %v3237
        %v3474 = vpop.f32.mrf.mxu0
        %v3475 = vadd.f32 0.0, %v3474
        %3476 = vmatmul.f32.gmra.mxu0 %v3241
        %v3477 = vpop.f32.mrf.mxu0
        %v3478 = vadd.f32 0.0, %v3477
        %3479 = vdwg.mxu0
        %3480 = vmatpush.msra.mxu0 %v3343
        %3481 = vmatpush.msra.mxu0 %v3341
        %3482 = vmatpush.msra.mxu0 %v3339
        %3483 = vmatpush.msra.mxu0 %v3337
        %3484 = vmatpush.msra.mxu0 %v3335
        %3485 = vmatpush.msra.mxu0 %v3333
        %3486 = vmatpush.msra.mxu0 %v3331
        %3487 = vmatpush.msra.mxu0 %v3329
        %3488 = vmatpush.msra.mxu0 %v3327
        %3489 = vmatpush.msra.mxu0 %v3325
        %3490 = vmatpush.msra.mxu0 %v3323
        %3491 = vmatpush.msra.mxu0 %v3321
        %3492 = vmatpush.msra.mxu0 %v3319
        %3493 = vmatpush.msra.mxu0 %v3317
        %3494 = vmatpush.msra.mxu0 %v3315
        %3495 = vmatpush.msra.mxu0 %v3313
        %3496 = vmatmul.f32.gmra.mxu0 %v3174
        %v3497 = vpop.f32.mrf.mxu0
        %v3498 = vadd.f32 %v3427, %v3497
        %3499 = vmatmul.f32.gmra.mxu0 %v3178
        %v3500 = vpop.f32.mrf.mxu0
        %v3501 = vadd.f32 %v3430, %v3500
        %3502 = vmatmul.f32.gmra.mxu0 %v3182
        %v3503 = vpop.f32.mrf.mxu0
        %v3504 = vadd.f32 %v3433, %v3503
        %3505 = vmatmul.f32.gmra.mxu0 %v3186
        %v3506 = vpop.f32.mrf.mxu0
        %v3507 = vadd.f32 %v3436, %v3506
        %3508 = vmatmul.f32.gmra.mxu0 %v3190
        %v3509 = vpop.f32.mrf.mxu0
        %v3510 = vadd.f32 %v3439, %v3509
        %3511 = vmatmul.f32.gmra.mxu0 %v3194
        %v3512 = vpop.f32.mrf.mxu0
        %v3513 = vadd.f32 %v3442, %v3512
        %3514 = vmatmul.f32.gmra.mxu0 %v3198
        %v3515 = vpop.f32.mrf.mxu0
        %v3516 = vadd.f32 %v3445, %v3515
        %3517 = vmatmul.f32.gmra.mxu0 %v3202
        %v3518 = vpop.f32.mrf.mxu0
        %v3519 = vadd.f32 %v3448, %v3518
        %3520 = vmatmul.f32.gmra.mxu0 %v3206
        %v3521 = vpop.f32.mrf.mxu0
        %v3522 = vadd.f32 %v3451, %v3521
        %3523 = vmatmul.f32.gmra.mxu0 %v3210
        %v3524 = vpop.f32.mrf.mxu0
        %v3525 = vadd.f32 %v3454, %v3524
        %3526 = vmatmul.f32.gmra.mxu0 %v3214
        %v3527 = vpop.f32.mrf.mxu0
        %v3528 = vadd.f32 %v3457, %v3527
        %3529 = vmatmul.f32.gmra.mxu0 %v3218
        %v3530 = vpop.f32.mrf.mxu0
        %v3531 = vadd.f32 %v3460, %v3530
        %3532 = vmatmul.f32.gmra.mxu0 %v3222
        %v3533 = vpop.f32.mrf.mxu0
        %v3534 = vadd.f32 %v3463, %v3533
        %3535 = vmatmul.f32.gmra.mxu0 %v3226
        %v3536 = vpop.f32.mrf.mxu0
        %v3537 = vadd.f32 %v3466, %v3536
        %3538 = vmatmul.f32.gmra.mxu0 %v3230
        %v3539 = vpop.f32.mrf.mxu0
        %v3540 = vadd.f32 %v3469, %v3539
        %3541 = vmatmul.f32.gmra.mxu0 %v3234
        %v3542 = vpop.f32.mrf.mxu0
        %v3543 = vadd.f32 %v3472, %v3542
        %3544 = vmatmul.f32.gmra.mxu0 %v3238
        %v3545 = vpop.f32.mrf.mxu0
        %v3546 = vadd.f32 %v3475, %v3545
        %3547 = vmatmul.f32.gmra.mxu0 %v3242
        %v3548 = vpop.f32.mrf.mxu0
        %v3549 = vadd.f32 %v3478, %v3548
        %3550 = vdwg.mxu0
        %3551 = vmatpush.msra.mxu0 %v3375
        %3552 = vmatpush.msra.mxu0 %v3373
        %3553 = vmatpush.msra.mxu0 %v3371
        %3554 = vmatpush.msra.mxu0 %v3369
        %3555 = vmatpush.msra.mxu0 %v3367
        %3556 = vmatpush.msra.mxu0 %v3365
        %3557 = vmatpush.msra.mxu0 %v3363
        %3558 = vmatpush.msra.mxu0 %v3361
        %3559 = vmatpush.msra.mxu0 %v3359
        %3560 = vmatpush.msra.mxu0 %v3357
        %3561 = vmatpush.msra.mxu0 %v3355
        %3562 = vmatpush.msra.mxu0 %v3353
        %3563 = vmatpush.msra.mxu0 %v3351
        %3564 = vmatpush.msra.mxu0 %v3349
        %3565 = vmatpush.msra.mxu0 %v3347
        %3566 = vmatpush.msra.mxu0 %v3345
        %3567 = vmatmul.f32.gmra.mxu0 %v3175
        %v3568 = vpop.f32.mrf.mxu0
        %v3569 = vadd.f32 %v3498, %v3568
        %3570 = vmatmul.f32.gmra.mxu0 %v3179
        %v3571 = vpop.f32.mrf.mxu0
        %v3572 = vadd.f32 %v3501, %v3571
        %3573 = vmatmul.f32.gmra.mxu0 %v3183
        %v3574 = vpop.f32.mrf.mxu0
        %v3575 = vadd.f32 %v3504, %v3574
        %3576 = vmatmul.f32.gmra.mxu0 %v3187
        %v3577 = vpop.f32.mrf.mxu0
        %v3578 = vadd.f32 %v3507, %v3577
        %3579 = vmatmul.f32.gmra.mxu0 %v3191
        %v3580 = vpop.f32.mrf.mxu0
        %v3581 = vadd.f32 %v3510, %v3580
        %3582 = vmatmul.f32.gmra.mxu0 %v3195
        %v3583 = vpop.f32.mrf.mxu0
        %v3584 = vadd.f32 %v3513, %v3583
        %3585 = vmatmul.f32.gmra.mxu0 %v3199
        %v3586 = vpop.f32.mrf.mxu0
        %v3587 = vadd.f32 %v3516, %v3586
        %3588 = vmatmul.f32.gmra.mxu0 %v3203
        %v3589 = vpop.f32.mrf.mxu0
        %v3590 = vadd.f32 %v3519, %v3589
        %3591 = vmatmul.f32.gmra.mxu0 %v3207
        %v3592 = vpop.f32.mrf.mxu0
        %v3593 = vadd.f32 %v3522, %v3592
        %3594 = vmatmul.f32.gmra.mxu0 %v3211
        %v3595 = vpop.f32.mrf.mxu0
        %v3596 = vadd.f32 %v3525, %v3595
        %3597 = vmatmul.f32.gmra.mxu0 %v3215
        %v3598 = vpop.f32.mrf.mxu0
        %v3599 = vadd.f32 %v3528, %v3598
        %3600 = vmatmul.f32.gmra.mxu0 %v3219
        %v3601 = vpop.f32.mrf.mxu0
        %v3602 = vadd.f32 %v3531, %v3601
        %3603 = vmatmul.f32.gmra.mxu0 %v3223
        %v3604 = vpop.f32.mrf.mxu0
        %v3605 = vadd.f32 %v3534, %v3604
        %3606 = vmatmul.f32.gmra.mxu0 %v3227
        %v3607 = vpop.f32.mrf.mxu0
        %v3608 = vadd.f32 %v3537, %v3607
        %3609 = vmatmul.f32.gmra.mxu0 %v3231
        %v3610 = vpop.f32.mrf.mxu0
        %v3611 = vadd.f32 %v3540, %v3610
        %3612 = vmatmul.f32.gmra.mxu0 %v3235
        %v3613 = vpop.f32.mrf.mxu0
        %v3614 = vadd.f32 %v3543, %v3613
        %3615 = vmatmul.f32.gmra.mxu0 %v3239
        %v3616 = vpop.f32.mrf.mxu0
        %v3617 = vadd.f32 %v3546, %v3616
        %3618 = vmatmul.f32.gmra.mxu0 %v3243
        %v3619 = vpop.f32.mrf.mxu0
        %v3620 = vadd.f32 %v3549, %v3619
        %3621 = vdwg.mxu0
        %3622 = vmatpush.msra.mxu0 %v3407
        %3623 = vmatpush.msra.mxu0 %v3405
        %3624 = vmatpush.msra.mxu0 %v3403
        %3625 = vmatpush.msra.mxu0 %v3401
        %3626 = vmatpush.msra.mxu0 %v3399
        %3627 = vmatpush.msra.mxu0 %v3397
        %3628 = vmatpush.msra.mxu0 %v3395
        %3629 = vmatpush.msra.mxu0 %v3393
        %3630 = vmatpush.msra.mxu0 %v3391
        %3631 = vmatpush.msra.mxu0 %v3389
        %3632 = vmatpush.msra.mxu0 %v3387
        %3633 = vmatpush.msra.mxu0 %v3385
        %3634 = vmatpush.msra.mxu0 %v3383
        %3635 = vmatpush.msra.mxu0 %v3381
        %3636 = vmatpush.msra.mxu0 %v3379
        %3637 = vmatpush.msra.mxu0 %v3377
        %3638 = vmatmul.f32.gmra.mxu0 %v3176
        %v3639 = vpop.f32.mrf.mxu0
        %v3640 = vadd.f32 %v3569, %v3639
        %3641 = vmatmul.f32.gmra.mxu0 %v3180
        %v3642 = vpop.f32.mrf.mxu0
        %v3643 = vadd.f32 %v3572, %v3642
        %3644 = vmatmul.f32.gmra.mxu0 %v3184
        %v3645 = vpop.f32.mrf.mxu0
        %v3646 = vadd.f32 %v3575, %v3645
        %3647 = vmatmul.f32.gmra.mxu0 %v3188
        %v3648 = vpop.f32.mrf.mxu0
        %v3649 = vadd.f32 %v3578, %v3648
        %3650 = vmatmul.f32.gmra.mxu0 %v3192
        %v3651 = vpop.f32.mrf.mxu0
        %v3652 = vadd.f32 %v3581, %v3651
        %3653 = vmatmul.f32.gmra.mxu0 %v3196
        %v3654 = vpop.f32.mrf.mxu0
        %v3655 = vadd.f32 %v3584, %v3654
        %3656 = vmatmul.f32.gmra.mxu0 %v3200
        %v3657 = vpop.f32.mrf.mxu0
        %v3658 = vadd.f32 %v3587, %v3657
        %3659 = vmatmul.f32.gmra.mxu0 %v3204
        %v3660 = vpop.f32.mrf.mxu0
        %v3661 = vadd.f32 %v3590, %v3660
        %3662 = vmatmul.f32.gmra.mxu0 %v3208
        %v3663 = vpop.f32.mrf.mxu0
        %v3664 = vadd.f32 %v3593, %v3663
        %3665 = vmatmul.f32.gmra.mxu0 %v3212
        %v3666 = vpop.f32.mrf.mxu0
        %v3667 = vadd.f32 %v3596, %v3666
        %3668 = vmatmul.f32.gmra.mxu0 %v3216
        %v3669 = vpop.f32.mrf.mxu0
        %v3670 = vadd.f32 %v3599, %v3669
        %3671 = vmatmul.f32.gmra.mxu0 %v3220
        %v3672 = vpop.f32.mrf.mxu0
        %v3673 = vadd.f32 %v3602, %v3672
        %3674 = vmatmul.f32.gmra.mxu0 %v3224
        %v3675 = vpop.f32.mrf.mxu0
        %v3676 = vadd.f32 %v3605, %v3675
        %3677 = vmatmul.f32.gmra.mxu0 %v3228
        %v3678 = vpop.f32.mrf.mxu0
        %v3679 = vadd.f32 %v3608, %v3678
        %3680 = vmatmul.f32.gmra.mxu0 %v3232
        %v3681 = vpop.f32.mrf.mxu0
        %v3682 = vadd.f32 %v3611, %v3681
        %3683 = vmatmul.f32.gmra.mxu0 %v3236
        %v3684 = vpop.f32.mrf.mxu0
        %v3685 = vadd.f32 %v3614, %v3684
        %3686 = vmatmul.f32.gmra.mxu0 %v3240
        %v3687 = vpop.f32.mrf.mxu0
        %v3688 = vadd.f32 %v3617, %v3687
        %3689 = vmatmul.f32.gmra.mxu0 %v3244
        %v3690 = vpop.f32.mrf.mxu0
        %v3691 = vadd.f32 %v3620, %v3690
        %3692 = vdwg.mxu0
        %3693 = vmatpush.msra.mxu0 %v3312
        %3694 = vmatpush.msra.mxu0 %v3310
        %3695 = vmatpush.msra.mxu0 %v3308
        %3696 = vmatpush.msra.mxu0 %v3306
        %3697 = vmatpush.msra.mxu0 %v3304
        %3698 = vmatpush.msra.mxu0 %v3302
        %3699 = vmatpush.msra.mxu0 %v3300
        %3700 = vmatpush.msra.mxu0 %v3298
        %3701 = vmatpush.msra.mxu0 %v3296
        %3702 = vmatpush.msra.mxu0 %v3294
        %3703 = vmatpush.msra.mxu0 %v3292
        %3704 = vmatpush.msra.mxu0 %v3290
        %3705 = vmatpush.msra.mxu0 %v3288
        %3706 = vmatpush.msra.mxu0 %v3286
        %3707 = vmatpush.msra.mxu0 %v3284
        %3708 = vmatpush.msra.mxu0 %v3282
        %3709 = vmatmul.f32.gmra.mxu0 %v3173
        %v3710 = vpop.f32.mrf.mxu0
        %v3711 = vadd.f32 0.0, %v3710
        %3712 = vmatmul.f32.gmra.mxu0 %v3177
        %v3713 = vpop.f32.mrf.mxu0
        %v3714 = vadd.f32 0.0, %v3713
        %3715 = vmatmul.f32.gmra.mxu0 %v3181
        %v3716 = vpop.f32.mrf.mxu0
        %v3717 = vadd.f32 0.0, %v3716
        %3718 = vmatmul.f32.gmra.mxu0 %v3185
        %v3719 = vpop.f32.mrf.mxu0
        %v3720 = vadd.f32 0.0, %v3719
        %3721 = vmatmul.f32.gmra.mxu0 %v3189
        %v3722 = vpop.f32.mrf.mxu0
        %v3723 = vadd.f32 0.0, %v3722
        %3724 = vmatmul.f32.gmra.mxu0 %v3193
        %v3725 = vpop.f32.mrf.mxu0
        %v3726 = vadd.f32 0.0, %v3725
        %3727 = vmatmul.f32.gmra.mxu0 %v3197
        %v3728 = vpop.f32.mrf.mxu0
        %v3729 = vadd.f32 0.0, %v3728
        %3730 = vmatmul.f32.gmra.mxu0 %v3201
        %v3731 = vpop.f32.mrf.mxu0
        %v3732 = vadd.f32 0.0, %v3731
        %3733 = vmatmul.f32.gmra.mxu0 %v3205
        %v3734 = vpop.f32.mrf.mxu0
        %v3735 = vadd.f32 0.0, %v3734
        %3736 = vmatmul.f32.gmra.mxu0 %v3209
        %v3737 = vpop.f32.mrf.mxu0
        %v3738 = vadd.f32 0.0, %v3737
        %3739 = vmatmul.f32.gmra.mxu0 %v3213
        %v3740 = vpop.f32.mrf.mxu0
        %v3741 = vadd.f32 0.0, %v3740
        %3742 = vmatmul.f32.gmra.mxu0 %v3217
        %v3743 = vpop.f32.mrf.mxu0
        %v3744 = vadd.f32 0.0, %v3743
        %3745 = vmatmul.f32.gmra.mxu0 %v3221
        %v3746 = vpop.f32.mrf.mxu0
        %v3747 = vadd.f32 0.0, %v3746
        %3748 = vmatmul.f32.gmra.mxu0 %v3225
        %v3749 = vpop.f32.mrf.mxu0
        %v3750 = vadd.f32 0.0, %v3749
        %3751 = vmatmul.f32.gmra.mxu0 %v3229
        %v3752 = vpop.f32.mrf.mxu0
        %v3753 = vadd.f32 0.0, %v3752
        %3754 = vmatmul.f32.gmra.mxu0 %v3233
        %v3755 = vpop.f32.mrf.mxu0
        %v3756 = vadd.f32 0.0, %v3755
        %3757 = vmatmul.f32.gmra.mxu0 %v3237
        %v3758 = vpop.f32.mrf.mxu0
        %v3759 = vadd.f32 0.0, %v3758
        %3760 = vmatmul.f32.gmra.mxu0 %v3241
        %v3761 = vpop.f32.mrf.mxu0
        %v3762 = vadd.f32 0.0, %v3761
        %3763 = vdwg.mxu0
        %3764 = vmatpush.msra.mxu0 %v3344
        %3765 = vmatpush.msra.mxu0 %v3342
        %3766 = vmatpush.msra.mxu0 %v3340
        %3767 = vmatpush.msra.mxu0 %v3338
        %3768 = vmatpush.msra.mxu0 %v3336
        %3769 = vmatpush.msra.mxu0 %v3334
        %3770 = vmatpush.msra.mxu0 %v3332
        %3771 = vmatpush.msra.mxu0 %v3330
        %3772 = vmatpush.msra.mxu0 %v3328
        %3773 = vmatpush.msra.mxu0 %v3326
        %3774 = vmatpush.msra.mxu0 %v3324
        %3775 = vmatpush.msra.mxu0 %v3322
        %3776 = vmatpush.msra.mxu0 %v3320
        %3777 = vmatpush.msra.mxu0 %v3318
        %3778 = vmatpush.msra.mxu0 %v3316
        %3779 = vmatpush.msra.mxu0 %v3314
        %3780 = vmatmul.f32.gmra.mxu0 %v3174
        %v3781 = vpop.f32.mrf.mxu0
        %v3782 = vadd.f32 %v3711, %v3781
        %3783 = vmatmul.f32.gmra.mxu0 %v3178
        %v3784 = vpop.f32.mrf.mxu0
        %v3785 = vadd.f32 %v3714, %v3784
        %3786 = vmatmul.f32.gmra.mxu0 %v3182
        %v3787 = vpop.f32.mrf.mxu0
        %v3788 = vadd.f32 %v3717, %v3787
        %3789 = vmatmul.f32.gmra.mxu0 %v3186
        %v3790 = vpop.f32.mrf.mxu0
        %v3791 = vadd.f32 %v3720, %v3790
        %3792 = vmatmul.f32.gmra.mxu0 %v3190
        %v3793 = vpop.f32.mrf.mxu0
        %v3794 = vadd.f32 %v3723, %v3793
        %3795 = vmatmul.f32.gmra.mxu0 %v3194
        %v3796 = vpop.f32.mrf.mxu0
        %v3797 = vadd.f32 %v3726, %v3796
        %3798 = vmatmul.f32.gmra.mxu0 %v3198
        %v3799 = vpop.f32.mrf.mxu0
        %v3800 = vadd.f32 %v3729, %v3799
        %3801 = vmatmul.f32.gmra.mxu0 %v3202
        %v3802 = vpop.f32.mrf.mxu0
        %v3803 = vadd.f32 %v3732, %v3802
        %3804 = vmatmul.f32.gmra.mxu0 %v3206
        %v3805 = vpop.f32.mrf.mxu0
        %v3806 = vadd.f32 %v3735, %v3805
        %3807 = vmatmul.f32.gmra.mxu0 %v3210
        %v3808 = vpop.f32.mrf.mxu0
        %v3809 = vadd.f32 %v3738, %v3808
        %3810 = vmatmul.f32.gmra.mxu0 %v3214
        %v3811 = vpop.f32.mrf.mxu0
        %v3812 = vadd.f32 %v3741, %v3811
        %3813 = vmatmul.f32.gmra.mxu0 %v3218
        %v3814 = vpop.f32.mrf.mxu0
        %v3815 = vadd.f32 %v3744, %v3814
        %3816 = vmatmul.f32.gmra.mxu0 %v3222
        %v3817 = vpop.f32.mrf.mxu0
        %v3818 = vadd.f32 %v3747, %v3817
        %3819 = vmatmul.f32.gmra.mxu0 %v3226
        %v3820 = vpop.f32.mrf.mxu0
        %v3821 = vadd.f32 %v3750, %v3820
        %3822 = vmatmul.f32.gmra.mxu0 %v3230
        %v3823 = vpop.f32.mrf.mxu0
        %v3824 = vadd.f32 %v3753, %v3823
        %3825 = vmatmul.f32.gmra.mxu0 %v3234
        %v3826 = vpop.f32.mrf.mxu0
        %v3827 = vadd.f32 %v3756, %v3826
        %3828 = vmatmul.f32.gmra.mxu0 %v3238
        %v3829 = vpop.f32.mrf.mxu0
        %v3830 = vadd.f32 %v3759, %v3829
        %3831 = vmatmul.f32.gmra.mxu0 %v3242
        %v3832 = vpop.f32.mrf.mxu0
        %v3833 = vadd.f32 %v3762, %v3832
        %3834 = vdwg.mxu0
        %3835 = vmatpush.msra.mxu0 %v3376
        %3836 = vmatpush.msra.mxu0 %v3374
        %3837 = vmatpush.msra.mxu0 %v3372
        %3838 = vmatpush.msra.mxu0 %v3370
        %3839 = vmatpush.msra.mxu0 %v3368
        %3840 = vmatpush.msra.mxu0 %v3366
        %3841 = vmatpush.msra.mxu0 %v3364
        %3842 = vmatpush.msra.mxu0 %v3362
        %3843 = vmatpush.msra.mxu0 %v3360
        %3844 = vmatpush.msra.mxu0 %v3358
        %3845 = vmatpush.msra.mxu0 %v3356
        %3846 = vmatpush.msra.mxu0 %v3354
        %3847 = vmatpush.msra.mxu0 %v3352
        %3848 = vmatpush.msra.mxu0 %v3350
        %3849 = vmatpush.msra.mxu0 %v3348
        %3850 = vmatpush.msra.mxu0 %v3346
        %3851 = vmatmul.f32.gmra.mxu0 %v3175
        %v3852 = vpop.f32.mrf.mxu0
        %v3853 = vadd.f32 %v3782, %v3852
        %3854 = vmatmul.f32.gmra.mxu0 %v3179
        %v3855 = vpop.f32.mrf.mxu0
        %v3856 = vadd.f32 %v3785, %v3855
        %3857 = vmatmul.f32.gmra.mxu0 %v3183
        %v3858 = vpop.f32.mrf.mxu0
        %v3859 = vadd.f32 %v3788, %v3858
        %3860 = vmatmul.f32.gmra.mxu0 %v3187
        %v3861 = vpop.f32.mrf.mxu0
        %v3862 = vadd.f32 %v3791, %v3861
        %3863 = vmatmul.f32.gmra.mxu0 %v3191
        %v3864 = vpop.f32.mrf.mxu0
        %v3865 = vadd.f32 %v3794, %v3864
        %3866 = vmatmul.f32.gmra.mxu0 %v3195
        %v3867 = vpop.f32.mrf.mxu0
        %v3868 = vadd.f32 %v3797, %v3867
        %3869 = vmatmul.f32.gmra.mxu0 %v3199
        %v3870 = vpop.f32.mrf.mxu0
        %v3871 = vadd.f32 %v3800, %v3870
        %3872 = vmatmul.f32.gmra.mxu0 %v3203
        %v3873 = vpop.f32.mrf.mxu0
        %v3874 = vadd.f32 %v3803, %v3873
        %3875 = vmatmul.f32.gmra.mxu0 %v3207
        %v3876 = vpop.f32.mrf.mxu0
        %v3877 = vadd.f32 %v3806, %v3876
        %3878 = vmatmul.f32.gmra.mxu0 %v3211
        %v3879 = vpop.f32.mrf.mxu0
        %v3880 = vadd.f32 %v3809, %v3879
        %3881 = vmatmul.f32.gmra.mxu0 %v3215
        %v3882 = vpop.f32.mrf.mxu0
        %v3883 = vadd.f32 %v3812, %v3882
        %3884 = vmatmul.f32.gmra.mxu0 %v3219
        %v3885 = vpop.f32.mrf.mxu0
        %v3886 = vadd.f32 %v3815, %v3885
        %3887 = vmatmul.f32.gmra.mxu0 %v3223
        %v3888 = vpop.f32.mrf.mxu0
        %v3889 = vadd.f32 %v3818, %v3888
        %3890 = vmatmul.f32.gmra.mxu0 %v3227
        %v3891 = vpop.f32.mrf.mxu0
        %v3892 = vadd.f32 %v3821, %v3891
        %3893 = vmatmul.f32.gmra.mxu0 %v3231
        %v3894 = vpop.f32.mrf.mxu0
        %v3895 = vadd.f32 %v3824, %v3894
        %3896 = vmatmul.f32.gmra.mxu0 %v3235
        %v3897 = vpop.f32.mrf.mxu0
        %v3898 = vadd.f32 %v3827, %v3897
        %3899 = vmatmul.f32.gmra.mxu0 %v3239
        %v3900 = vpop.f32.mrf.mxu0
        %v3901 = vadd.f32 %v3830, %v3900
        %3902 = vmatmul.f32.gmra.mxu0 %v3243
        %v3903 = vpop.f32.mrf.mxu0
        %v3904 = vadd.f32 %v3833, %v3903
        %3905 = vdwg.mxu0
        %3906 = vmatpush.msra.mxu0 %v3408
        %3907 = vmatpush.msra.mxu0 %v3406
        %3908 = vmatpush.msra.mxu0 %v3404
        %3909 = vmatpush.msra.mxu0 %v3402
        %3910 = vmatpush.msra.mxu0 %v3400
        %3911 = vmatpush.msra.mxu0 %v3398
        %3912 = vmatpush.msra.mxu0 %v3396
        %3913 = vmatpush.msra.mxu0 %v3394
        %3914 = vmatpush.msra.mxu0 %v3392
        %3915 = vmatpush.msra.mxu0 %v3390
        %3916 = vmatpush.msra.mxu0 %v3388
        %3917 = vmatpush.msra.mxu0 %v3386
        %3918 = vmatpush.msra.mxu0 %v3384
        %3919 = vmatpush.msra.mxu0 %v3382
        %3920 = vmatpush.msra.mxu0 %v3380
        %3921 = vmatpush.msra.mxu0 %v3378
        %3922 = vmatmul.f32.gmra.mxu0 %v3176
        %v3923 = vpop.f32.mrf.mxu0
        %v3924 = vadd.f32 %v3853, %v3923
        %3925 = vmatmul.f32.gmra.mxu0 %v3180
        %v3926 = vpop.f32.mrf.mxu0
        %v3927 = vadd.f32 %v3856, %v3926
        %3928 = vmatmul.f32.gmra.mxu0 %v3184
        %v3929 = vpop.f32.mrf.mxu0
        %v3930 = vadd.f32 %v3859, %v3929
        %3931 = vmatmul.f32.gmra.mxu0 %v3188
        %v3932 = vpop.f32.mrf.mxu0
        %v3933 = vadd.f32 %v3862, %v3932
        %3934 = vmatmul.f32.gmra.mxu0 %v3192
        %v3935 = vpop.f32.mrf.mxu0
        %v3936 = vadd.f32 %v3865, %v3935
        %3937 = vmatmul.f32.gmra.mxu0 %v3196
        %v3938 = vpop.f32.mrf.mxu0
        %v3939 = vadd.f32 %v3868, %v3938
        %3940 = vmatmul.f32.gmra.mxu0 %v3200
        %v3941 = vpop.f32.mrf.mxu0
        %v3942 = vadd.f32 %v3871, %v3941
        %3943 = vmatmul.f32.gmra.mxu0 %v3204
        %v3944 = vpop.f32.mrf.mxu0
        %v3945 = vadd.f32 %v3874, %v3944
        %3946 = vmatmul.f32.gmra.mxu0 %v3208
        %v3947 = vpop.f32.mrf.mxu0
        %v3948 = vadd.f32 %v3877, %v3947
        %3949 = vmatmul.f32.gmra.mxu0 %v3212
        %v3950 = vpop.f32.mrf.mxu0
        %v3951 = vadd.f32 %v3880, %v3950
        %3952 = vmatmul.f32.gmra.mxu0 %v3216
        %v3953 = vpop.f32.mrf.mxu0
        %v3954 = vadd.f32 %v3883, %v3953
        %3955 = vmatmul.f32.gmra.mxu0 %v3220
        %v3956 = vpop.f32.mrf.mxu0
        %v3957 = vadd.f32 %v3886, %v3956
        %3958 = vmatmul.f32.gmra.mxu0 %v3224
        %v3959 = vpop.f32.mrf.mxu0
        %v3960 = vadd.f32 %v3889, %v3959
        %3961 = vmatmul.f32.gmra.mxu0 %v3228
        %v3962 = vpop.f32.mrf.mxu0
        %v3963 = vadd.f32 %v3892, %v3962
        %3964 = vmatmul.f32.gmra.mxu0 %v3232
        %v3965 = vpop.f32.mrf.mxu0
        %v3966 = vadd.f32 %v3895, %v3965
        %3967 = vmatmul.f32.gmra.mxu0 %v3236
        %v3968 = vpop.f32.mrf.mxu0
        %v3969 = vadd.f32 %v3898, %v3968
        %3970 = vmatmul.f32.gmra.mxu0 %v3240
        %v3971 = vpop.f32.mrf.mxu0
        %v3972 = vadd.f32 %v3901, %v3971
        %3973 = vmatmul.f32.gmra.mxu0 %v3244
        %v3974 = vpop.f32.mrf.mxu0
        %v3975 = vadd.f32 %v3904, %v3974
        %3976 = vdwg.mxu0
        %v3977 = vadd.f32 %v3245, %v3640
        %v3978 = vadd.f32 %v3246, %v3924
        %v3979 = vadd.f32 %v3247, %v3643
        %v3980 = vadd.f32 %v3248, %v3927
        %v3981 = vadd.f32 %v3249, %v3646
        %v3982 = vadd.f32 %v3250, %v3930
        %v3983 = vadd.f32 %v3251, %v3649
        %v3984 = vadd.f32 %v3252, %v3933
        %v3985 = vadd.f32 %v3253, %v3652
        %v3986 = vadd.f32 %v3254, %v3936
        %v3987 = vadd.f32 %v3255, %v3655
        %v3988 = vadd.f32 %v3256, %v3939
        %v3989 = vadd.f32 %v3257, %v3658
        %v3990 = vadd.f32 %v3258, %v3942
        %v3991 = vadd.f32 %v3259, %v3661
        %v3992 = vadd.f32 %v3260, %v3945
        %v3993 = vadd.f32 %v3261, %v3664
        %v3994 = vadd.f32 %v3262, %v3948
        %v3995 = vadd.f32 %v3263, %v3667
        %v3996 = vadd.f32 %v3264, %v3951
        %v3997 = vadd.f32 %v3265, %v3670
        %v3998 = vadd.f32 %v3266, %v3954
        %v3999 = vadd.f32 %v3267, %v3673
        %v4000 = vadd.f32 %v3268, %v3957
        %v4001 = vadd.f32 %v3269, %v3676
        %v4002 = vadd.f32 %v3270, %v3960
        %v4003 = vadd.f32 %v3271, %v3679
        %v4004 = vadd.f32 %v3272, %v3963
        %v4005 = vadd.f32 %v3273, %v3682
        %v4006 = vadd.f32 %v3274, %v3966
        %v4007 = vadd.f32 %v3275, %v3685
        %v4008 = vadd.f32 %v3276, %v3969
        %v4009 = vadd.f32 %v3277, %v3688
        %v4010 = vadd.f32 %v3278, %v3972
        %v4011 = vadd.f32 %v3279, %v3691
        %v4012 = vadd.f32 %v3280, %v3975
        %4013 = vst [vmem:[#allocation2] sm:$0xff] %v3977
        %4014 = vst [vmem:[#allocation2 + $0x8] sm:$0xff] %v3978
        %4015 = vst [vmem:[#allocation2 + $0x10] sm:$0xff] %v3979
        %4016 = vst [vmem:[#allocation2 + $0x18] sm:$0xff] %v3980
        %4017 = vst [vmem:[#allocation2 + $0x20] sm:$0xff] %v3981
        %4018 = vst [vmem:[#allocation2 + $0x28] sm:$0xff] %v3982
        %4019 = vst [vmem:[#allocation2 + $0x30] sm:$0xff] %v3983
        %4020 = vst [vmem:[#allocation2 + $0x38] sm:$0xff] %v3984
        %4021 = vst [vmem:[#allocation2 + $0x40] sm:$0xff] %v3985
        %4022 = vst [vmem:[#allocation2 + $0x48] sm:$0xff] %v3986
        %4023 = vst [vmem:[#allocation2 + $0x50] sm:$0xff] %v3987
        %4024 = vst [vmem:[#allocation2 + $0x58] sm:$0xff] %v3988
        %4025 = vst [vmem:[#allocation2 + $0x60] sm:$0xff] %v3989
        %4026 = vst [vmem:[#allocation2 + $0x68] sm:$0xff] %v3990
        %4027 = vst [vmem:[#allocation2 + $0x70] sm:$0xff] %v3991
        %4028 = vst [vmem:[#allocation2 + $0x78] sm:$0xff] %v3992
        %4029 = vst [vmem:[#allocation2 + $0x80] sm:$0xff] %v3993
        %4030 = vst [vmem:[#allocation2 + $0x88] sm:$0xff] %v3994
        %4031 = vst [vmem:[#allocation2 + $0x90] sm:$0xff] %v3995
        %4032 = vst [vmem:[#allocation2 + $0x98] sm:$0xff] %v3996
        %4033 = vst [vmem:[#allocation2 + $0xa0] sm:$0xff] %v3997
        %4034 = vst [vmem:[#allocation2 + $0xa8] sm:$0xff] %v3998
        %4035 = vst [vmem:[#allocation2 + $0xb0] sm:$0xff] %v3999
        %4036 = vst [vmem:[#allocation2 + $0xb8] sm:$0xff] %v4000
        %4037 = vst [vmem:[#allocation2 + $0xc0] sm:$0xff] %v4001
        %4038 = vst [vmem:[#allocation2 + $0xc8] sm:$0xff] %v4002
        %4039 = vst [vmem:[#allocation2 + $0xd0] sm:$0xff] %v4003
        %4040 = vst [vmem:[#allocation2 + $0xd8] sm:$0xff] %v4004
        %4041 = vst [vmem:[#allocation2 + $0xe0] sm:$0xff] %v4005
        %4042 = vst [vmem:[#allocation2 + $0xe8] sm:$0xff] %v4006
        %4043 = vst [vmem:[#allocation2 + $0xf0] sm:$0xff] %v4007
        %4044 = vst [vmem:[#allocation2 + $0xf8] sm:$0xff] %v4008
        %4045 = vst [vmem:[#allocation2 + $0x100] sm:$0xff] %v4009
        %4046 = vst [vmem:[#allocation2 + $0x108] sm:$0xff] %v4010
        %4047 = vst [vmem:[#allocation2 + $0x110] sm:$0xff] %v4011
        %4048 = vst [vmem:[#allocation2 + $0x118] sm:$0xff] %v4012
        %p4049 = scmp.eq.s32.totalorder %s24, 1
        // Predicated region
        $region49: #{_mlp_forward.1} parent=31 // pred_check
          %p4050 = pneg %p4049
        $region50: #{_mlp_forward.1} parent=31 // pred_check_branch
          %4052 = sbr.rel (%p4050) target = $region52
        $region51: #{_mlp_forward.1} parent=31 // pred_region
          %v4053 = vld [vmem:[#allocation2] sm:$0xff]
          %v4054 = vld [vmem:[#allocation2 + $0x8] sm:$0xff]
          %v4055 = vld [vmem:[#allocation2 + $0x10] sm:$0xff]
          %v4056 = vld [vmem:[#allocation2 + $0x18] sm:$0xff]
          %v4057 = vld [vmem:[#allocation2 + $0x20] sm:$0xff]
          %v4058 = vld [vmem:[#allocation2 + $0x28] sm:$0xff]
          %v4059 = vld [vmem:[#allocation2 + $0x30] sm:$0xff]
          %v4060 = vld [vmem:[#allocation2 + $0x38] sm:$0xff]
          %v4061 = vld [vmem:[#allocation2 + $0x40] sm:$0xff]
          %v4062 = vld [vmem:[#allocation2 + $0x48] sm:$0xff]
          %v4063 = vld [vmem:[#allocation2 + $0x50] sm:$0xff]
          %v4064 = vld [vmem:[#allocation2 + $0x58] sm:$0xff]
          %v4065 = vld [vmem:[#allocation2 + $0x60] sm:$0xff]
          %v4066 = vld [vmem:[#allocation2 + $0x68] sm:$0xff]
          %v4067 = vld [vmem:[#allocation2 + $0x70] sm:$0xff]
          %v4068 = vld [vmem:[#allocation2 + $0x78] sm:$0xff]
          %v4069 = vld [vmem:[#allocation2 + $0x80] sm:$0xff]
          %v4070 = vld [vmem:[#allocation2 + $0x88] sm:$0xff]
          %v4071 = vld [vmem:[#allocation2 + $0x90] sm:$0xff]
          %v4072 = vld [vmem:[#allocation2 + $0x98] sm:$0xff]
          %v4073 = vld [vmem:[#allocation2 + $0xa0] sm:$0xff]
          %v4074 = vld [vmem:[#allocation2 + $0xa8] sm:$0xff]
          %v4075 = vld [vmem:[#allocation2 + $0xb0] sm:$0xff]
          %v4076 = vld [vmem:[#allocation2 + $0xb8] sm:$0xff]
          %v4077 = vld [vmem:[#allocation2 + $0xc0] sm:$0xff]
          %v4078 = vld [vmem:[#allocation2 + $0xc8] sm:$0xff]
          %v4079 = vld [vmem:[#allocation2 + $0xd0] sm:$0xff]
          %v4080 = vld [vmem:[#allocation2 + $0xd8] sm:$0xff]
          %v4081 = vld [vmem:[#allocation2 + $0xe0] sm:$0xff]
          %v4082 = vld [vmem:[#allocation2 + $0xe8] sm:$0xff]
          %v4083 = vld [vmem:[#allocation2 + $0xf0] sm:$0xff]
          %v4084 = vld [vmem:[#allocation2 + $0xf8] sm:$0xff]
          %v4085 = vld [vmem:[#allocation2 + $0x100] sm:$0xff]
          %v4086 = vld [vmem:[#allocation2 + $0x108] sm:$0xff]
          %v4087 = vld [vmem:[#allocation2 + $0x110] sm:$0xff]
          %v4088 = vld [vmem:[#allocation2 + $0x118] sm:$0xff]
          %4089 = vst [vmem:[#allocation9] sm:$0xff] %v4053
          %4090 = vst [vmem:[#allocation9 + $0x8] sm:$0xff] %v4054
          %4091 = vst [vmem:[#allocation9 + $0x10] sm:$0xff] %v4055
          %4092 = vst [vmem:[#allocation9 + $0x18] sm:$0xff] %v4056
          %4093 = vst [vmem:[#allocation9 + $0x20] sm:$0xff] %v4057
          %4094 = vst [vmem:[#allocation9 + $0x28] sm:$0xff] %v4058
          %4095 = vst [vmem:[#allocation9 + $0x30] sm:$0xff] %v4059
          %4096 = vst [vmem:[#allocation9 + $0x38] sm:$0xff] %v4060
          %4097 = vst [vmem:[#allocation9 + $0x40] sm:$0xff] %v4061
          %4098 = vst [vmem:[#allocation9 + $0x48] sm:$0xff] %v4062
          %4099 = vst [vmem:[#allocation9 + $0x50] sm:$0xff] %v4063
          %4100 = vst [vmem:[#allocation9 + $0x58] sm:$0xff] %v4064
          %4101 = vst [vmem:[#allocation9 + $0x60] sm:$0xff] %v4065
          %4102 = vst [vmem:[#allocation9 + $0x68] sm:$0xff] %v4066
          %4103 = vst [vmem:[#allocation9 + $0x70] sm:$0xff] %v4067
          %4104 = vst [vmem:[#allocation9 + $0x78] sm:$0xff] %v4068
          %4105 = vst [vmem:[#allocation9 + $0x80] sm:$0xff] %v4069
          %4106 = vst [vmem:[#allocation9 + $0x88] sm:$0xff] %v4070
          %4107 = vst [vmem:[#allocation9 + $0x90] sm:$0xff] %v4071
          %4108 = vst [vmem:[#allocation9 + $0x98] sm:$0xff] %v4072
          %4109 = vst [vmem:[#allocation9 + $0xa0] sm:$0xff] %v4073
          %4110 = vst [vmem:[#allocation9 + $0xa8] sm:$0xff] %v4074
          %4111 = vst [vmem:[#allocation9 + $0xb0] sm:$0xff] %v4075
          %4112 = vst [vmem:[#allocation9 + $0xb8] sm:$0xff] %v4076
          %4113 = vst [vmem:[#allocation9 + $0xc0] sm:$0xff] %v4077
          %4114 = vst [vmem:[#allocation9 + $0xc8] sm:$0xff] %v4078
          %4115 = vst [vmem:[#allocation9 + $0xd0] sm:$0xff] %v4079
          %4116 = vst [vmem:[#allocation9 + $0xd8] sm:$0xff] %v4080
          %4117 = vst [vmem:[#allocation9 + $0xe0] sm:$0xff] %v4081
          %4118 = vst [vmem:[#allocation9 + $0xe8] sm:$0xff] %v4082
          %4119 = vst [vmem:[#allocation9 + $0xf0] sm:$0xff] %v4083
          %4120 = vst [vmem:[#allocation9 + $0xf8] sm:$0xff] %v4084
          %4121 = vst [vmem:[#allocation9 + $0x100] sm:$0xff] %v4085
          %4122 = vst [vmem:[#allocation9 + $0x108] sm:$0xff] %v4086
          %4123 = vst [vmem:[#allocation9 + $0x110] sm:$0xff] %v4087
          %4124 = vst [vmem:[#allocation9 + $0x118] sm:$0xff] %v4088
        $region52: #{_mlp_forward.1} parent=31 // pred_fallthru
          _
        // Predicated region
        $region53: #{_mlp_forward.1} parent=31 // pred_check
          %p4125 = pneg %p127
        $region54: #{_mlp_forward.1} parent=31 // pred_check_branch
          %4127 = sbr.rel (%p4125) target = $region56
        $region55: #{_mlp_forward.1} parent=31 // pred_region
          %s4128 = smul.u32 18, %s23
          %4130 = vsyncadd [#allocation5], 0
          %s4131 = smul.addr %s4128, 2
          %s4132 = smul.addr %s4131, 8
          %s4133 = scalar_lea.hbm %s3, %s4132
          %s4134 = sshll.u32 [#allocation9], 4
          %s4135 = int_to_ptr.vmem [resolvable:$true] %s4134
          %s4136 = sshll.u32 %s4133, 4
          %s4137 = int_to_ptr.hbm [resolvable:$true] %s4136
          %4142 = dma.vmem_to_hbm [thread:$0]  %s4135, 4608, %s4137, [#allocation5], 256, 256, 16
        $region56: #{_mlp_forward.1} parent=31 // pred_fallthru
          _
        // Predicated region
        $region57: #{_mlp_forward.1} parent=31 // pred_check
          %p4143 = pneg %p127
        $region58: #{_mlp_forward.1} parent=31 // pred_check_branch
          %4145 = sbr.rel (%p4143) target = $region60
        $region59: #{_mlp_forward.1} parent=31 // pred_region
          %4147 = dma.done [#allocation5], 4608
        $region60: #{_mlp_forward.1} parent=31 // pred_fallthru
          _
      $region32: #{_mlp_forward.1} parent=5 // pred_fallthru
        _
      %p4148 = scmp.le.s32.totalorder 2, %s14
      // Predicated region
      $region61: #{_mlp_forward.1} parent=5 // pred_check
        %p4149 = pneg %p4148
      $region62: #{_mlp_forward.1} parent=5 // pred_check_branch
        %4151 = sbr.rel (%p4149) target = $region64
      $region63: #{_mlp_forward.1} parent=5 // pred_region
        %s4152 = ssub.s32 %s14, 2
      $region64: #{_mlp_forward.1} parent=5 // pred_fallthru
        _
    $region6: #{_mlp_forward.1} parent=1 // loop_footer
      %s18 = sadd.s32 1, %s14
    $region7: #{_mlp_forward.1} parent=1 // loop_footer_branch
      %13 = sbr.rel target = $region3
    $region8: #{_mlp_forward.1} parent=1 // loop_exit
      _
    %4153 = vsyncpa [#allocation4], 1
    %s4154 = scalar_lea.sflag [#allocation4], 1
    %4155 = vsyncpa %s4154, 1
    %4156 = vsyncpa [#allocation7], 1
    %s4157 = scalar_lea.sflag [#allocation7], 1
    %4158 = vsyncpa %s4157, 1
    %4159 = vsyncpa [#allocation5], 1
    %s4160 = scalar_lea.sflag [#allocation5], 1
    %4161 = vsyncpa %s4160, 1

</llo_original>
